<compile_context>
chip_gen: v5e
topology: v5e:2x2
jax: 0.10.0
libtpu: 0.0.40
codegen_flags: <defaults>
</compile_context>

<pallas_src>
import functools

import jax
import jax.numpy as jnp
from jax.experimental import pallas as pl
from jax.experimental.pallas import tpu as pltpu  # noqa: F401  (TPU backend)


def model2_3_kernel(
    # inputs (whole-array VMEM refs; no grid)
    x_ref, d_ref, m_ref, h0_ref,
    wg1_ref, wg23_ref,
    brz_ref, bin_ref, bhn_ref,
    whead_ref, bhead_ref, wd_ref, bd_ref,
    # output: (T, B, Wp) fused head tile [x_hat | m_hat | softmax(y) | pad]
    out_ref,
    *, num_class,
):
    T, B, V = x_ref.shape
    H = wd_ref.shape[1]
    Wp = whead_ref.shape[1]
    C = num_class

    # ---- hoisted, loop-invariant loads / broadcasts ----
    w1 = wg1_ref[...]                                   # (V+H, 4H)
    w2 = wg23_ref[0]                                    # (2H, 4H)
    w3 = wg23_ref[1]                                    # (2H, 4H)
    brz = [jnp.broadcast_to(brz_ref[l], (B, 2 * H)) for l in range(3)]
    b_in = [jnp.broadcast_to(bin_ref[l], (B, H)) for l in range(3)]
    b_hn = [jnp.broadcast_to(bhn_ref[l], (B, H)) for l in range(3)]
    whead = whead_ref[...]                              # (H, Wp)
    bhead = jnp.broadcast_to(bhead_ref[...], (B, Wp))
    wd_b = jnp.broadcast_to(wd_ref[...], (B, H))
    bd_b = jnp.broadcast_to(bd_ref[...], (B, H))

    col = jax.lax.broadcasted_iota(jnp.int32, (B, Wp), 1)
    m_xhat = col < V
    m_mhat = col < 2 * V
    m_y = (col >= 2 * V) & (col < 2 * V + C)
    neg_big = jnp.float32(-1e30)

    def gru(xin, h, w, layer):
        # Fused single-matmul PyTorch GRUCell, gate order (r, z, n).
        # Columns of g: [0,2H)=gi_rz+gh_rz, [2H,3H)=gi_n, [3H,4H)=gh_n.
        xh = jnp.concatenate([xin, h], axis=1)
        g = jnp.dot(xh, w, preferred_element_type=jnp.float32)       # (B, 4H)
        rz = jax.nn.sigmoid(g[:, : 2 * H] + brz[layer])
        r = rz[:, :H]
        z = rz[:, H:]
        n = jnp.tanh(g[:, 2 * H: 3 * H] + b_in[layer]
                     + r * (g[:, 3 * H:] + b_hn[layer]))
        return (1.0 - z) * n + z * h

    def head(h3, with_sigmoid):
        # One (B, Wp) head tile: cols [0,V)=x_hat, [V,2V)=m_hat, [2V,2V+C)=y.
        hd = jnp.dot(h3, whead, preferred_element_type=jnp.float32) + bhead
        logits = jnp.where(m_y, hd, neg_big)
        mx = jnp.max(logits, axis=1, keepdims=True)
        e = jnp.exp(logits - mx)                 # exactly 0 outside y region
        ysm = e / jnp.sum(e, axis=1, keepdims=True)      # exact softmax divide
        if with_sigmoid:
            out = jnp.where(m_xhat, hd,
                            jnp.where(m_mhat, jax.nn.sigmoid(hd), ysm))
        else:
            # t == 0: x_hat[0]/m_hat[0] are discarded by the wrapper -> skip sigmoid
            out = jnp.where(m_mhat, hd, ysm)
        return out, hd[:, :V]

    # ---- t == 0 (peeled: no decay, x1 = x[0]) ----
    h1 = gru(x_ref[0], h0_ref[0], w1, 0)
    h2 = gru(h1, h0_ref[1], w2, 1)
    h3 = gru(h2, h0_ref[2], w3, 2)
    out0, x_prev = head(h3, with_sigmoid=False)
    out_ref[0] = out0

    # ---- t = 1 .. T-1 (steady state) ----
    def body(t, carry):
        h1, h2, h3, x_prev = carry
        d_t = d_ref[t]                                            # (B, 1)
        gamma = jnp.exp(-jnp.maximum(d_t * wd_b + bd_b, 0.0))      # (B, H)
        h1 = h1 * gamma
        h2 = h2 * gamma
        h3 = h3 * gamma
        m_t = m_ref[t]
        x1 = x_prev * (1.0 - m_t) + m_t * x_ref[t]
        h1 = gru(x1, h1, w1, 0)
        h2 = gru(h1, h2, w2, 1)
        h3 = gru(h2, h3, w3, 2)
        out_t, x_hat = head(h3, with_sigmoid=True)
        out_ref[t] = out_t
        return h1, h2, h3, x_hat

    jax.lax.fori_loop(1, T, body, (h1, h2, h3, x_prev), unroll=True)


def pack_model2_3_params(params, lane_pad=128):
    """One-time packing of parameters into the kernel layout (call once,
    reuse across forward calls; keeps per-call concat/stack off the hot path)."""
    V, H = params["wih1"].shape[1], params["wih1"].shape[2]
    C = params["wy"].shape[1]
    f32 = jnp.float32

    def fuse_gru(wih, whh):
        # wih: (3, I, H), whh: (3, H, H), gate order (r, z, n).
        I = wih.shape[1]
        top = jnp.concatenate(
            [wih[0], wih[1], wih[2], jnp.zeros((I, H), f32)], axis=1)   # (I, 4H)
        bot = jnp.concatenate(
            [whh[0], whh[1], jnp.zeros((H, H), f32), whh[2]], axis=1)   # (H, 4H)
        return jnp.concatenate([top, bot], axis=0)                      # (I+H, 4H)

    def gru_biases(bih, bhh):
        brz = jnp.concatenate([bih[0] + bhh[0], bih[1] + bhh[1]], axis=1)  # (1,2H)
        return brz, bih[2], bhh[2]          # b_hn must stay inside r*(.)

    wg1 = fuse_gru(params["wih1"], params["whh1"])                  # (V+H, 4H)
    wg2 = fuse_gru(params["wih2"], params["whh2"])                  # (2H, 4H)
    wg3 = fuse_gru(params["wih3"], params["whh3"])
    wg23 = jnp.stack([wg2, wg3], axis=0)                            # (2, 2H, 4H)

    brz1, bin1, bhn1 = gru_biases(params["bih1"], params["bhh1"])
    brz2, bin2, bhn2 = gru_biases(params["bih2"], params["bhh2"])
    brz3, bin3, bhn3 = gru_biases(params["bih3"], params["bhh3"])
    brz = jnp.stack([brz1, brz2, brz3], axis=0)                     # (3, 1, 2H)
    b_in = jnp.stack([bin1, bin2, bin3], axis=0)                    # (3, 1, H)
    b_hn = jnp.stack([bhn1, bhn2, bhn3], axis=0)                    # (3, 1, H)

    # Fused lane-padded output head: [x_hat (V) | m_hat (V) | y (C) | 0-pad]
    wide = 2 * V + C
    Wp = max(lane_pad, ((wide + lane_pad - 1) // lane_pad) * lane_pad)
    whead = jnp.concatenate(
        [params["wx"], params["wm"], params["wy"],
         jnp.zeros((H, Wp - wide), f32)], axis=1)                   # (H, Wp)
    bhead = jnp.concatenate(
        [params["bx"], params["bm"], params["by"],
         jnp.zeros((1, Wp - wide), f32)], axis=1)                   # (1, Wp)

    return dict(wg1=wg1, wg23=wg23, brz=brz, b_in=b_in, b_hn=b_hn,
                whead=whead, bhead=bhead, wd=params["wd"], bd=params["bd"],
                V=V, H=H, C=C, Wp=Wp)


def model2_3_forward(x, d, m1, h0s, packed):
    """x: (B,T,V), d: (B,T,1), m1: (B,T,V); returns (Y, X_hat, M_hat) in the
    PyTorch layout: (B,T,C), (B,T-1,V), (B,T-1,V)."""
    B, T, V = x.shape
    H, C, Wp = packed["H"], packed["C"], packed["Wp"]

    # Time-major activations (kernel loops over the leading axis).
    x_tm = jnp.transpose(x, (1, 0, 2)).astype(jnp.float32)    # (T, B, V)
    d_tm = jnp.transpose(d, (1, 0, 2)).astype(jnp.float32)    # (T, B, 1)
    m_tm = jnp.transpose(m1, (1, 0, 2)).astype(jnp.float32)   # (T, B, V)
    h0 = jnp.stack(h0s, axis=0).astype(jnp.float32)           # (3, B, H)

    kernel = functools.partial(model2_3_kernel, num_class=C)

    # No grid: every operand is a whole-array VMEM ref; the kernel loops over T.
    out_tm = pl.pallas_call(
        kernel,
        out_shape=jax.ShapeDtypeStruct((T, B, Wp), jnp.float32),
    )(
        x_tm, d_tm, m_tm, h0,
        packed["wg1"], packed["wg23"],
        packed["brz"], packed["b_in"], packed["b_hn"],
        packed["whead"], packed["bhead"], packed["wd"], packed["bd"],
    )

    Y = jnp.transpose(out_tm[:, :, 2 * V: 2 * V + C], (1, 0, 2))   # (B, T, C)
    X_hat = jnp.transpose(out_tm[1:, :, :V], (1, 0, 2))            # (B, T-1, V)
    M_hat = jnp.transpose(out_tm[1:, :, V: 2 * V], (1, 0, 2))      # (B, T-1, V)
    return Y, X_hat, M_hat


def model2_3_ref(x, d, m1, h0s, params):
    """Pure-JAX reference mirroring the PyTorch forward (unfused math)."""
    B, T, V = x.shape
    h1, h2, h3 = [h.astype(jnp.float32) for h in h0s]

    def gru_ref(xin, h, wih, whh, bih, bhh):
        r = jax.nn.sigmoid(xin @ wih[0] + bih[0] + h @ whh[0] + bhh[0])
        z = jax.nn.sigmoid(xin @ wih[1] + bih[1] + h @ whh[1] + bhh[1])
        n = jnp.tanh(xin @ wih[2] + bih[2] + r * (h @ whh[2] + bhh[2]))
        return (1.0 - z) * n + z * h

    Ys, Xs, Ms = [], [], []
    x_hat = None
    for t in range(T):
        if t > 0:
            gamma = jnp.exp(-jax.nn.relu(d[:, t, :] @ params["wd"] + params["bd"]))
            h1, h2, h3 = h1 * gamma, h2 * gamma, h3 * gamma
            x1 = x_hat * (1.0 - m1[:, t, :]) + m1[:, t, :] * x[:, t, :]
        else:
            x1 = x[:, t, :]
        h1 = gru_ref(x1, h1, params["wih1"], params["whh1"], params["bih1"], params["bhh1"])
        h2 = gru_ref(h1, h2, params["wih2"], params["whh2"], params["bih2"], params["bhh2"])
        h3 = gru_ref(h2, h3, params["wih3"], params["whh3"], params["bih3"], params["bhh3"])
        y = jax.nn.softmax(h3 @ params["wy"] + params["by"], axis=1)
        x_hat = h3 @ params["wx"] + params["bx"]
        m_hat = jax.nn.sigmoid(h3 @ params["wm"] + params["bm"])
        Ys.append(y)
        if t >= 1:
            Xs.append(x_hat)
            Ms.append(m_hat)
    return jnp.stack(Ys, 1), jnp.stack(Xs, 1), jnp.stack(Ms, 1)


def make_params(key, V, H, C):
    # Deterministic synthetic init (the reference init_weights actually zeroes
    # the GRU params due to a `find('weight') > 0` bug; we use small random
    # values instead for a non-degenerate numerical test).
    ks = jax.random.split(key, 20)
    n = lambda k, s, sc=0.3: (sc * jax.random.normal(k, s)).astype(jnp.float32)
    return {
        "wih1": n(ks[0], (3, V, H)), "whh1": n(ks[1], (3, H, H)),
        "bih1": n(ks[2], (3, 1, H), 0.05), "bhh1": n(ks[3], (3, 1, H), 0.05),
        "wih2": n(ks[4], (3, H, H)), "whh2": n(ks[5], (3, H, H)),
        "bih2": n(ks[6], (3, 1, H), 0.05), "bhh2": n(ks[7], (3, 1, H), 0.05),
        "wih3": n(ks[8], (3, H, H)), "whh3": n(ks[9], (3, H, H)),
        "bih3": n(ks[10], (3, 1, H), 0.05), "bhh3": n(ks[11], (3, 1, H), 0.05),
        "wy": n(ks[12], (H, C)), "by": jax.random.uniform(ks[13], (1, C)).astype(jnp.float32),
        "wx": n(ks[14], (H, V)), "bx": jax.random.uniform(ks[15], (1, V)).astype(jnp.float32),
        "wm": n(ks[16], (H, V)), "bm": jax.random.uniform(ks[17], (1, V)).astype(jnp.float32),
        "wd": n(ks[18], (1, H)), "bd": jax.random.uniform(ks[19], (1, H)).astype(jnp.float32),
    }


if __name__ == "__main__":
    B, T, V, H, C = 4, 6, 8, 32, 5  # batch, time, input_size, hidden_size, num_class

    key = jax.random.PRNGKey(0)
    k_x, k_d, k_m, k_h1, k_h2, k_h3, k_p = jax.random.split(key, 7)

    x = jax.random.normal(k_x, (B, T, V), dtype=jnp.float32)
    d = jnp.abs(jax.random.normal(k_d, (B, T, 1), dtype=jnp.float32))       # time deltas
    m1 = (jax.random.uniform(k_m, (B, T, V)) > 0.3).astype(jnp.float32)     # observation mask
    # TODO(synk): the reference samples h0 with host-side np.random each call;
    # here h0 ~ N(0, 0.1) is passed in as a deterministic input for reproducibility.
    h0s = (
        0.1 * jax.random.normal(k_h1, (B, H), dtype=jnp.float32),
        0.1 * jax.random.normal(k_h2, (B, H), dtype=jnp.float32),
        0.1 * jax.random.normal(k_h3, (B, H), dtype=jnp.float32),
    )
    params = make_params(k_p, V, H, C)
    packed = pack_model2_3_params(params)    # one-time weight packing

    Y, X_hat, M_hat = model2_3_forward(x, d, m1, h0s, packed)
    Y, X_hat, M_hat = jax.block_until_ready((Y, X_hat, M_hat))

    assert Y.shape == (B, T, C)
    assert X_hat.shape == (B, T - 1, V)
    assert M_hat.shape == (B, T - 1, V)
    assert bool(jnp.all(jnp.isfinite(Y)))
    assert bool(jnp.all(jnp.isfinite(X_hat)))
    assert bool(jnp.all(jnp.isfinite(M_hat)))
    # exact-divide softmax: rows sum to 1 within f32 rounding
    assert bool(jnp.allclose(jnp.sum(Y, axis=-1), 1.0, atol=1e-3))

    # Numerical check against a pure-JAX reference of the PyTorch forward
    # (loose tolerance to accommodate MXU f32 matmul precision on hardware).
    Y_r, X_r, M_r = model2_3_ref(x, d, m1, h0s, params)
    assert bool(jnp.allclose(Y, Y_r, atol=1e-2, rtol=1e-2))
    assert bool(jnp.allclose(X_hat, X_r, atol=1e-2, rtol=1e-2))
    assert bool(jnp.allclose(M_hat, M_r, atol=1e-2, rtol=1e-2))

    print("KERNEL_OK")
</pallas_src>

<mosaic_0001>
module attributes {stable_mosaic.version = 11 : i64} {
  func.func @model2_3_kernel(%arg0: memref<6x4x8xf32, #tpu.memory_space<vmem>>, %arg1: memref<6x4x1xf32, #tpu.memory_space<vmem>>, %arg2: memref<6x4x8xf32, #tpu.memory_space<vmem>>, %arg3: memref<3x4x32xf32, #tpu.memory_space<vmem>>, %arg4: memref<40x128xf32, #tpu.memory_space<vmem>>, %arg5: memref<2x64x128xf32, #tpu.memory_space<vmem>>, %arg6: memref<3x1x64xf32, #tpu.memory_space<vmem>>, %arg7: memref<3x1x32xf32, #tpu.memory_space<vmem>>, %arg8: memref<3x1x32xf32, #tpu.memory_space<vmem>>, %arg9: memref<32x128xf32, #tpu.memory_space<vmem>>, %arg10: memref<1x128xf32, #tpu.memory_space<vmem>>, %arg11: memref<1x32xf32, #tpu.memory_space<vmem>>, %arg12: memref<1x32xf32, #tpu.memory_space<vmem>>, %arg13: memref<6x4x128xf32, #tpu.memory_space<vmem>>) attributes {dimension_semantics = [], scalar_prefetch = 0 : i64, scratch_operands = 0 : i64, tpu.core_type = #tpu.core_type<tc>} {
    %c0 = arith.constant 0 : index
    %c0_0 = arith.constant 0 : index
    %0 = vector.load %arg4[%c0, %c0_0] : memref<40x128xf32, #tpu.memory_space<vmem>>, vector<40x128xf32>
    %c0_1 = arith.constant 0 : index
    %c0_2 = arith.constant 0 : index
    %c0_3 = arith.constant 0 : index
    %1 = vector.load %arg5[%c0_1, %c0_2, %c0_3] : memref<2x64x128xf32, #tpu.memory_space<vmem>>, vector<1x64x128xf32>
    %2 = vector.shape_cast %1 : vector<1x64x128xf32> to vector<64x128xf32>
    %c1 = arith.constant 1 : index
    %c0_4 = arith.constant 0 : index
    %c0_5 = arith.constant 0 : index
    %3 = vector.load %arg5[%c1, %c0_4, %c0_5] : memref<2x64x128xf32, #tpu.memory_space<vmem>>, vector<1x64x128xf32>
    %4 = vector.shape_cast %3 : vector<1x64x128xf32> to vector<64x128xf32>
    %c0_6 = arith.constant 0 : index
    %c0_7 = arith.constant 0 : index
    %c0_8 = arith.constant 0 : index
    %5 = vector.load %arg6[%c0_6, %c0_7, %c0_8] : memref<3x1x64xf32, #tpu.memory_space<vmem>>, vector<1x1x64xf32>
    %6 = vector.shape_cast %5 : vector<1x1x64xf32> to vector<1x64xf32>
    %7 = vector.shape_cast %6 : vector<1x64xf32> to vector<1x64xf32>
    %8 = vector.broadcast %7 : vector<1x64xf32> to vector<4x64xf32>
    %c1_9 = arith.constant 1 : index
    %c0_10 = arith.constant 0 : index
    %c0_11 = arith.constant 0 : index
    %9 = vector.load %arg6[%c1_9, %c0_10, %c0_11] : memref<3x1x64xf32, #tpu.memory_space<vmem>>, vector<1x1x64xf32>
    %10 = vector.shape_cast %9 : vector<1x1x64xf32> to vector<1x64xf32>
    %11 = vector.shape_cast %10 : vector<1x64xf32> to vector<1x64xf32>
    %12 = vector.broadcast %11 : vector<1x64xf32> to vector<4x64xf32>
    %c2 = arith.constant 2 : index
    %c0_12 = arith.constant 0 : index
    %c0_13 = arith.constant 0 : index
    %13 = vector.load %arg6[%c2, %c0_12, %c0_13] : memref<3x1x64xf32, #tpu.memory_space<vmem>>, vector<1x1x64xf32>
    %14 = vector.shape_cast %13 : vector<1x1x64xf32> to vector<1x64xf32>
    %15 = vector.shape_cast %14 : vector<1x64xf32> to vector<1x64xf32>
    %16 = vector.broadcast %15 : vector<1x64xf32> to vector<4x64xf32>
    %c0_14 = arith.constant 0 : index
    %c0_15 = arith.constant 0 : index
    %c0_16 = arith.constant 0 : index
    %17 = vector.load %arg7[%c0_14, %c0_15, %c0_16] : memref<3x1x32xf32, #tpu.memory_space<vmem>>, vector<1x1x32xf32>
    %18 = vector.shape_cast %17 : vector<1x1x32xf32> to vector<1x32xf32>
    %19 = vector.shape_cast %18 : vector<1x32xf32> to vector<1x32xf32>
    %20 = vector.broadcast %19 : vector<1x32xf32> to vector<4x32xf32>
    %c1_17 = arith.constant 1 : index
    %c0_18 = arith.constant 0 : index
    %c0_19 = arith.constant 0 : index
    %21 = vector.load %arg7[%c1_17, %c0_18, %c0_19] : memref<3x1x32xf32, #tpu.memory_space<vmem>>, vector<1x1x32xf32>
    %22 = vector.shape_cast %21 : vector<1x1x32xf32> to vector<1x32xf32>
    %23 = vector.shape_cast %22 : vector<1x32xf32> to vector<1x32xf32>
    %24 = vector.broadcast %23 : vector<1x32xf32> to vector<4x32xf32>
    %c2_20 = arith.constant 2 : index
    %c0_21 = arith.constant 0 : index
    %c0_22 = arith.constant 0 : index
    %25 = vector.load %arg7[%c2_20, %c0_21, %c0_22] : memref<3x1x32xf32, #tpu.memory_space<vmem>>, vector<1x1x32xf32>
    %26 = vector.shape_cast %25 : vector<1x1x32xf32> to vector<1x32xf32>
    %27 = vector.shape_cast %26 : vector<1x32xf32> to vector<1x32xf32>
    %28 = vector.broadcast %27 : vector<1x32xf32> to vector<4x32xf32>
    %c0_23 = arith.constant 0 : index
    %c0_24 = arith.constant 0 : index
    %c0_25 = arith.constant 0 : index
    %29 = vector.load %arg8[%c0_23, %c0_24, %c0_25] : memref<3x1x32xf32, #tpu.memory_space<vmem>>, vector<1x1x32xf32>
    %30 = vector.shape_cast %29 : vector<1x1x32xf32> to vector<1x32xf32>
    %31 = vector.shape_cast %30 : vector<1x32xf32> to vector<1x32xf32>
    %32 = vector.broadcast %31 : vector<1x32xf32> to vector<4x32xf32>
    %c1_26 = arith.constant 1 : index
    %c0_27 = arith.constant 0 : index
    %c0_28 = arith.constant 0 : index
    %33 = vector.load %arg8[%c1_26, %c0_27, %c0_28] : memref<3x1x32xf32, #tpu.memory_space<vmem>>, vector<1x1x32xf32>
    %34 = vector.shape_cast %33 : vector<1x1x32xf32> to vector<1x32xf32>
    %35 = vector.shape_cast %34 : vector<1x32xf32> to vector<1x32xf32>
    %36 = vector.broadcast %35 : vector<1x32xf32> to vector<4x32xf32>
    %c2_29 = arith.constant 2 : index
    %c0_30 = arith.constant 0 : index
    %c0_31 = arith.constant 0 : index
    %37 = vector.load %arg8[%c2_29, %c0_30, %c0_31] : memref<3x1x32xf32, #tpu.memory_space<vmem>>, vector<1x1x32xf32>
    %38 = vector.shape_cast %37 : vector<1x1x32xf32> to vector<1x32xf32>
    %39 = vector.shape_cast %38 : vector<1x32xf32> to vector<1x32xf32>
    %40 = vector.broadcast %39 : vector<1x32xf32> to vector<4x32xf32>
    %c0_32 = arith.constant 0 : index
    %c0_33 = arith.constant 0 : index
    %41 = vector.load %arg9[%c0_32, %c0_33] : memref<32x128xf32, #tpu.memory_space<vmem>>, vector<32x128xf32>
    %c0_34 = arith.constant 0 : index
    %c0_35 = arith.constant 0 : index
    %42 = vector.load %arg10[%c0_34, %c0_35] : memref<1x128xf32, #tpu.memory_space<vmem>>, vector<1x128xf32>
    %43 = vector.shape_cast %42 : vector<1x128xf32> to vector<1x128xf32>
    %44 = vector.broadcast %43 : vector<1x128xf32> to vector<4x128xf32>
    %c0_36 = arith.constant 0 : index
    %c0_37 = arith.constant 0 : index
    %45 = vector.load %arg11[%c0_36, %c0_37] : memref<1x32xf32, #tpu.memory_space<vmem>>, vector<1x32xf32>
    %46 = vector.shape_cast %45 : vector<1x32xf32> to vector<1x32xf32>
    %47 = vector.broadcast %46 : vector<1x32xf32> to vector<4x32xf32>
    %c0_38 = arith.constant 0 : index
    %c0_39 = arith.constant 0 : index
    %48 = vector.load %arg12[%c0_38, %c0_39] : memref<1x32xf32, #tpu.memory_space<vmem>>, vector<1x32xf32>
    %49 = vector.shape_cast %48 : vector<1x32xf32> to vector<1x32xf32>
    %50 = vector.broadcast %49 : vector<1x32xf32> to vector<4x32xf32>
    %51 = tpu.iota {dimensions = array<i32: 1>} : vector<4x128xi32>
    %c8_i32 = arith.constant 8 : i32
    %52 = vector.broadcast %c8_i32 : i32 to vector<4x128xi32>
    %53 = arith.cmpi slt, %51, %52 : vector<4x128xi32>
    %c16_i32 = arith.constant 16 : i32
    %54 = vector.broadcast %c16_i32 : i32 to vector<4x128xi32>
    %55 = arith.cmpi slt, %51, %54 : vector<4x128xi32>
    %c16_i32_40 = arith.constant 16 : i32
    %56 = vector.broadcast %c16_i32_40 : i32 to vector<4x128xi32>
    %57 = arith.cmpi sge, %51, %56 : vector<4x128xi32>
    %c21_i32 = arith.constant 21 : i32
    %58 = vector.broadcast %c21_i32 : i32 to vector<4x128xi32>
    %59 = arith.cmpi slt, %51, %58 : vector<4x128xi32>
    %60 = arith.andi %57, %59 : vector<4x128xi1>
    %c0_41 = arith.constant 0 : index
    %c0_42 = arith.constant 0 : index
    %c0_43 = arith.constant 0 : index
    %61 = vector.load %arg0[%c0_41, %c0_42, %c0_43] : memref<6x4x8xf32, #tpu.memory_space<vmem>>, vector<1x4x8xf32>
    %62 = vector.shape_cast %61 : vector<1x4x8xf32> to vector<4x8xf32>
    %c0_44 = arith.constant 0 : index
    %c0_45 = arith.constant 0 : index
    %c0_46 = arith.constant 0 : index
    %63 = vector.load %arg3[%c0_44, %c0_45, %c0_46] : memref<3x4x32xf32, #tpu.memory_space<vmem>>, vector<1x4x32xf32>
    %64 = vector.shape_cast %63 : vector<1x4x32xf32> to vector<4x32xf32>
    %65 = tpu.concatenate %62, %64 in 1 : vector<4x8xf32>, vector<4x32xf32> -> vector<4x40xf32>
    %cst = arith.constant dense<0.000000e+00> : vector<4x128xf32>
    %66 = tpu.matmul %65, %0, %cst {dimension_numbers = #tpu.dot_dimension_numbers<[1], [0], [0], [1], [0, 0, 1, 1], [], []>} : vector<4x40xf32>, vector<40x128xf32>, vector<4x128xf32> -> vector<4x128xf32>
    %67 = vector.extract_strided_slice %66 {offsets = [0, 0], sizes = [4, 64], strides = [1, 1]} : vector<4x128xf32> to vector<4x64xf32>
    %68 = arith.addf %67, %8 : vector<4x64xf32>
    %69 = arith.negf %68 : vector<4x64xf32>
    %70 = math.exp %69 : vector<4x64xf32>
    %cst_47 = arith.constant 1.000000e+00 : f32
    %71 = vector.broadcast %cst_47 : f32 to vector<4x64xf32>
    %72 = arith.addf %71, %70 : vector<4x64xf32>
    %73 = arith.divf %71, %72 : vector<4x64xf32>
    %74 = vector.extract_strided_slice %73 {offsets = [0, 0], sizes = [4, 32], strides = [1, 1]} : vector<4x64xf32> to vector<4x32xf32>
    %75 = vector.extract_strided_slice %73 {offsets = [0, 32], sizes = [4, 32], strides = [1, 1]} : vector<4x64xf32> to vector<4x32xf32>
    %76 = vector.extract_strided_slice %66 {offsets = [0, 64], sizes = [4, 32], strides = [1, 1]} : vector<4x128xf32> to vector<4x32xf32>
    %77 = arith.addf %76, %20 : vector<4x32xf32>
    %78 = vector.extract_strided_slice %66 {offsets = [0, 96], sizes = [4, 32], strides = [1, 1]} : vector<4x128xf32> to vector<4x32xf32>
    %79 = arith.addf %78, %32 : vector<4x32xf32>
    %80 = arith.mulf %74, %79 : vector<4x32xf32>
    %81 = arith.addf %77, %80 : vector<4x32xf32>
    %82 = math.tanh %81 : vector<4x32xf32>
    %cst_48 = arith.constant 1.000000e+00 : f32
    %83 = vector.broadcast %cst_48 : f32 to vector<4x32xf32>
    %84 = arith.subf %83, %75 : vector<4x32xf32>
    %85 = arith.mulf %84, %82 : vector<4x32xf32>
    %86 = arith.mulf %75, %64 : vector<4x32xf32>
    %87 = arith.addf %85, %86 : vector<4x32xf32>
    %c1_49 = arith.constant 1 : index
    %c0_50 = arith.constant 0 : index
    %c0_51 = arith.constant 0 : index
    %88 = vector.load %arg3[%c1_49, %c0_50, %c0_51] : memref<3x4x32xf32, #tpu.memory_space<vmem>>, vector<1x4x32xf32>
    %89 = vector.shape_cast %88 : vector<1x4x32xf32> to vector<4x32xf32>
    %90 = tpu.concatenate %87, %89 in 1 : vector<4x32xf32>, vector<4x32xf32> -> vector<4x64xf32>
    %cst_52 = arith.constant dense<0.000000e+00> : vector<4x128xf32>
    %91 = tpu.matmul %90, %2, %cst_52 {dimension_numbers = #tpu.dot_dimension_numbers<[1], [0], [0], [1], [0, 0, 1, 1], [], []>} : vector<4x64xf32>, vector<64x128xf32>, vector<4x128xf32> -> vector<4x128xf32>
    %92 = vector.extract_strided_slice %91 {offsets = [0, 0], sizes = [4, 64], strides = [1, 1]} : vector<4x128xf32> to vector<4x64xf32>
    %93 = arith.addf %92, %12 : vector<4x64xf32>
    %94 = arith.negf %93 : vector<4x64xf32>
    %95 = math.exp %94 : vector<4x64xf32>
    %cst_53 = arith.constant 1.000000e+00 : f32
    %96 = vector.broadcast %cst_53 : f32 to vector<4x64xf32>
    %97 = arith.addf %96, %95 : vector<4x64xf32>
    %98 = arith.divf %96, %97 : vector<4x64xf32>
    %99 = vector.extract_strided_slice %98 {offsets = [0, 0], sizes = [4, 32], strides = [1, 1]} : vector<4x64xf32> to vector<4x32xf32>
    %100 = vector.extract_strided_slice %98 {offsets = [0, 32], sizes = [4, 32], strides = [1, 1]} : vector<4x64xf32> to vector<4x32xf32>
    %101 = vector.extract_strided_slice %91 {offsets = [0, 64], sizes = [4, 32], strides = [1, 1]} : vector<4x128xf32> to vector<4x32xf32>
    %102 = arith.addf %101, %24 : vector<4x32xf32>
    %103 = vector.extract_strided_slice %91 {offsets = [0, 96], sizes = [4, 32], strides = [1, 1]} : vector<4x128xf32> to vector<4x32xf32>
    %104 = arith.addf %103, %36 : vector<4x32xf32>
    %105 = arith.mulf %99, %104 : vector<4x32xf32>
    %106 = arith.addf %102, %105 : vector<4x32xf32>
    %107 = math.tanh %106 : vector<4x32xf32>
    %cst_54 = arith.constant 1.000000e+00 : f32
    %108 = vector.broadcast %cst_54 : f32 to vector<4x32xf32>
    %109 = arith.subf %108, %100 : vector<4x32xf32>
    %110 = arith.mulf %109, %107 : vector<4x32xf32>
    %111 = arith.mulf %100, %89 : vector<4x32xf32>
    %112 = arith.addf %110, %111 : vector<4x32xf32>
    %c2_55 = arith.constant 2 : index
    %c0_56 = arith.constant 0 : index
    %c0_57 = arith.constant 0 : index
    %113 = vector.load %arg3[%c2_55, %c0_56, %c0_57] : memref<3x4x32xf32, #tpu.memory_space<vmem>>, vector<1x4x32xf32>
    %114 = vector.shape_cast %113 : vector<1x4x32xf32> to vector<4x32xf32>
    %115 = tpu.concatenate %112, %114 in 1 : vector<4x32xf32>, vector<4x32xf32> -> vector<4x64xf32>
    %cst_58 = arith.constant dense<0.000000e+00> : vector<4x128xf32>
    %116 = tpu.matmul %115, %4, %cst_58 {dimension_numbers = #tpu.dot_dimension_numbers<[1], [0], [0], [1], [0, 0, 1, 1], [], []>} : vector<4x64xf32>, vector<64x128xf32>, vector<4x128xf32> -> vector<4x128xf32>
    %117 = vector.extract_strided_slice %116 {offsets = [0, 0], sizes = [4, 64], strides = [1, 1]} : vector<4x128xf32> to vector<4x64xf32>
    %118 = arith.addf %117, %16 : vector<4x64xf32>
    %119 = arith.negf %118 : vector<4x64xf32>
    %120 = math.exp %119 : vector<4x64xf32>
    %cst_59 = arith.constant 1.000000e+00 : f32
    %121 = vector.broadcast %cst_59 : f32 to vector<4x64xf32>
    %122 = arith.addf %121, %120 : vector<4x64xf32>
    %123 = arith.divf %121, %122 : vector<4x64xf32>
    %124 = vector.extract_strided_slice %123 {offsets = [0, 0], sizes = [4, 32], strides = [1, 1]} : vector<4x64xf32> to vector<4x32xf32>
    %125 = vector.extract_strided_slice %123 {offsets = [0, 32], sizes = [4, 32], strides = [1, 1]} : vector<4x64xf32> to vector<4x32xf32>
    %126 = vector.extract_strided_slice %116 {offsets = [0, 64], sizes = [4, 32], strides = [1, 1]} : vector<4x128xf32> to vector<4x32xf32>
    %127 = arith.addf %126, %28 : vector<4x32xf32>
    %128 = vector.extract_strided_slice %116 {offsets = [0, 96], sizes = [4, 32], strides = [1, 1]} : vector<4x128xf32> to vector<4x32xf32>
    %129 = arith.addf %128, %40 : vector<4x32xf32>
    %130 = arith.mulf %124, %129 : vector<4x32xf32>
    %131 = arith.addf %127, %130 : vector<4x32xf32>
    %132 = math.tanh %131 : vector<4x32xf32>
    %cst_60 = arith.constant 1.000000e+00 : f32
    %133 = vector.broadcast %cst_60 : f32 to vector<4x32xf32>
    %134 = arith.subf %133, %125 : vector<4x32xf32>
    %135 = arith.mulf %134, %132 : vector<4x32xf32>
    %136 = arith.mulf %125, %114 : vector<4x32xf32>
    %137 = arith.addf %135, %136 : vector<4x32xf32>
    %cst_61 = arith.constant dense<0.000000e+00> : vector<4x128xf32>
    %138 = tpu.matmul %137, %41, %cst_61 {dimension_numbers = #tpu.dot_dimension_numbers<[1], [0], [0], [1], [0, 0, 1, 1], [], []>} : vector<4x32xf32>, vector<32x128xf32>, vector<4x128xf32> -> vector<4x128xf32>
    %139 = arith.addf %138, %44 : vector<4x128xf32>
    %cst_62 = arith.constant -1.000000e+30 : f32
    %140 = vector.broadcast %cst_62 : f32 to vector<4x128xf32>
    %141 = arith.select %60, %139, %140 : vector<4x128xi1>, vector<4x128xf32>
    %cst_63 = arith.constant dense<0xFF800000> : vector<4xf32>
    %142 = vector.multi_reduction <maximumf>, %141, %cst_63 [1] : vector<4x128xf32> to vector<4xf32>
    %143 = vector.shape_cast %142 : vector<4xf32> to vector<4x1xf32>
    %144 = vector.broadcast %143 : vector<4x1xf32> to vector<4x128xf32>
    %145 = arith.subf %141, %144 : vector<4x128xf32>
    %146 = math.exp %145 : vector<4x128xf32>
    %cst_64 = arith.constant dense<0.000000e+00> : vector<4xf32>
    %147 = vector.multi_reduction <add>, %146, %cst_64 [1] : vector<4x128xf32> to vector<4xf32>
    %148 = vector.shape_cast %147 : vector<4xf32> to vector<4x1xf32>
    %149 = vector.broadcast %148 : vector<4x1xf32> to vector<4x128xf32>
    %150 = arith.divf %146, %149 : vector<4x128xf32>
    %151 = arith.select %55, %139, %150 : vector<4x128xi1>, vector<4x128xf32>
    %152 = vector.extract_strided_slice %139 {offsets = [0, 0], sizes = [4, 8], strides = [1, 1]} : vector<4x128xf32> to vector<4x8xf32>
    %c0_65 = arith.constant 0 : index
    %c0_66 = arith.constant 0 : index
    %c0_67 = arith.constant 0 : index
    %153 = vector.load %arg13[%c0_65, %c0_66, %c0_67] : memref<6x4x128xf32, #tpu.memory_space<vmem>>, vector<1x4x128xf32>
    %154 = vector.shape_cast %153 : vector<1x4x128xf32> to vector<4x128xf32>
    %155 = vector.shape_cast %151 : vector<4x128xf32> to vector<1x4x128xf32>
    tpu.vector_store %arg13[%c0_65, %c0_66, %c0_67], %155 {strides = array<i32>} : memref<6x4x128xf32, #tpu.memory_space<vmem>>, vector<1x4x128xf32>,
    %cst_68 = arith.constant -1.000000e+30 : f32
    %c1_i32 = arith.constant 1 : i32
    %156 = arith.index_cast %c1_i32 : i32 to index
    %c0_69 = arith.constant 0 : index
    %c0_70 = arith.constant 0 : index
    %157 = vector.load %arg1[%156, %c0_69, %c0_70] : memref<6x4x1xf32, #tpu.memory_space<vmem>>, vector<1x4x1xf32>
    %158 = vector.shape_cast %157 : vector<1x4x1xf32> to vector<4x1xf32>
    %159 = vector.broadcast %158 : vector<4x1xf32> to vector<4x32xf32>
    %160 = arith.mulf %159, %47 : vector<4x32xf32>
    %161 = arith.addf %160, %50 : vector<4x32xf32>
    %cst_71 = arith.constant 0.000000e+00 : f32
    %162 = vector.broadcast %cst_71 : f32 to vector<4x32xf32>
    %163 = arith.maximumf %161, %162 : vector<4x32xf32>
    %cst_72 = arith.constant 0.000000e+00 : f32
    %164 = vector.broadcast %cst_72 : f32 to vector<4x32xf32>
    %165 = arith.subf %164, %163 : vector<4x32xf32>
    %166 = math.exp %165 : vector<4x32xf32>
    %167 = arith.mulf %87, %166 : vector<4x32xf32>
    %168 = arith.mulf %112, %166 : vector<4x32xf32>
    %169 = arith.mulf %137, %166 : vector<4x32xf32>
    %170 = arith.index_cast %c1_i32 : i32 to index
    %c0_73 = arith.constant 0 : index
    %c0_74 = arith.constant 0 : index
    %171 = vector.load %arg2[%170, %c0_73, %c0_74] : memref<6x4x8xf32, #tpu.memory_space<vmem>>, vector<1x4x8xf32>
    %172 = vector.shape_cast %171 : vector<1x4x8xf32> to vector<4x8xf32>
    %cst_75 = arith.constant 1.000000e+00 : f32
    %173 = vector.broadcast %cst_75 : f32 to vector<4x8xf32>
    %174 = arith.subf %173, %172 : vector<4x8xf32>
    %175 = arith.mulf %152, %174 : vector<4x8xf32>
    %176 = arith.index_cast %c1_i32 : i32 to index
    %c0_76 = arith.constant 0 : index
    %c0_77 = arith.constant 0 : index
    %177 = vector.load %arg0[%176, %c0_76, %c0_77] : memref<6x4x8xf32, #tpu.memory_space<vmem>>, vector<1x4x8xf32>
    %178 = vector.shape_cast %177 : vector<1x4x8xf32> to vector<4x8xf32>
    %179 = arith.mulf %172, %178 : vector<4x8xf32>
    %180 = arith.addf %175, %179 : vector<4x8xf32>
    %181 = tpu.concatenate %180, %167 in 1 : vector<4x8xf32>, vector<4x32xf32> -> vector<4x40xf32>
    %cst_78 = arith.constant dense<0.000000e+00> : vector<4x128xf32>
    %182 = tpu.matmul %181, %0, %cst_78 {dimension_numbers = #tpu.dot_dimension_numbers<[1], [0], [0], [1], [0, 0, 1, 1], [], []>} : vector<4x40xf32>, vector<40x128xf32>, vector<4x128xf32> -> vector<4x128xf32>
    %183 = vector.extract_strided_slice %182 {offsets = [0, 0], sizes = [4, 64], strides = [1, 1]} : vector<4x128xf32> to vector<4x64xf32>
    %184 = arith.addf %183, %8 : vector<4x64xf32>
    %185 = arith.negf %184 : vector<4x64xf32>
    %186 = math.exp %185 : vector<4x64xf32>
    %cst_79 = arith.constant 1.000000e+00 : f32
    %187 = vector.broadcast %cst_79 : f32 to vector<4x64xf32>
    %188 = arith.addf %187, %186 : vector<4x64xf32>
    %189 = arith.divf %187, %188 : vector<4x64xf32>
    %190 = vector.extract_strided_slice %189 {offsets = [0, 0], sizes = [4, 32], strides = [1, 1]} : vector<4x64xf32> to vector<4x32xf32>
    %191 = vector.extract_strided_slice %189 {offsets = [0, 32], sizes = [4, 32], strides = [1, 1]} : vector<4x64xf32> to vector<4x32xf32>
    %192 = vector.extract_strided_slice %182 {offsets = [0, 64], sizes = [4, 32], strides = [1, 1]} : vector<4x128xf32> to vector<4x32xf32>
    %193 = arith.addf %192, %20 : vector<4x32xf32>
    %194 = vector.extract_strided_slice %182 {offsets = [0, 96], sizes = [4, 32], strides = [1, 1]} : vector<4x128xf32> to vector<4x32xf32>
    %195 = arith.addf %194, %32 : vector<4x32xf32>
    %196 = arith.mulf %190, %195 : vector<4x32xf32>
    %197 = arith.addf %193, %196 : vector<4x32xf32>
    %198 = math.tanh %197 : vector<4x32xf32>
    %cst_80 = arith.constant 1.000000e+00 : f32
    %199 = vector.broadcast %cst_80 : f32 to vector<4x32xf32>
    %200 = arith.subf %199, %191 : vector<4x32xf32>
    %201 = arith.mulf %200, %198 : vector<4x32xf32>
    %202 = arith.mulf %191, %167 : vector<4x32xf32>
    %203 = arith.addf %201, %202 : vector<4x32xf32>
    %204 = tpu.concatenate %203, %168 in 1 : vector<4x32xf32>, vector<4x32xf32> -> vector<4x64xf32>
    %cst_81 = arith.constant dense<0.000000e+00> : vector<4x128xf32>
    %205 = tpu.matmul %204, %2, %cst_81 {dimension_numbers = #tpu.dot_dimension_numbers<[1], [0], [0], [1], [0, 0, 1, 1], [], []>} : vector<4x64xf32>, vector<64x128xf32>, vector<4x128xf32> -> vector<4x128xf32>
    %206 = vector.extract_strided_slice %205 {offsets = [0, 0], sizes = [4, 64], strides = [1, 1]} : vector<4x128xf32> to vector<4x64xf32>
    %207 = arith.addf %206, %12 : vector<4x64xf32>
    %208 = arith.negf %207 : vector<4x64xf32>
    %209 = math.exp %208 : vector<4x64xf32>
    %cst_82 = arith.constant 1.000000e+00 : f32
    %210 = vector.broadcast %cst_82 : f32 to vector<4x64xf32>
    %211 = arith.addf %210, %209 : vector<4x64xf32>
    %212 = arith.divf %210, %211 : vector<4x64xf32>
    %213 = vector.extract_strided_slice %212 {offsets = [0, 0], sizes = [4, 32], strides = [1, 1]} : vector<4x64xf32> to vector<4x32xf32>
    %214 = vector.extract_strided_slice %212 {offsets = [0, 32], sizes = [4, 32], strides = [1, 1]} : vector<4x64xf32> to vector<4x32xf32>
    %215 = vector.extract_strided_slice %205 {offsets = [0, 64], sizes = [4, 32], strides = [1, 1]} : vector<4x128xf32> to vector<4x32xf32>
    %216 = arith.addf %215, %24 : vector<4x32xf32>
    %217 = vector.extract_strided_slice %205 {offsets = [0, 96], sizes = [4, 32], strides = [1, 1]} : vector<4x128xf32> to vector<4x32xf32>
    %218 = arith.addf %217, %36 : vector<4x32xf32>
    %219 = arith.mulf %213, %218 : vector<4x32xf32>
    %220 = arith.addf %216, %219 : vector<4x32xf32>
    %221 = math.tanh %220 : vector<4x32xf32>
    %cst_83 = arith.constant 1.000000e+00 : f32
    %222 = vector.broadcast %cst_83 : f32 to vector<4x32xf32>
    %223 = arith.subf %222, %214 : vector<4x32xf32>
    %224 = arith.mulf %223, %221 : vector<4x32xf32>
    %225 = arith.mulf %214, %168 : vector<4x32xf32>
    %226 = arith.addf %224, %225 : vector<4x32xf32>
    %227 = tpu.concatenate %226, %169 in 1 : vector<4x32xf32>, vector<4x32xf32> -> vector<4x64xf32>
    %cst_84 = arith.constant dense<0.000000e+00> : vector<4x128xf32>
    %228 = tpu.matmul %227, %4, %cst_84 {dimension_numbers = #tpu.dot_dimension_numbers<[1], [0], [0], [1], [0, 0, 1, 1], [], []>} : vector<4x64xf32>, vector<64x128xf32>, vector<4x128xf32> -> vector<4x128xf32>
    %229 = vector.extract_strided_slice %228 {offsets = [0, 0], sizes = [4, 64], strides = [1, 1]} : vector<4x128xf32> to vector<4x64xf32>
    %230 = arith.addf %229, %16 : vector<4x64xf32>
    %231 = arith.negf %230 : vector<4x64xf32>
    %232 = math.exp %231 : vector<4x64xf32>
    %cst_85 = arith.constant 1.000000e+00 : f32
    %233 = vector.broadcast %cst_85 : f32 to vector<4x64xf32>
    %234 = arith.addf %233, %232 : vector<4x64xf32>
    %235 = arith.divf %233, %234 : vector<4x64xf32>
    %236 = vector.extract_strided_slice %235 {offsets = [0, 0], sizes = [4, 32], strides = [1, 1]} : vector<4x64xf32> to vector<4x32xf32>
    %237 = vector.extract_strided_slice %235 {offsets = [0, 32], sizes = [4, 32], strides = [1, 1]} : vector<4x64xf32> to vector<4x32xf32>
    %238 = vector.extract_strided_slice %228 {offsets = [0, 64], sizes = [4, 32], strides = [1, 1]} : vector<4x128xf32> to vector<4x32xf32>
    %239 = arith.addf %238, %28 : vector<4x32xf32>
    %240 = vector.extract_strided_slice %228 {offsets = [0, 96], sizes = [4, 32], strides = [1, 1]} : vector<4x128xf32> to vector<4x32xf32>
    %241 = arith.addf %240, %40 : vector<4x32xf32>
    %242 = arith.mulf %236, %241 : vector<4x32xf32>
    %243 = arith.addf %239, %242 : vector<4x32xf32>
    %244 = math.tanh %243 : vector<4x32xf32>
    %cst_86 = arith.constant 1.000000e+00 : f32
    %245 = vector.broadcast %cst_86 : f32 to vector<4x32xf32>
    %246 = arith.subf %245, %237 : vector<4x32xf32>
    %247 = arith.mulf %246, %244 : vector<4x32xf32>
    %248 = arith.mulf %237, %169 : vector<4x32xf32>
    %249 = arith.addf %247, %248 : vector<4x32xf32>
    %cst_87 = arith.constant dense<0.000000e+00> : vector<4x128xf32>
    %250 = tpu.matmul %249, %41, %cst_87 {dimension_numbers = #tpu.dot_dimension_numbers<[1], [0], [0], [1], [0, 0, 1, 1], [], []>} : vector<4x32xf32>, vector<32x128xf32>, vector<4x128xf32> -> vector<4x128xf32>
    %251 = arith.addf %250, %44 : vector<4x128xf32>
    %252 = vector.broadcast %cst_68 : f32 to vector<4x128xf32>
    %253 = arith.select %60, %251, %252 : vector<4x128xi1>, vector<4x128xf32>
    %cst_88 = arith.constant dense<0xFF800000> : vector<4xf32>
    %254 = vector.multi_reduction <maximumf>, %253, %cst_88 [1] : vector<4x128xf32> to vector<4xf32>
    %255 = vector.shape_cast %254 : vector<4xf32> to vector<4x1xf32>
    %256 = vector.broadcast %255 : vector<4x1xf32> to vector<4x128xf32>
    %257 = arith.subf %253, %256 : vector<4x128xf32>
    %258 = math.exp %257 : vector<4x128xf32>
    %cst_89 = arith.constant dense<0.000000e+00> : vector<4xf32>
    %259 = vector.multi_reduction <add>, %258, %cst_89 [1] : vector<4x128xf32> to vector<4xf32>
    %260 = vector.shape_cast %259 : vector<4xf32> to vector<4x1xf32>
    %261 = vector.broadcast %260 : vector<4x1xf32> to vector<4x128xf32>
    %262 = arith.divf %258, %261 : vector<4x128xf32>
    %263 = arith.negf %251 : vector<4x128xf32>
    %264 = math.exp %263 : vector<4x128xf32>
    %cst_90 = arith.constant 1.000000e+00 : f32
    %265 = vector.broadcast %cst_90 : f32 to vector<4x128xf32>
    %266 = arith.addf %265, %264 : vector<4x128xf32>
    %267 = arith.divf %265, %266 : vector<4x128xf32>
    %268 = arith.select %55, %267, %262 : vector<4x128xi1>, vector<4x128xf32>
    %269 = arith.select %53, %251, %268 : vector<4x128xi1>, vector<4x128xf32>
    %270 = vector.extract_strided_slice %251 {offsets = [0, 0], sizes = [4, 8], strides = [1, 1]} : vector<4x128xf32> to vector<4x8xf32>
    %271 = arith.index_cast %c1_i32 : i32 to index
    %c0_91 = arith.constant 0 : index
    %c0_92 = arith.constant 0 : index
    %272 = vector.load %arg13[%271, %c0_91, %c0_92] : memref<6x4x128xf32, #tpu.memory_space<vmem>>, vector<1x4x128xf32>
    %273 = vector.shape_cast %272 : vector<1x4x128xf32> to vector<4x128xf32>
    %274 = vector.shape_cast %269 : vector<4x128xf32> to vector<1x4x128xf32>
    tpu.vector_store %arg13[%271, %c0_91, %c0_92], %274 {strides = array<i32>} : memref<6x4x128xf32, #tpu.memory_space<vmem>>, vector<1x4x128xf32>,
    %c2_i32 = arith.constant 2 : i32
    %275 = arith.index_cast %c2_i32 : i32 to index
    %c0_93 = arith.constant 0 : index
    %c0_94 = arith.constant 0 : index
    %276 = vector.load %arg1[%275, %c0_93, %c0_94] : memref<6x4x1xf32, #tpu.memory_space<vmem>>, vector<1x4x1xf32>
    %277 = vector.shape_cast %276 : vector<1x4x1xf32> to vector<4x1xf32>
    %278 = vector.broadcast %277 : vector<4x1xf32> to vector<4x32xf32>
    %279 = arith.mulf %278, %47 : vector<4x32xf32>
    %280 = arith.addf %279, %50 : vector<4x32xf32>
    %cst_95 = arith.constant 0.000000e+00 : f32
    %281 = vector.broadcast %cst_95 : f32 to vector<4x32xf32>
    %282 = arith.maximumf %280, %281 : vector<4x32xf32>
    %cst_96 = arith.constant 0.000000e+00 : f32
    %283 = vector.broadcast %cst_96 : f32 to vector<4x32xf32>
    %284 = arith.subf %283, %282 : vector<4x32xf32>
    %285 = math.exp %284 : vector<4x32xf32>
    %286 = arith.mulf %203, %285 : vector<4x32xf32>
    %287 = arith.mulf %226, %285 : vector<4x32xf32>
    %288 = arith.mulf %249, %285 : vector<4x32xf32>
    %289 = arith.index_cast %c2_i32 : i32 to index
    %c0_97 = arith.constant 0 : index
    %c0_98 = arith.constant 0 : index
    %290 = vector.load %arg2[%289, %c0_97, %c0_98] : memref<6x4x8xf32, #tpu.memory_space<vmem>>, vector<1x4x8xf32>
    %291 = vector.shape_cast %290 : vector<1x4x8xf32> to vector<4x8xf32>
    %cst_99 = arith.constant 1.000000e+00 : f32
    %292 = vector.broadcast %cst_99 : f32 to vector<4x8xf32>
    %293 = arith.subf %292, %291 : vector<4x8xf32>
    %294 = arith.mulf %270, %293 : vector<4x8xf32>
    %295 = arith.index_cast %c2_i32 : i32 to index
    %c0_100 = arith.constant 0 : index
    %c0_101 = arith.constant 0 : index
    %296 = vector.load %arg0[%295, %c0_100, %c0_101] : memref<6x4x8xf32, #tpu.memory_space<vmem>>, vector<1x4x8xf32>
    %297 = vector.shape_cast %296 : vector<1x4x8xf32> to vector<4x8xf32>
    %298 = arith.mulf %291, %297 : vector<4x8xf32>
    %299 = arith.addf %294, %298 : vector<4x8xf32>
    %300 = tpu.concatenate %299, %286 in 1 : vector<4x8xf32>, vector<4x32xf32> -> vector<4x40xf32>
    %cst_102 = arith.constant dense<0.000000e+00> : vector<4x128xf32>
    %301 = tpu.matmul %300, %0, %cst_102 {dimension_numbers = #tpu.dot_dimension_numbers<[1], [0], [0], [1], [0, 0, 1, 1], [], []>} : vector<4x40xf32>, vector<40x128xf32>, vector<4x128xf32> -> vector<4x128xf32>
    %302 = vector.extract_strided_slice %301 {offsets = [0, 0], sizes = [4, 64], strides = [1, 1]} : vector<4x128xf32> to vector<4x64xf32>
    %303 = arith.addf %302, %8 : vector<4x64xf32>
    %304 = arith.negf %303 : vector<4x64xf32>
    %305 = math.exp %304 : vector<4x64xf32>
    %cst_103 = arith.constant 1.000000e+00 : f32
    %306 = vector.broadcast %cst_103 : f32 to vector<4x64xf32>
    %307 = arith.addf %306, %305 : vector<4x64xf32>
    %308 = arith.divf %306, %307 : vector<4x64xf32>
    %309 = vector.extract_strided_slice %308 {offsets = [0, 0], sizes = [4, 32], strides = [1, 1]} : vector<4x64xf32> to vector<4x32xf32>
    %310 = vector.extract_strided_slice %308 {offsets = [0, 32], sizes = [4, 32], strides = [1, 1]} : vector<4x64xf32> to vector<4x32xf32>
    %311 = vector.extract_strided_slice %301 {offsets = [0, 64], sizes = [4, 32], strides = [1, 1]} : vector<4x128xf32> to vector<4x32xf32>
    %312 = arith.addf %311, %20 : vector<4x32xf32>
    %313 = vector.extract_strided_slice %301 {offsets = [0, 96], sizes = [4, 32], strides = [1, 1]} : vector<4x128xf32> to vector<4x32xf32>
    %314 = arith.addf %313, %32 : vector<4x32xf32>
    %315 = arith.mulf %309, %314 : vector<4x32xf32>
    %316 = arith.addf %312, %315 : vector<4x32xf32>
    %317 = math.tanh %316 : vector<4x32xf32>
    %cst_104 = arith.constant 1.000000e+00 : f32
    %318 = vector.broadcast %cst_104 : f32 to vector<4x32xf32>
    %319 = arith.subf %318, %310 : vector<4x32xf32>
    %320 = arith.mulf %319, %317 : vector<4x32xf32>
    %321 = arith.mulf %310, %286 : vector<4x32xf32>
    %322 = arith.addf %320, %321 : vector<4x32xf32>
    %323 = tpu.concatenate %322, %287 in 1 : vector<4x32xf32>, vector<4x32xf32> -> vector<4x64xf32>
    %cst_105 = arith.constant dense<0.000000e+00> : vector<4x128xf32>
    %324 = tpu.matmul %323, %2, %cst_105 {dimension_numbers = #tpu.dot_dimension_numbers<[1], [0], [0], [1], [0, 0, 1, 1], [], []>} : vector<4x64xf32>, vector<64x128xf32>, vector<4x128xf32> -> vector<4x128xf32>
    %325 = vector.extract_strided_slice %324 {offsets = [0, 0], sizes = [4, 64], strides = [1, 1]} : vector<4x128xf32> to vector<4x64xf32>
    %326 = arith.addf %325, %12 : vector<4x64xf32>
    %327 = arith.negf %326 : vector<4x64xf32>
    %328 = math.exp %327 : vector<4x64xf32>
    %cst_106 = arith.constant 1.000000e+00 : f32
    %329 = vector.broadcast %cst_106 : f32 to vector<4x64xf32>
    %330 = arith.addf %329, %328 : vector<4x64xf32>
    %331 = arith.divf %329, %330 : vector<4x64xf32>
    %332 = vector.extract_strided_slice %331 {offsets = [0, 0], sizes = [4, 32], strides = [1, 1]} : vector<4x64xf32> to vector<4x32xf32>
    %333 = vector.extract_strided_slice %331 {offsets = [0, 32], sizes = [4, 32], strides = [1, 1]} : vector<4x64xf32> to vector<4x32xf32>
    %334 = vector.extract_strided_slice %324 {offsets = [0, 64], sizes = [4, 32], strides = [1, 1]} : vector<4x128xf32> to vector<4x32xf32>
    %335 = arith.addf %334, %24 : vector<4x32xf32>
    %336 = vector.extract_strided_slice %324 {offsets = [0, 96], sizes = [4, 32], strides = [1, 1]} : vector<4x128xf32> to vector<4x32xf32>
    %337 = arith.addf %336, %36 : vector<4x32xf32>
    %338 = arith.mulf %332, %337 : vector<4x32xf32>
    %339 = arith.addf %335, %338 : vector<4x32xf32>
    %340 = math.tanh %339 : vector<4x32xf32>
    %cst_107 = arith.constant 1.000000e+00 : f32
    %341 = vector.broadcast %cst_107 : f32 to vector<4x32xf32>
    %342 = arith.subf %341, %333 : vector<4x32xf32>
    %343 = arith.mulf %342, %340 : vector<4x32xf32>
    %344 = arith.mulf %333, %287 : vector<4x32xf32>
    %345 = arith.addf %343, %344 : vector<4x32xf32>
    %346 = tpu.concatenate %345, %288 in 1 : vector<4x32xf32>, vector<4x32xf32> -> vector<4x64xf32>
    %cst_108 = arith.constant dense<0.000000e+00> : vector<4x128xf32>
    %347 = tpu.matmul %346, %4, %cst_108 {dimension_numbers = #tpu.dot_dimension_numbers<[1], [0], [0], [1], [0, 0, 1, 1], [], []>} : vector<4x64xf32>, vector<64x128xf32>, vector<4x128xf32> -> vector<4x128xf32>
    %348 = vector.extract_strided_slice %347 {offsets = [0, 0], sizes = [4, 64], strides = [1, 1]} : vector<4x128xf32> to vector<4x64xf32>
    %349 = arith.addf %348, %16 : vector<4x64xf32>
    %350 = arith.negf %349 : vector<4x64xf32>
    %351 = math.exp %350 : vector<4x64xf32>
    %cst_109 = arith.constant 1.000000e+00 : f32
    %352 = vector.broadcast %cst_109 : f32 to vector<4x64xf32>
    %353 = arith.addf %352, %351 : vector<4x64xf32>
    %354 = arith.divf %352, %353 : vector<4x64xf32>
    %355 = vector.extract_strided_slice %354 {offsets = [0, 0], sizes = [4, 32], strides = [1, 1]} : vector<4x64xf32> to vector<4x32xf32>
    %356 = vector.extract_strided_slice %354 {offsets = [0, 32], sizes = [4, 32], strides = [1, 1]} : vector<4x64xf32> to vector<4x32xf32>
    %357 = vector.extract_strided_slice %347 {offsets = [0, 64], sizes = [4, 32], strides = [1, 1]} : vector<4x128xf32> to vector<4x32xf32>
    %358 = arith.addf %357, %28 : vector<4x32xf32>
    %359 = vector.extract_strided_slice %347 {offsets = [0, 96], sizes = [4, 32], strides = [1, 1]} : vector<4x128xf32> to vector<4x32xf32>
    %360 = arith.addf %359, %40 : vector<4x32xf32>
    %361 = arith.mulf %355, %360 : vector<4x32xf32>
    %362 = arith.addf %358, %361 : vector<4x32xf32>
    %363 = math.tanh %362 : vector<4x32xf32>
    %cst_110 = arith.constant 1.000000e+00 : f32
    %364 = vector.broadcast %cst_110 : f32 to vector<4x32xf32>
    %365 = arith.subf %364, %356 : vector<4x32xf32>
    %366 = arith.mulf %365, %363 : vector<4x32xf32>
    %367 = arith.mulf %356, %288 : vector<4x32xf32>
    %368 = arith.addf %366, %367 : vector<4x32xf32>
    %cst_111 = arith.constant dense<0.000000e+00> : vector<4x128xf32>
    %369 = tpu.matmul %368, %41, %cst_111 {dimension_numbers = #tpu.dot_dimension_numbers<[1], [0], [0], [1], [0, 0, 1, 1], [], []>} : vector<4x32xf32>, vector<32x128xf32>, vector<4x128xf32> -> vector<4x128xf32>
    %370 = arith.addf %369, %44 : vector<4x128xf32>
    %371 = vector.broadcast %cst_68 : f32 to vector<4x128xf32>
    %372 = arith.select %60, %370, %371 : vector<4x128xi1>, vector<4x128xf32>
    %cst_112 = arith.constant dense<0xFF800000> : vector<4xf32>
    %373 = vector.multi_reduction <maximumf>, %372, %cst_112 [1] : vector<4x128xf32> to vector<4xf32>
    %374 = vector.shape_cast %373 : vector<4xf32> to vector<4x1xf32>
    %375 = vector.broadcast %374 : vector<4x1xf32> to vector<4x128xf32>
    %376 = arith.subf %372, %375 : vector<4x128xf32>
    %377 = math.exp %376 : vector<4x128xf32>
    %cst_113 = arith.constant dense<0.000000e+00> : vector<4xf32>
    %378 = vector.multi_reduction <add>, %377, %cst_113 [1] : vector<4x128xf32> to vector<4xf32>
    %379 = vector.shape_cast %378 : vector<4xf32> to vector<4x1xf32>
    %380 = vector.broadcast %379 : vector<4x1xf32> to vector<4x128xf32>
    %381 = arith.divf %377, %380 : vector<4x128xf32>
    %382 = arith.negf %370 : vector<4x128xf32>
    %383 = math.exp %382 : vector<4x128xf32>
    %cst_114 = arith.constant 1.000000e+00 : f32
    %384 = vector.broadcast %cst_114 : f32 to vector<4x128xf32>
    %385 = arith.addf %384, %383 : vector<4x128xf32>
    %386 = arith.divf %384, %385 : vector<4x128xf32>
    %387 = arith.select %55, %386, %381 : vector<4x128xi1>, vector<4x128xf32>
    %388 = arith.select %53, %370, %387 : vector<4x128xi1>, vector<4x128xf32>
    %389 = vector.extract_strided_slice %370 {offsets = [0, 0], sizes = [4, 8], strides = [1, 1]} : vector<4x128xf32> to vector<4x8xf32>
    %390 = arith.index_cast %c2_i32 : i32 to index
    %c0_115 = arith.constant 0 : index
    %c0_116 = arith.constant 0 : index
    %391 = vector.load %arg13[%390, %c0_115, %c0_116] : memref<6x4x128xf32, #tpu.memory_space<vmem>>, vector<1x4x128xf32>
    %392 = vector.shape_cast %391 : vector<1x4x128xf32> to vector<4x128xf32>
    %393 = vector.shape_cast %388 : vector<4x128xf32> to vector<1x4x128xf32>
    tpu.vector_store %arg13[%390, %c0_115, %c0_116], %393 {strides = array<i32>} : memref<6x4x128xf32, #tpu.memory_space<vmem>>, vector<1x4x128xf32>,
    %c3_i32 = arith.constant 3 : i32
    %394 = arith.index_cast %c3_i32 : i32 to index
    %c0_117 = arith.constant 0 : index
    %c0_118 = arith.constant 0 : index
    %395 = vector.load %arg1[%394, %c0_117, %c0_118] : memref<6x4x1xf32, #tpu.memory_space<vmem>>, vector<1x4x1xf32>
    %396 = vector.shape_cast %395 : vector<1x4x1xf32> to vector<4x1xf32>
    %397 = vector.broadcast %396 : vector<4x1xf32> to vector<4x32xf32>
    %398 = arith.mulf %397, %47 : vector<4x32xf32>
    %399 = arith.addf %398, %50 : vector<4x32xf32>
    %cst_119 = arith.constant 0.000000e+00 : f32
    %400 = vector.broadcast %cst_119 : f32 to vector<4x32xf32>
    %401 = arith.maximumf %399, %400 : vector<4x32xf32>
    %cst_120 = arith.constant 0.000000e+00 : f32
    %402 = vector.broadcast %cst_120 : f32 to vector<4x32xf32>
    %403 = arith.subf %402, %401 : vector<4x32xf32>
    %404 = math.exp %403 : vector<4x32xf32>
    %405 = arith.mulf %322, %404 : vector<4x32xf32>
    %406 = arith.mulf %345, %404 : vector<4x32xf32>
    %407 = arith.mulf %368, %404 : vector<4x32xf32>
    %408 = arith.index_cast %c3_i32 : i32 to index
    %c0_121 = arith.constant 0 : index
    %c0_122 = arith.constant 0 : index
    %409 = vector.load %arg2[%408, %c0_121, %c0_122] : memref<6x4x8xf32, #tpu.memory_space<vmem>>, vector<1x4x8xf32>
    %410 = vector.shape_cast %409 : vector<1x4x8xf32> to vector<4x8xf32>
    %cst_123 = arith.constant 1.000000e+00 : f32
    %411 = vector.broadcast %cst_123 : f32 to vector<4x8xf32>
    %412 = arith.subf %411, %410 : vector<4x8xf32>
    %413 = arith.mulf %389, %412 : vector<4x8xf32>
    %414 = arith.index_cast %c3_i32 : i32 to index
    %c0_124 = arith.constant 0 : index
    %c0_125 = arith.constant 0 : index
    %415 = vector.load %arg0[%414, %c0_124, %c0_125] : memref<6x4x8xf32, #tpu.memory_space<vmem>>, vector<1x4x8xf32>
    %416 = vector.shape_cast %415 : vector<1x4x8xf32> to vector<4x8xf32>
    %417 = arith.mulf %410, %416 : vector<4x8xf32>
    %418 = arith.addf %413, %417 : vector<4x8xf32>
    %419 = tpu.concatenate %418, %405 in 1 : vector<4x8xf32>, vector<4x32xf32> -> vector<4x40xf32>
    %cst_126 = arith.constant dense<0.000000e+00> : vector<4x128xf32>
    %420 = tpu.matmul %419, %0, %cst_126 {dimension_numbers = #tpu.dot_dimension_numbers<[1], [0], [0], [1], [0, 0, 1, 1], [], []>} : vector<4x40xf32>, vector<40x128xf32>, vector<4x128xf32> -> vector<4x128xf32>
    %421 = vector.extract_strided_slice %420 {offsets = [0, 0], sizes = [4, 64], strides = [1, 1]} : vector<4x128xf32> to vector<4x64xf32>
    %422 = arith.addf %421, %8 : vector<4x64xf32>
    %423 = arith.negf %422 : vector<4x64xf32>
    %424 = math.exp %423 : vector<4x64xf32>
    %cst_127 = arith.constant 1.000000e+00 : f32
    %425 = vector.broadcast %cst_127 : f32 to vector<4x64xf32>
    %426 = arith.addf %425, %424 : vector<4x64xf32>
    %427 = arith.divf %425, %426 : vector<4x64xf32>
    %428 = vector.extract_strided_slice %427 {offsets = [0, 0], sizes = [4, 32], strides = [1, 1]} : vector<4x64xf32> to vector<4x32xf32>
    %429 = vector.extract_strided_slice %427 {offsets = [0, 32], sizes = [4, 32], strides = [1, 1]} : vector<4x64xf32> to vector<4x32xf32>
    %430 = vector.extract_strided_slice %420 {offsets = [0, 64], sizes = [4, 32], strides = [1, 1]} : vector<4x128xf32> to vector<4x32xf32>
    %431 = arith.addf %430, %20 : vector<4x32xf32>
    %432 = vector.extract_strided_slice %420 {offsets = [0, 96], sizes = [4, 32], strides = [1, 1]} : vector<4x128xf32> to vector<4x32xf32>
    %433 = arith.addf %432, %32 : vector<4x32xf32>
    %434 = arith.mulf %428, %433 : vector<4x32xf32>
    %435 = arith.addf %431, %434 : vector<4x32xf32>
    %436 = math.tanh %435 : vector<4x32xf32>
    %cst_128 = arith.constant 1.000000e+00 : f32
    %437 = vector.broadcast %cst_128 : f32 to vector<4x32xf32>
    %438 = arith.subf %437, %429 : vector<4x32xf32>
    %439 = arith.mulf %438, %436 : vector<4x32xf32>
    %440 = arith.mulf %429, %405 : vector<4x32xf32>
    %441 = arith.addf %439, %440 : vector<4x32xf32>
    %442 = tpu.concatenate %441, %406 in 1 : vector<4x32xf32>, vector<4x32xf32> -> vector<4x64xf32>
    %cst_129 = arith.constant dense<0.000000e+00> : vector<4x128xf32>
    %443 = tpu.matmul %442, %2, %cst_129 {dimension_numbers = #tpu.dot_dimension_numbers<[1], [0], [0], [1], [0, 0, 1, 1], [], []>} : vector<4x64xf32>, vector<64x128xf32>, vector<4x128xf32> -> vector<4x128xf32>
    %444 = vector.extract_strided_slice %443 {offsets = [0, 0], sizes = [4, 64], strides = [1, 1]} : vector<4x128xf32> to vector<4x64xf32>
    %445 = arith.addf %444, %12 : vector<4x64xf32>
    %446 = arith.negf %445 : vector<4x64xf32>
    %447 = math.exp %446 : vector<4x64xf32>
    %cst_130 = arith.constant 1.000000e+00 : f32
    %448 = vector.broadcast %cst_130 : f32 to vector<4x64xf32>
    %449 = arith.addf %448, %447 : vector<4x64xf32>
    %450 = arith.divf %448, %449 : vector<4x64xf32>
    %451 = vector.extract_strided_slice %450 {offsets = [0, 0], sizes = [4, 32], strides = [1, 1]} : vector<4x64xf32> to vector<4x32xf32>
    %452 = vector.extract_strided_slice %450 {offsets = [0, 32], sizes = [4, 32], strides = [1, 1]} : vector<4x64xf32> to vector<4x32xf32>
    %453 = vector.extract_strided_slice %443 {offsets = [0, 64], sizes = [4, 32], strides = [1, 1]} : vector<4x128xf32> to vector<4x32xf32>
    %454 = arith.addf %453, %24 : vector<4x32xf32>
    %455 = vector.extract_strided_slice %443 {offsets = [0, 96], sizes = [4, 32], strides = [1, 1]} : vector<4x128xf32> to vector<4x32xf32>
    %456 = arith.addf %455, %36 : vector<4x32xf32>
    %457 = arith.mulf %451, %456 : vector<4x32xf32>
    %458 = arith.addf %454, %457 : vector<4x32xf32>
    %459 = math.tanh %458 : vector<4x32xf32>
    %cst_131 = arith.constant 1.000000e+00 : f32
    %460 = vector.broadcast %cst_131 : f32 to vector<4x32xf32>
    %461 = arith.subf %460, %452 : vector<4x32xf32>
    %462 = arith.mulf %461, %459 : vector<4x32xf32>
    %463 = arith.mulf %452, %406 : vector<4x32xf32>
    %464 = arith.addf %462, %463 : vector<4x32xf32>
    %465 = tpu.concatenate %464, %407 in 1 : vector<4x32xf32>, vector<4x32xf32> -> vector<4x64xf32>
    %cst_132 = arith.constant dense<0.000000e+00> : vector<4x128xf32>
    %466 = tpu.matmul %465, %4, %cst_132 {dimension_numbers = #tpu.dot_dimension_numbers<[1], [0], [0], [1], [0, 0, 1, 1], [], []>} : vector<4x64xf32>, vector<64x128xf32>, vector<4x128xf32> -> vector<4x128xf32>
    %467 = vector.extract_strided_slice %466 {offsets = [0, 0], sizes = [4, 64], strides = [1, 1]} : vector<4x128xf32> to vector<4x64xf32>
    %468 = arith.addf %467, %16 : vector<4x64xf32>
    %469 = arith.negf %468 : vector<4x64xf32>
    %470 = math.exp %469 : vector<4x64xf32>
    %cst_133 = arith.constant 1.000000e+00 : f32
    %471 = vector.broadcast %cst_133 : f32 to vector<4x64xf32>
    %472 = arith.addf %471, %470 : vector<4x64xf32>
    %473 = arith.divf %471, %472 : vector<4x64xf32>
    %474 = vector.extract_strided_slice %473 {offsets = [0, 0], sizes = [4, 32], strides = [1, 1]} : vector<4x64xf32> to vector<4x32xf32>
    %475 = vector.extract_strided_slice %473 {offsets = [0, 32], sizes = [4, 32], strides = [1, 1]} : vector<4x64xf32> to vector<4x32xf32>
    %476 = vector.extract_strided_slice %466 {offsets = [0, 64], sizes = [4, 32], strides = [1, 1]} : vector<4x128xf32> to vector<4x32xf32>
    %477 = arith.addf %476, %28 : vector<4x32xf32>
    %478 = vector.extract_strided_slice %466 {offsets = [0, 96], sizes = [4, 32], strides = [1, 1]} : vector<4x128xf32> to vector<4x32xf32>
    %479 = arith.addf %478, %40 : vector<4x32xf32>
    %480 = arith.mulf %474, %479 : vector<4x32xf32>
    %481 = arith.addf %477, %480 : vector<4x32xf32>
    %482 = math.tanh %481 : vector<4x32xf32>
    %cst_134 = arith.constant 1.000000e+00 : f32
    %483 = vector.broadcast %cst_134 : f32 to vector<4x32xf32>
    %484 = arith.subf %483, %475 : vector<4x32xf32>
    %485 = arith.mulf %484, %482 : vector<4x32xf32>
    %486 = arith.mulf %475, %407 : vector<4x32xf32>
    %487 = arith.addf %485, %486 : vector<4x32xf32>
    %cst_135 = arith.constant dense<0.000000e+00> : vector<4x128xf32>
    %488 = tpu.matmul %487, %41, %cst_135 {dimension_numbers = #tpu.dot_dimension_numbers<[1], [0], [0], [1], [0, 0, 1, 1], [], []>} : vector<4x32xf32>, vector<32x128xf32>, vector<4x128xf32> -> vector<4x128xf32>
    %489 = arith.addf %488, %44 : vector<4x128xf32>
    %490 = vector.broadcast %cst_68 : f32 to vector<4x128xf32>
    %491 = arith.select %60, %489, %490 : vector<4x128xi1>, vector<4x128xf32>
    %cst_136 = arith.constant dense<0xFF800000> : vector<4xf32>
    %492 = vector.multi_reduction <maximumf>, %491, %cst_136 [1] : vector<4x128xf32> to vector<4xf32>
    %493 = vector.shape_cast %492 : vector<4xf32> to vector<4x1xf32>
    %494 = vector.broadcast %493 : vector<4x1xf32> to vector<4x128xf32>
    %495 = arith.subf %491, %494 : vector<4x128xf32>
    %496 = math.exp %495 : vector<4x128xf32>
    %cst_137 = arith.constant dense<0.000000e+00> : vector<4xf32>
    %497 = vector.multi_reduction <add>, %496, %cst_137 [1] : vector<4x128xf32> to vector<4xf32>
    %498 = vector.shape_cast %497 : vector<4xf32> to vector<4x1xf32>
    %499 = vector.broadcast %498 : vector<4x1xf32> to vector<4x128xf32>
    %500 = arith.divf %496, %499 : vector<4x128xf32>
    %501 = arith.negf %489 : vector<4x128xf32>
    %502 = math.exp %501 : vector<4x128xf32>
    %cst_138 = arith.constant 1.000000e+00 : f32
    %503 = vector.broadcast %cst_138 : f32 to vector<4x128xf32>
    %504 = arith.addf %503, %502 : vector<4x128xf32>
    %505 = arith.divf %503, %504 : vector<4x128xf32>
    %506 = arith.select %55, %505, %500 : vector<4x128xi1>, vector<4x128xf32>
    %507 = arith.select %53, %489, %506 : vector<4x128xi1>, vector<4x128xf32>
    %508 = vector.extract_strided_slice %489 {offsets = [0, 0], sizes = [4, 8], strides = [1, 1]} : vector<4x128xf32> to vector<4x8xf32>
    %509 = arith.index_cast %c3_i32 : i32 to index
    %c0_139 = arith.constant 0 : index
    %c0_140 = arith.constant 0 : index
    %510 = vector.load %arg13[%509, %c0_139, %c0_140] : memref<6x4x128xf32, #tpu.memory_space<vmem>>, vector<1x4x128xf32>
    %511 = vector.shape_cast %510 : vector<1x4x128xf32> to vector<4x128xf32>
    %512 = vector.shape_cast %507 : vector<4x128xf32> to vector<1x4x128xf32>
    tpu.vector_store %arg13[%509, %c0_139, %c0_140], %512 {strides = array<i32>} : memref<6x4x128xf32, #tpu.memory_space<vmem>>, vector<1x4x128xf32>,
    %c4_i32 = arith.constant 4 : i32
    %513 = arith.index_cast %c4_i32 : i32 to index
    %c0_141 = arith.constant 0 : index
    %c0_142 = arith.constant 0 : index
    %514 = vector.load %arg1[%513, %c0_141, %c0_142] : memref<6x4x1xf32, #tpu.memory_space<vmem>>, vector<1x4x1xf32>
    %515 = vector.shape_cast %514 : vector<1x4x1xf32> to vector<4x1xf32>
    %516 = vector.broadcast %515 : vector<4x1xf32> to vector<4x32xf32>
    %517 = arith.mulf %516, %47 : vector<4x32xf32>
    %518 = arith.addf %517, %50 : vector<4x32xf32>
    %cst_143 = arith.constant 0.000000e+00 : f32
    %519 = vector.broadcast %cst_143 : f32 to vector<4x32xf32>
    %520 = arith.maximumf %518, %519 : vector<4x32xf32>
    %cst_144 = arith.constant 0.000000e+00 : f32
    %521 = vector.broadcast %cst_144 : f32 to vector<4x32xf32>
    %522 = arith.subf %521, %520 : vector<4x32xf32>
    %523 = math.exp %522 : vector<4x32xf32>
    %524 = arith.mulf %441, %523 : vector<4x32xf32>
    %525 = arith.mulf %464, %523 : vector<4x32xf32>
    %526 = arith.mulf %487, %523 : vector<4x32xf32>
    %527 = arith.index_cast %c4_i32 : i32 to index
    %c0_145 = arith.constant 0 : index
    %c0_146 = arith.constant 0 : index
    %528 = vector.load %arg2[%527, %c0_145, %c0_146] : memref<6x4x8xf32, #tpu.memory_space<vmem>>, vector<1x4x8xf32>
    %529 = vector.shape_cast %528 : vector<1x4x8xf32> to vector<4x8xf32>
    %cst_147 = arith.constant 1.000000e+00 : f32
    %530 = vector.broadcast %cst_147 : f32 to vector<4x8xf32>
    %531 = arith.subf %530, %529 : vector<4x8xf32>
    %532 = arith.mulf %508, %531 : vector<4x8xf32>
    %533 = arith.index_cast %c4_i32 : i32 to index
    %c0_148 = arith.constant 0 : index
    %c0_149 = arith.constant 0 : index
    %534 = vector.load %arg0[%533, %c0_148, %c0_149] : memref<6x4x8xf32, #tpu.memory_space<vmem>>, vector<1x4x8xf32>
    %535 = vector.shape_cast %534 : vector<1x4x8xf32> to vector<4x8xf32>
    %536 = arith.mulf %529, %535 : vector<4x8xf32>
    %537 = arith.addf %532, %536 : vector<4x8xf32>
    %538 = tpu.concatenate %537, %524 in 1 : vector<4x8xf32>, vector<4x32xf32> -> vector<4x40xf32>
    %cst_150 = arith.constant dense<0.000000e+00> : vector<4x128xf32>
    %539 = tpu.matmul %538, %0, %cst_150 {dimension_numbers = #tpu.dot_dimension_numbers<[1], [0], [0], [1], [0, 0, 1, 1], [], []>} : vector<4x40xf32>, vector<40x128xf32>, vector<4x128xf32> -> vector<4x128xf32>
    %540 = vector.extract_strided_slice %539 {offsets = [0, 0], sizes = [4, 64], strides = [1, 1]} : vector<4x128xf32> to vector<4x64xf32>
    %541 = arith.addf %540, %8 : vector<4x64xf32>
    %542 = arith.negf %541 : vector<4x64xf32>
    %543 = math.exp %542 : vector<4x64xf32>
    %cst_151 = arith.constant 1.000000e+00 : f32
    %544 = vector.broadcast %cst_151 : f32 to vector<4x64xf32>
    %545 = arith.addf %544, %543 : vector<4x64xf32>
    %546 = arith.divf %544, %545 : vector<4x64xf32>
    %547 = vector.extract_strided_slice %546 {offsets = [0, 0], sizes = [4, 32], strides = [1, 1]} : vector<4x64xf32> to vector<4x32xf32>
    %548 = vector.extract_strided_slice %546 {offsets = [0, 32], sizes = [4, 32], strides = [1, 1]} : vector<4x64xf32> to vector<4x32xf32>
    %549 = vector.extract_strided_slice %539 {offsets = [0, 64], sizes = [4, 32], strides = [1, 1]} : vector<4x128xf32> to vector<4x32xf32>
    %550 = arith.addf %549, %20 : vector<4x32xf32>
    %551 = vector.extract_strided_slice %539 {offsets = [0, 96], sizes = [4, 32], strides = [1, 1]} : vector<4x128xf32> to vector<4x32xf32>
    %552 = arith.addf %551, %32 : vector<4x32xf32>
    %553 = arith.mulf %547, %552 : vector<4x32xf32>
    %554 = arith.addf %550, %553 : vector<4x32xf32>
    %555 = math.tanh %554 : vector<4x32xf32>
    %cst_152 = arith.constant 1.000000e+00 : f32
    %556 = vector.broadcast %cst_152 : f32 to vector<4x32xf32>
    %557 = arith.subf %556, %548 : vector<4x32xf32>
    %558 = arith.mulf %557, %555 : vector<4x32xf32>
    %559 = arith.mulf %548, %524 : vector<4x32xf32>
    %560 = arith.addf %558, %559 : vector<4x32xf32>
    %561 = tpu.concatenate %560, %525 in 1 : vector<4x32xf32>, vector<4x32xf32> -> vector<4x64xf32>
    %cst_153 = arith.constant dense<0.000000e+00> : vector<4x128xf32>
    %562 = tpu.matmul %561, %2, %cst_153 {dimension_numbers = #tpu.dot_dimension_numbers<[1], [0], [0], [1], [0, 0, 1, 1], [], []>} : vector<4x64xf32>, vector<64x128xf32>, vector<4x128xf32> -> vector<4x128xf32>
    %563 = vector.extract_strided_slice %562 {offsets = [0, 0], sizes = [4, 64], strides = [1, 1]} : vector<4x128xf32> to vector<4x64xf32>
    %564 = arith.addf %563, %12 : vector<4x64xf32>
    %565 = arith.negf %564 : vector<4x64xf32>
    %566 = math.exp %565 : vector<4x64xf32>
    %cst_154 = arith.constant 1.000000e+00 : f32
    %567 = vector.broadcast %cst_154 : f32 to vector<4x64xf32>
    %568 = arith.addf %567, %566 : vector<4x64xf32>
    %569 = arith.divf %567, %568 : vector<4x64xf32>
    %570 = vector.extract_strided_slice %569 {offsets = [0, 0], sizes = [4, 32], strides = [1, 1]} : vector<4x64xf32> to vector<4x32xf32>
    %571 = vector.extract_strided_slice %569 {offsets = [0, 32], sizes = [4, 32], strides = [1, 1]} : vector<4x64xf32> to vector<4x32xf32>
    %572 = vector.extract_strided_slice %562 {offsets = [0, 64], sizes = [4, 32], strides = [1, 1]} : vector<4x128xf32> to vector<4x32xf32>
    %573 = arith.addf %572, %24 : vector<4x32xf32>
    %574 = vector.extract_strided_slice %562 {offsets = [0, 96], sizes = [4, 32], strides = [1, 1]} : vector<4x128xf32> to vector<4x32xf32>
    %575 = arith.addf %574, %36 : vector<4x32xf32>
    %576 = arith.mulf %570, %575 : vector<4x32xf32>
    %577 = arith.addf %573, %576 : vector<4x32xf32>
    %578 = math.tanh %577 : vector<4x32xf32>
    %cst_155 = arith.constant 1.000000e+00 : f32
    %579 = vector.broadcast %cst_155 : f32 to vector<4x32xf32>
    %580 = arith.subf %579, %571 : vector<4x32xf32>
    %581 = arith.mulf %580, %578 : vector<4x32xf32>
    %582 = arith.mulf %571, %525 : vector<4x32xf32>
    %583 = arith.addf %581, %582 : vector<4x32xf32>
    %584 = tpu.concatenate %583, %526 in 1 : vector<4x32xf32>, vector<4x32xf32> -> vector<4x64xf32>
    %cst_156 = arith.constant dense<0.000000e+00> : vector<4x128xf32>
    %585 = tpu.matmul %584, %4, %cst_156 {dimension_numbers = #tpu.dot_dimension_numbers<[1], [0], [0], [1], [0, 0, 1, 1], [], []>} : vector<4x64xf32>, vector<64x128xf32>, vector<4x128xf32> -> vector<4x128xf32>
    %586 = vector.extract_strided_slice %585 {offsets = [0, 0], sizes = [4, 64], strides = [1, 1]} : vector<4x128xf32> to vector<4x64xf32>
    %587 = arith.addf %586, %16 : vector<4x64xf32>
    %588 = arith.negf %587 : vector<4x64xf32>
    %589 = math.exp %588 : vector<4x64xf32>
    %cst_157 = arith.constant 1.000000e+00 : f32
    %590 = vector.broadcast %cst_157 : f32 to vector<4x64xf32>
    %591 = arith.addf %590, %589 : vector<4x64xf32>
    %592 = arith.divf %590, %591 : vector<4x64xf32>
    %593 = vector.extract_strided_slice %592 {offsets = [0, 0], sizes = [4, 32], strides = [1, 1]} : vector<4x64xf32> to vector<4x32xf32>
    %594 = vector.extract_strided_slice %592 {offsets = [0, 32], sizes = [4, 32], strides = [1, 1]} : vector<4x64xf32> to vector<4x32xf32>
    %595 = vector.extract_strided_slice %585 {offsets = [0, 64], sizes = [4, 32], strides = [1, 1]} : vector<4x128xf32> to vector<4x32xf32>
    %596 = arith.addf %595, %28 : vector<4x32xf32>
    %597 = vector.extract_strided_slice %585 {offsets = [0, 96], sizes = [4, 32], strides = [1, 1]} : vector<4x128xf32> to vector<4x32xf32>
    %598 = arith.addf %597, %40 : vector<4x32xf32>
    %599 = arith.mulf %593, %598 : vector<4x32xf32>
    %600 = arith.addf %596, %599 : vector<4x32xf32>
    %601 = math.tanh %600 : vector<4x32xf32>
    %cst_158 = arith.constant 1.000000e+00 : f32
    %602 = vector.broadcast %cst_158 : f32 to vector<4x32xf32>
    %603 = arith.subf %602, %594 : vector<4x32xf32>
    %604 = arith.mulf %603, %601 : vector<4x32xf32>
    %605 = arith.mulf %594, %526 : vector<4x32xf32>
    %606 = arith.addf %604, %605 : vector<4x32xf32>
    %cst_159 = arith.constant dense<0.000000e+00> : vector<4x128xf32>
    %607 = tpu.matmul %606, %41, %cst_159 {dimension_numbers = #tpu.dot_dimension_numbers<[1], [0], [0], [1], [0, 0, 1, 1], [], []>} : vector<4x32xf32>, vector<32x128xf32>, vector<4x128xf32> -> vector<4x128xf32>
    %608 = arith.addf %607, %44 : vector<4x128xf32>
    %609 = vector.broadcast %cst_68 : f32 to vector<4x128xf32>
    %610 = arith.select %60, %608, %609 : vector<4x128xi1>, vector<4x128xf32>
    %cst_160 = arith.constant dense<0xFF800000> : vector<4xf32>
    %611 = vector.multi_reduction <maximumf>, %610, %cst_160 [1] : vector<4x128xf32> to vector<4xf32>
    %612 = vector.shape_cast %611 : vector<4xf32> to vector<4x1xf32>
    %613 = vector.broadcast %612 : vector<4x1xf32> to vector<4x128xf32>
    %614 = arith.subf %610, %613 : vector<4x128xf32>
    %615 = math.exp %614 : vector<4x128xf32>
    %cst_161 = arith.constant dense<0.000000e+00> : vector<4xf32>
    %616 = vector.multi_reduction <add>, %615, %cst_161 [1] : vector<4x128xf32> to vector<4xf32>
    %617 = vector.shape_cast %616 : vector<4xf32> to vector<4x1xf32>
    %618 = vector.broadcast %617 : vector<4x1xf32> to vector<4x128xf32>
    %619 = arith.divf %615, %618 : vector<4x128xf32>
    %620 = arith.negf %608 : vector<4x128xf32>
    %621 = math.exp %620 : vector<4x128xf32>
    %cst_162 = arith.constant 1.000000e+00 : f32
    %622 = vector.broadcast %cst_162 : f32 to vector<4x128xf32>
    %623 = arith.addf %622, %621 : vector<4x128xf32>
    %624 = arith.divf %622, %623 : vector<4x128xf32>
    %625 = arith.select %55, %624, %619 : vector<4x128xi1>, vector<4x128xf32>
    %626 = arith.select %53, %608, %625 : vector<4x128xi1>, vector<4x128xf32>
    %627 = vector.extract_strided_slice %608 {offsets = [0, 0], sizes = [4, 8], strides = [1, 1]} : vector<4x128xf32> to vector<4x8xf32>
    %628 = arith.index_cast %c4_i32 : i32 to index
    %c0_163 = arith.constant 0 : index
    %c0_164 = arith.constant 0 : index
    %629 = vector.load %arg13[%628, %c0_163, %c0_164] : memref<6x4x128xf32, #tpu.memory_space<vmem>>, vector<1x4x128xf32>
    %630 = vector.shape_cast %629 : vector<1x4x128xf32> to vector<4x128xf32>
    %631 = vector.shape_cast %626 : vector<4x128xf32> to vector<1x4x128xf32>
    tpu.vector_store %arg13[%628, %c0_163, %c0_164], %631 {strides = array<i32>} : memref<6x4x128xf32, #tpu.memory_space<vmem>>, vector<1x4x128xf32>,
    %c5_i32 = arith.constant 5 : i32
    %632 = arith.index_cast %c5_i32 : i32 to index
    %c0_165 = arith.constant 0 : index
    %c0_166 = arith.constant 0 : index
    %633 = vector.load %arg1[%632, %c0_165, %c0_166] : memref<6x4x1xf32, #tpu.memory_space<vmem>>, vector<1x4x1xf32>
    %634 = vector.shape_cast %633 : vector<1x4x1xf32> to vector<4x1xf32>
    %635 = vector.broadcast %634 : vector<4x1xf32> to vector<4x32xf32>
    %636 = arith.mulf %635, %47 : vector<4x32xf32>
    %637 = arith.addf %636, %50 : vector<4x32xf32>
    %cst_167 = arith.constant 0.000000e+00 : f32
    %638 = vector.broadcast %cst_167 : f32 to vector<4x32xf32>
    %639 = arith.maximumf %637, %638 : vector<4x32xf32>
    %cst_168 = arith.constant 0.000000e+00 : f32
    %640 = vector.broadcast %cst_168 : f32 to vector<4x32xf32>
    %641 = arith.subf %640, %639 : vector<4x32xf32>
    %642 = math.exp %641 : vector<4x32xf32>
    %643 = arith.mulf %560, %642 : vector<4x32xf32>
    %644 = arith.mulf %583, %642 : vector<4x32xf32>
    %645 = arith.mulf %606, %642 : vector<4x32xf32>
    %646 = arith.index_cast %c5_i32 : i32 to index
    %c0_169 = arith.constant 0 : index
    %c0_170 = arith.constant 0 : index
    %647 = vector.load %arg2[%646, %c0_169, %c0_170] : memref<6x4x8xf32, #tpu.memory_space<vmem>>, vector<1x4x8xf32>
    %648 = vector.shape_cast %647 : vector<1x4x8xf32> to vector<4x8xf32>
    %cst_171 = arith.constant 1.000000e+00 : f32
    %649 = vector.broadcast %cst_171 : f32 to vector<4x8xf32>
    %650 = arith.subf %649, %648 : vector<4x8xf32>
    %651 = arith.mulf %627, %650 : vector<4x8xf32>
    %652 = arith.index_cast %c5_i32 : i32 to index
    %c0_172 = arith.constant 0 : index
    %c0_173 = arith.constant 0 : index
    %653 = vector.load %arg0[%652, %c0_172, %c0_173] : memref<6x4x8xf32, #tpu.memory_space<vmem>>, vector<1x4x8xf32>
    %654 = vector.shape_cast %653 : vector<1x4x8xf32> to vector<4x8xf32>
    %655 = arith.mulf %648, %654 : vector<4x8xf32>
    %656 = arith.addf %651, %655 : vector<4x8xf32>
    %657 = tpu.concatenate %656, %643 in 1 : vector<4x8xf32>, vector<4x32xf32> -> vector<4x40xf32>
    %cst_174 = arith.constant dense<0.000000e+00> : vector<4x128xf32>
    %658 = tpu.matmul %657, %0, %cst_174 {dimension_numbers = #tpu.dot_dimension_numbers<[1], [0], [0], [1], [0, 0, 1, 1], [], []>} : vector<4x40xf32>, vector<40x128xf32>, vector<4x128xf32> -> vector<4x128xf32>
    %659 = vector.extract_strided_slice %658 {offsets = [0, 0], sizes = [4, 64], strides = [1, 1]} : vector<4x128xf32> to vector<4x64xf32>
    %660 = arith.addf %659, %8 : vector<4x64xf32>
    %661 = arith.negf %660 : vector<4x64xf32>
    %662 = math.exp %661 : vector<4x64xf32>
    %cst_175 = arith.constant 1.000000e+00 : f32
    %663 = vector.broadcast %cst_175 : f32 to vector<4x64xf32>
    %664 = arith.addf %663, %662 : vector<4x64xf32>
    %665 = arith.divf %663, %664 : vector<4x64xf32>
    %666 = vector.extract_strided_slice %665 {offsets = [0, 0], sizes = [4, 32], strides = [1, 1]} : vector<4x64xf32> to vector<4x32xf32>
    %667 = vector.extract_strided_slice %665 {offsets = [0, 32], sizes = [4, 32], strides = [1, 1]} : vector<4x64xf32> to vector<4x32xf32>
    %668 = vector.extract_strided_slice %658 {offsets = [0, 64], sizes = [4, 32], strides = [1, 1]} : vector<4x128xf32> to vector<4x32xf32>
    %669 = arith.addf %668, %20 : vector<4x32xf32>
    %670 = vector.extract_strided_slice %658 {offsets = [0, 96], sizes = [4, 32], strides = [1, 1]} : vector<4x128xf32> to vector<4x32xf32>
    %671 = arith.addf %670, %32 : vector<4x32xf32>
    %672 = arith.mulf %666, %671 : vector<4x32xf32>
    %673 = arith.addf %669, %672 : vector<4x32xf32>
    %674 = math.tanh %673 : vector<4x32xf32>
    %cst_176 = arith.constant 1.000000e+00 : f32
    %675 = vector.broadcast %cst_176 : f32 to vector<4x32xf32>
    %676 = arith.subf %675, %667 : vector<4x32xf32>
    %677 = arith.mulf %676, %674 : vector<4x32xf32>
    %678 = arith.mulf %667, %643 : vector<4x32xf32>
    %679 = arith.addf %677, %678 : vector<4x32xf32>
    %680 = tpu.concatenate %679, %644 in 1 : vector<4x32xf32>, vector<4x32xf32> -> vector<4x64xf32>
    %cst_177 = arith.constant dense<0.000000e+00> : vector<4x128xf32>
    %681 = tpu.matmul %680, %2, %cst_177 {dimension_numbers = #tpu.dot_dimension_numbers<[1], [0], [0], [1], [0, 0, 1, 1], [], []>} : vector<4x64xf32>, vector<64x128xf32>, vector<4x128xf32> -> vector<4x128xf32>
    %682 = vector.extract_strided_slice %681 {offsets = [0, 0], sizes = [4, 64], strides = [1, 1]} : vector<4x128xf32> to vector<4x64xf32>
    %683 = arith.addf %682, %12 : vector<4x64xf32>
    %684 = arith.negf %683 : vector<4x64xf32>
    %685 = math.exp %684 : vector<4x64xf32>
    %cst_178 = arith.constant 1.000000e+00 : f32
    %686 = vector.broadcast %cst_178 : f32 to vector<4x64xf32>
    %687 = arith.addf %686, %685 : vector<4x64xf32>
    %688 = arith.divf %686, %687 : vector<4x64xf32>
    %689 = vector.extract_strided_slice %688 {offsets = [0, 0], sizes = [4, 32], strides = [1, 1]} : vector<4x64xf32> to vector<4x32xf32>
    %690 = vector.extract_strided_slice %688 {offsets = [0, 32], sizes = [4, 32], strides = [1, 1]} : vector<4x64xf32> to vector<4x32xf32>
    %691 = vector.extract_strided_slice %681 {offsets = [0, 64], sizes = [4, 32], strides = [1, 1]} : vector<4x128xf32> to vector<4x32xf32>
    %692 = arith.addf %691, %24 : vector<4x32xf32>
    %693 = vector.extract_strided_slice %681 {offsets = [0, 96], sizes = [4, 32], strides = [1, 1]} : vector<4x128xf32> to vector<4x32xf32>
    %694 = arith.addf %693, %36 : vector<4x32xf32>
    %695 = arith.mulf %689, %694 : vector<4x32xf32>
    %696 = arith.addf %692, %695 : vector<4x32xf32>
    %697 = math.tanh %696 : vector<4x32xf32>
    %cst_179 = arith.constant 1.000000e+00 : f32
    %698 = vector.broadcast %cst_179 : f32 to vector<4x32xf32>
    %699 = arith.subf %698, %690 : vector<4x32xf32>
    %700 = arith.mulf %699, %697 : vector<4x32xf32>
    %701 = arith.mulf %690, %644 : vector<4x32xf32>
    %702 = arith.addf %700, %701 : vector<4x32xf32>
    %703 = tpu.concatenate %702, %645 in 1 : vector<4x32xf32>, vector<4x32xf32> -> vector<4x64xf32>
    %cst_180 = arith.constant dense<0.000000e+00> : vector<4x128xf32>
    %704 = tpu.matmul %703, %4, %cst_180 {dimension_numbers = #tpu.dot_dimension_numbers<[1], [0], [0], [1], [0, 0, 1, 1], [], []>} : vector<4x64xf32>, vector<64x128xf32>, vector<4x128xf32> -> vector<4x128xf32>
    %705 = vector.extract_strided_slice %704 {offsets = [0, 0], sizes = [4, 64], strides = [1, 1]} : vector<4x128xf32> to vector<4x64xf32>
    %706 = arith.addf %705, %16 : vector<4x64xf32>
    %707 = arith.negf %706 : vector<4x64xf32>
    %708 = math.exp %707 : vector<4x64xf32>
    %cst_181 = arith.constant 1.000000e+00 : f32
    %709 = vector.broadcast %cst_181 : f32 to vector<4x64xf32>
    %710 = arith.addf %709, %708 : vector<4x64xf32>
    %711 = arith.divf %709, %710 : vector<4x64xf32>
    %712 = vector.extract_strided_slice %711 {offsets = [0, 0], sizes = [4, 32], strides = [1, 1]} : vector<4x64xf32> to vector<4x32xf32>
    %713 = vector.extract_strided_slice %711 {offsets = [0, 32], sizes = [4, 32], strides = [1, 1]} : vector<4x64xf32> to vector<4x32xf32>
    %714 = vector.extract_strided_slice %704 {offsets = [0, 64], sizes = [4, 32], strides = [1, 1]} : vector<4x128xf32> to vector<4x32xf32>
    %715 = arith.addf %714, %28 : vector<4x32xf32>
    %716 = vector.extract_strided_slice %704 {offsets = [0, 96], sizes = [4, 32], strides = [1, 1]} : vector<4x128xf32> to vector<4x32xf32>
    %717 = arith.addf %716, %40 : vector<4x32xf32>
    %718 = arith.mulf %712, %717 : vector<4x32xf32>
    %719 = arith.addf %715, %718 : vector<4x32xf32>
    %720 = math.tanh %719 : vector<4x32xf32>
    %cst_182 = arith.constant 1.000000e+00 : f32
    %721 = vector.broadcast %cst_182 : f32 to vector<4x32xf32>
    %722 = arith.subf %721, %713 : vector<4x32xf32>
    %723 = arith.mulf %722, %720 : vector<4x32xf32>
    %724 = arith.mulf %713, %645 : vector<4x32xf32>
    %725 = arith.addf %723, %724 : vector<4x32xf32>
    %cst_183 = arith.constant dense<0.000000e+00> : vector<4x128xf32>
    %726 = tpu.matmul %725, %41, %cst_183 {dimension_numbers = #tpu.dot_dimension_numbers<[1], [0], [0], [1], [0, 0, 1, 1], [], []>} : vector<4x32xf32>, vector<32x128xf32>, vector<4x128xf32> -> vector<4x128xf32>
    %727 = arith.addf %726, %44 : vector<4x128xf32>
    %728 = vector.broadcast %cst_68 : f32 to vector<4x128xf32>
    %729 = arith.select %60, %727, %728 : vector<4x128xi1>, vector<4x128xf32>
    %cst_184 = arith.constant dense<0xFF800000> : vector<4xf32>
    %730 = vector.multi_reduction <maximumf>, %729, %cst_184 [1] : vector<4x128xf32> to vector<4xf32>
    %731 = vector.shape_cast %730 : vector<4xf32> to vector<4x1xf32>
    %732 = vector.broadcast %731 : vector<4x1xf32> to vector<4x128xf32>
    %733 = arith.subf %729, %732 : vector<4x128xf32>
    %734 = math.exp %733 : vector<4x128xf32>
    %cst_185 = arith.constant dense<0.000000e+00> : vector<4xf32>
    %735 = vector.multi_reduction <add>, %734, %cst_185 [1] : vector<4x128xf32> to vector<4xf32>
    %736 = vector.shape_cast %735 : vector<4xf32> to vector<4x1xf32>
    %737 = vector.broadcast %736 : vector<4x1xf32> to vector<4x128xf32>
    %738 = arith.divf %734, %737 : vector<4x128xf32>
    %739 = arith.negf %727 : vector<4x128xf32>
    %740 = math.exp %739 : vector<4x128xf32>
    %cst_186 = arith.constant 1.000000e+00 : f32
    %741 = vector.broadcast %cst_186 : f32 to vector<4x128xf32>
    %742 = arith.addf %741, %740 : vector<4x128xf32>
    %743 = arith.divf %741, %742 : vector<4x128xf32>
    %744 = arith.select %55, %743, %738 : vector<4x128xi1>, vector<4x128xf32>
    %745 = arith.select %53, %727, %744 : vector<4x128xi1>, vector<4x128xf32>
    %746 = vector.extract_strided_slice %727 {offsets = [0, 0], sizes = [4, 8], strides = [1, 1]} : vector<4x128xf32> to vector<4x8xf32>
    %747 = arith.index_cast %c5_i32 : i32 to index
    %c0_187 = arith.constant 0 : index
    %c0_188 = arith.constant 0 : index
    %748 = vector.load %arg13[%747, %c0_187, %c0_188] : memref<6x4x128xf32, #tpu.memory_space<vmem>>, vector<1x4x128xf32>
    %749 = vector.shape_cast %748 : vector<1x4x128xf32> to vector<4x128xf32>
    %750 = vector.shape_cast %745 : vector<4x128xf32> to vector<1x4x128xf32>
    tpu.vector_store %arg13[%747, %c0_187, %c0_188], %750 {strides = array<i32>} : memref<6x4x128xf32, #tpu.memory_space<vmem>>, vector<1x4x128xf32>,
    %c5_i32_189 = arith.constant 5 : i32
    return
  }
}

</mosaic_0001>

<llo_original>
// kernel: tpu_custom_call.1
$region0: #{tpu_custom_call.1}
  #allocation0 [shape = 'u32[]', space=smem, size = 0x4, offset = 0x4, fixed_abs, tag = 'smem constant byte address 0x4 - core index']
  #allocation1 [shape = 'u32[72,128]{1,0:T(1,128)}', space=vmem, size = 0x9000, scoped, tag = 'internal scratch']
  %s0 = inlined_call_operand.hbm [shape: f32[6,4,8], index: 0, kind: input, shape index: {}]
  %s1 = inlined_call_operand.vmem [shape: f32[6,4,1], index: 1, kind: input, shape index: {}]
  %s2 = inlined_call_operand.hbm [shape: f32[6,4,8], index: 2, kind: input, shape index: {}]
  %s3 = inlined_call_operand.hbm [shape: f32[3,4,32], index: 3, kind: input, shape index: {}]
  %s4 = inlined_call_operand.hbm [shape: f32[40,128], index: 4, kind: input, shape index: {}]
  %s5 = inlined_call_operand.hbm [shape: f32[2,64,128], index: 5, kind: input, shape index: {}]
  %s6 = inlined_call_operand.vmem [shape: f32[3,1,64], index: 6, kind: input, shape index: {}]
  %s7 = inlined_call_operand.hbm [shape: f32[3,1,32], index: 7, kind: input, shape index: {}]
  %s8 = inlined_call_operand.hbm [shape: f32[3,1,32], index: 8, kind: input, shape index: {}]
  %s9 = inlined_call_operand.vmem [shape: f32[32,128], index: 9, kind: input, shape index: {}]
  %s10 = inlined_call_operand.vmem [shape: f32[1,128], index: 10, kind: input, shape index: {}]
  %s11 = inlined_call_operand.vmem [shape: f32[1,32], index: 11, kind: input, shape index: {}]
  %s12 = inlined_call_operand.vmem [shape: f32[1,32], index: 12, kind: input, shape index: {}]
  %s13 = inlined_call_operand.hbm [shape: f32[6,4,128], index: 13, kind: output, shape index: {}]
  %s14 = sld [smem:[#allocation0]]
  $region90: #{tpu_custom_call.1} parent=0
    _
  %s16 = ssub.s32 1, %s14
  %s17 = scalar_select 0, %s16, %s14
  $region1: #{tpu_custom_call.1} parent=0
    #allocation2 [shape = 'u8[12288]{0}', space=vmem, size = 0x3000, scoped, tag = 'input window, operand 0, single buffered']
    #allocation3 [shape = 's32[1]{0}', space=sflag, size = 0x4, scoped, tag = 'scoped memory for tpu_custom_call.1']
    #allocation4 [shape = 's32[1]{0}', space=sflag, size = 0x4, scoped, tag = 'scoped memory for tpu_custom_call.1']
    #allocation5 [shape = 'u8[12288]{0}', space=vmem, size = 0x3000, scoped, tag = 'input window, operand 2, single buffered']
    #allocation6 [shape = 's32[1]{0}', space=sflag, size = 0x4, scoped, tag = 'scoped memory for tpu_custom_call.1']
    #allocation7 [shape = 'u8[6144]{0}', space=vmem, size = 0x1800, scoped, tag = 'input window, operand 3, single buffered']
    #allocation8 [shape = 'u8[20480]{0}', space=vmem, size = 0x5000, scoped, tag = 'input window, operand 4, single buffered']
    #allocation9 [shape = 's32[1]{0}', space=sflag, size = 0x4, scoped, tag = 'scoped memory for tpu_custom_call.1']
    #allocation10 [shape = 'u8[65536]{0}', space=vmem, size = 0x10000, scoped, tag = 'input window, operand 5, single buffered']
    #allocation11 [shape = 'u8[1536]{0}', space=vmem, size = 0x800, scoped, tag = 'input window, operand 7, single buffered']
    #allocation12 [shape = 's32[1]{0}', space=sflag, size = 0x4, scoped, tag = 'scoped memory for tpu_custom_call.1']
    #allocation13 [shape = 'u8[1536]{0}', space=vmem, size = 0x800, scoped, tag = 'input window, operand 8, single buffered']
    #allocation14 [shape = 'u8[12288]{0}', space=vmem, size = 0x3000, scoped, tag = 'output window, operand 0, single buffered']
    %18 = vsyncpa [#allocation3], 0
    %19 = vsyncpa [#allocation6], 0
    %20 = vsyncpa [#allocation9], 0
    %21 = vsyncpa [#allocation12], 0
    %22 = vsyncpa [#allocation4], 0
    // Predicated region
    $region2: #{tpu_custom_call.1} parent=1 // pred_check
      _
    $region3: #{tpu_custom_call.1} parent=1 // pred_check_branch
      %24 = sbr.rel (0) target = $region5
    $region4: #{tpu_custom_call.1} parent=1 // pred_region
      %26 = vsyncadd [#allocation3], 0
      %s27 = sshll.u32 %s0, 4
      %s28 = int_to_ptr.hbm [resolvable:$true] %s27
      %s29 = sshll.u32 [#allocation2], 4
      %s30 = int_to_ptr.vmem [resolvable:$true] %s29
      %35 = dma.hbm_to_vmem [thread:$0]  %s28, 384, %s30, [#allocation3], 64, 64, 4
    $region5: #{tpu_custom_call.1} parent=1 // pred_fallthru
      _
    // Predicated region
    $region6: #{tpu_custom_call.1} parent=1 // pred_check
      _
    $region7: #{tpu_custom_call.1} parent=1 // pred_check_branch
      %37 = sbr.rel (0) target = $region9
    $region8: #{tpu_custom_call.1} parent=1 // pred_region
      _
    $region9: #{tpu_custom_call.1} parent=1 // pred_fallthru
      _
    // Predicated region
    $region10: #{tpu_custom_call.1} parent=1 // pred_check
      _
    $region11: #{tpu_custom_call.1} parent=1 // pred_check_branch
      %39 = sbr.rel (0) target = $region13
    $region12: #{tpu_custom_call.1} parent=1 // pred_region
      %41 = vsyncadd [#allocation6], 0
      %s42 = sshll.u32 %s2, 4
      %s43 = int_to_ptr.hbm [resolvable:$true] %s42
      %s44 = sshll.u32 [#allocation5], 4
      %s45 = int_to_ptr.vmem [resolvable:$true] %s44
      %50 = dma.hbm_to_vmem [thread:$0]  %s43, 384, %s45, [#allocation6], 64, 64, 4
    $region13: #{tpu_custom_call.1} parent=1 // pred_fallthru
      _
    // Predicated region
    $region14: #{tpu_custom_call.1} parent=1 // pred_check
      _
    $region15: #{tpu_custom_call.1} parent=1 // pred_check_branch
      %52 = sbr.rel (0) target = $region17
    $region16: #{tpu_custom_call.1} parent=1 // pred_region
      %54 = vsyncadd [#allocation6], 0
      %s55 = sshll.u32 %s3, 4
      %s56 = int_to_ptr.hbm [resolvable:$true] %s55
      %s57 = sshll.u32 [#allocation7], 4
      %s58 = int_to_ptr.vmem [resolvable:$true] %s57
      %63 = dma.hbm_to_vmem [thread:$0]  %s56, 192, %s58, [#allocation6], 64, 64, 4
    $region17: #{tpu_custom_call.1} parent=1 // pred_fallthru
      _
    // Predicated region
    $region18: #{tpu_custom_call.1} parent=1 // pred_check
      _
    $region19: #{tpu_custom_call.1} parent=1 // pred_check_branch
      %65 = sbr.rel (0) target = $region21
    $region20: #{tpu_custom_call.1} parent=1 // pred_region
      %67 = vsyncadd [#allocation9], 0
      %s68 = sshll.u32 %s4, 4
      %s69 = int_to_ptr.hbm [resolvable:$true] %s68
      %s70 = sshll.u32 [#allocation8], 4
      %s71 = int_to_ptr.vmem [resolvable:$true] %s70
      %76 = dma.hbm_to_vmem [thread:$0]  %s69, 640, %s71, [#allocation9], 128, 128, 8
    $region21: #{tpu_custom_call.1} parent=1 // pred_fallthru
      _
    // Predicated region
    $region22: #{tpu_custom_call.1} parent=1 // pred_check
      _
    $region23: #{tpu_custom_call.1} parent=1 // pred_check_branch
      %78 = sbr.rel (0) target = $region25
    $region24: #{tpu_custom_call.1} parent=1 // pred_region
      %80 = vsyncadd [#allocation9], 0
      %s81 = sshll.u32 %s5, 4
      %s82 = int_to_ptr.hbm [resolvable:$true] %s81
      %s83 = sshll.u32 [#allocation10], 4
      %s84 = int_to_ptr.vmem [resolvable:$true] %s83
      %89 = dma.hbm_to_vmem [thread:$0]  %s82, 2048, %s84, [#allocation9], 128, 128, 8
    $region25: #{tpu_custom_call.1} parent=1 // pred_fallthru
      _
    // Predicated region
    $region26: #{tpu_custom_call.1} parent=1 // pred_check
      _
    $region27: #{tpu_custom_call.1} parent=1 // pred_check_branch
      %91 = sbr.rel (0) target = $region29
    $region28: #{tpu_custom_call.1} parent=1 // pred_region
      _
    $region29: #{tpu_custom_call.1} parent=1 // pred_fallthru
      _
    // Predicated region
    $region30: #{tpu_custom_call.1} parent=1 // pred_check
      _
    $region31: #{tpu_custom_call.1} parent=1 // pred_check_branch
      %93 = sbr.rel (0) target = $region33
    $region32: #{tpu_custom_call.1} parent=1 // pred_region
      %95 = vsyncadd [#allocation12], 0
      %s96 = sshll.u32 %s7, 4
      %s97 = int_to_ptr.hbm [resolvable:$true] %s96
      %s98 = sshll.u32 [#allocation11], 4
      %s99 = int_to_ptr.vmem [resolvable:$true] %s98
      %104 = dma.hbm_to_vmem [thread:$0]  %s97, 48, %s99, [#allocation12], 16, 16, 1
    $region33: #{tpu_custom_call.1} parent=1 // pred_fallthru
      _
    // Predicated region
    $region34: #{tpu_custom_call.1} parent=1 // pred_check
      _
    $region35: #{tpu_custom_call.1} parent=1 // pred_check_branch
      %106 = sbr.rel (0) target = $region37
    $region36: #{tpu_custom_call.1} parent=1 // pred_region
      %108 = vsyncadd [#allocation12], 0
      %s109 = sshll.u32 %s8, 4
      %s110 = int_to_ptr.hbm [resolvable:$true] %s109
      %s111 = sshll.u32 [#allocation13], 4
      %s112 = int_to_ptr.vmem [resolvable:$true] %s111
      %117 = dma.hbm_to_vmem [thread:$0]  %s110, 48, %s112, [#allocation12], 16, 16, 1
    $region37: #{tpu_custom_call.1} parent=1 // pred_fallthru
      _
    // Predicated region
    $region38: #{tpu_custom_call.1} parent=1 // pred_check
      _
    $region39: #{tpu_custom_call.1} parent=1 // pred_check_branch
      %119 = sbr.rel (0) target = $region41
    $region40: #{tpu_custom_call.1} parent=1 // pred_region
      _
    $region41: #{tpu_custom_call.1} parent=1 // pred_fallthru
      _
    // Predicated region
    $region42: #{tpu_custom_call.1} parent=1 // pred_check
      _
    $region43: #{tpu_custom_call.1} parent=1 // pred_check_branch
      %121 = sbr.rel (0) target = $region45
    $region44: #{tpu_custom_call.1} parent=1 // pred_region
      _
    $region45: #{tpu_custom_call.1} parent=1 // pred_fallthru
      _
    // Predicated region
    $region46: #{tpu_custom_call.1} parent=1 // pred_check
      _
    $region47: #{tpu_custom_call.1} parent=1 // pred_check_branch
      %123 = sbr.rel (0) target = $region49
    $region48: #{tpu_custom_call.1} parent=1 // pred_region
      _
    $region49: #{tpu_custom_call.1} parent=1 // pred_fallthru
      _
    // Predicated region
    $region50: #{tpu_custom_call.1} parent=1 // pred_check
      _
    $region51: #{tpu_custom_call.1} parent=1 // pred_check_branch
      %125 = sbr.rel (0) target = $region53
    $region52: #{tpu_custom_call.1} parent=1 // pred_region
      _
    $region53: #{tpu_custom_call.1} parent=1 // pred_fallthru
      _
    // Predicated region
    $region54: #{tpu_custom_call.1} parent=1 // pred_check
      _
    $region55: #{tpu_custom_call.1} parent=1 // pred_check_branch
      %127 = sbr.rel (0) target = $region57
    $region56: #{tpu_custom_call.1} parent=1 // pred_region
      %129 = dma.done [#allocation3], 384
    $region57: #{tpu_custom_call.1} parent=1 // pred_fallthru
      _
    // Predicated region
    $region58: #{tpu_custom_call.1} parent=1 // pred_check
      _
    $region59: #{tpu_custom_call.1} parent=1 // pred_check_branch
      %131 = sbr.rel (0) target = $region61
    $region60: #{tpu_custom_call.1} parent=1 // pred_region
      %133 = dma.done [#allocation6], 384
    $region61: #{tpu_custom_call.1} parent=1 // pred_fallthru
      _
    // Predicated region
    $region62: #{tpu_custom_call.1} parent=1 // pred_check
      _
    $region63: #{tpu_custom_call.1} parent=1 // pred_check_branch
      %135 = sbr.rel (0) target = $region65
    $region64: #{tpu_custom_call.1} parent=1 // pred_region
      %137 = dma.done [#allocation6], 192
    $region65: #{tpu_custom_call.1} parent=1 // pred_fallthru
      _
    // Predicated region
    $region66: #{tpu_custom_call.1} parent=1 // pred_check
      _
    $region67: #{tpu_custom_call.1} parent=1 // pred_check_branch
      %139 = sbr.rel (0) target = $region69
    $region68: #{tpu_custom_call.1} parent=1 // pred_region
      %141 = dma.done [#allocation9], 640
    $region69: #{tpu_custom_call.1} parent=1 // pred_fallthru
      _
    // Predicated region
    $region70: #{tpu_custom_call.1} parent=1 // pred_check
      _
    $region71: #{tpu_custom_call.1} parent=1 // pred_check_branch
      %143 = sbr.rel (0) target = $region73
    $region72: #{tpu_custom_call.1} parent=1 // pred_region
      %145 = dma.done [#allocation9], 2048
    $region73: #{tpu_custom_call.1} parent=1 // pred_fallthru
      _
    // Predicated region
    $region74: #{tpu_custom_call.1} parent=1 // pred_check
      _
    $region75: #{tpu_custom_call.1} parent=1 // pred_check_branch
      %147 = sbr.rel (0) target = $region77
    $region76: #{tpu_custom_call.1} parent=1 // pred_region
      %149 = dma.done [#allocation12], 48
    $region77: #{tpu_custom_call.1} parent=1 // pred_fallthru
      _
    // Predicated region
    $region78: #{tpu_custom_call.1} parent=1 // pred_check
      _
    $region79: #{tpu_custom_call.1} parent=1 // pred_check_branch
      %151 = sbr.rel (0) target = $region81
    $region80: #{tpu_custom_call.1} parent=1 // pred_region
      %153 = dma.done [#allocation12], 48
    $region81: #{tpu_custom_call.1} parent=1 // pred_fallthru
      _
    %v154 = vld [vmem:[#allocation8] sm:$0xff]
    %v155 = vld [vmem:[#allocation8 + $0x8] sm:$0xff]
    %v156 = vld [vmem:[#allocation8 + $0x10] sm:$0xff]
    %v157 = vld [vmem:[#allocation8 + $0x18] sm:$0xff]
    %v158 = vld [vmem:[#allocation8 + $0x20] sm:$0xff]
    %v159 = vld [vmem:[#allocation10] sm:$0xff]
    %v160 = vld [vmem:[#allocation10 + $0x8] sm:$0xff]
    %v161 = vld [vmem:[#allocation10 + $0x10] sm:$0xff]
    %v162 = vld [vmem:[#allocation10 + $0x18] sm:$0xff]
    %v163 = vld [vmem:[#allocation10 + $0x20] sm:$0xff]
    %v164 = vld [vmem:[#allocation10 + $0x28] sm:$0xff]
    %v165 = vld [vmem:[#allocation10 + $0x30] sm:$0xff]
    %v166 = vld [vmem:[#allocation10 + $0x38] sm:$0xff]
    %s167 = scalar_lea.vmem [#allocation10], 64
    %v168 = vld [vmem:[%s167] sm:$0xff]
    %v169 = vld [vmem:[%s167 + $0x8] sm:$0xff]
    %v170 = vld [vmem:[%s167 + $0x10] sm:$0xff]
    %v171 = vld [vmem:[%s167 + $0x18] sm:$0xff]
    %v172 = vld [vmem:[%s167 + $0x20] sm:$0xff]
    %v173 = vld [vmem:[%s167 + $0x28] sm:$0xff]
    %v174 = vld [vmem:[%s167 + $0x30] sm:$0xff]
    %v175 = vld [vmem:[%s167 + $0x38] sm:$0xff]
    %v176 = vld [vmem:[%s6] sm:$0x1]
    %v178 = vperm.slane %v176, 0
    %s180 = scalar_lea.vmem %s6, 1
    %v181 = vld [vmem:[%s180] sm:$0x1]
    %v183 = vperm.slane %v181, 0
    %s185 = scalar_lea.vmem %s6, 2
    %v186 = vld [vmem:[%s185] sm:$0x1]
    %v188 = vperm.slane %v186, 0
    %v190 = vld [vmem:[#allocation11] sm:$0x1]
    %v192 = vperm.slane %v190, 0
    %s193 = scalar_lea.vmem [#allocation11], 1
    %v194 = vld [vmem:[%s193] sm:$0x1]
    %v196 = vperm.slane %v194, 0
    %s197 = scalar_lea.vmem [#allocation11], 2
    %v198 = vld [vmem:[%s197] sm:$0x1]
    %v200 = vperm.slane %v198, 0
    %v201 = vld [vmem:[#allocation13] sm:$0x1]
    %v203 = vperm.slane %v201, 0
    %s204 = scalar_lea.vmem [#allocation13], 1
    %v205 = vld [vmem:[%s204] sm:$0x1]
    %v207 = vperm.slane %v205, 0
    %s208 = scalar_lea.vmem [#allocation13], 2
    %v209 = vld [vmem:[%s208] sm:$0x1]
    %v211 = vperm.slane %v209, 0
    %v212 = vld [vmem:[%s9] sm:$0xff]
    %v213 = vld [vmem:[%s9 + $0x8] sm:$0xff]
    %v214 = vld [vmem:[%s9 + $0x10] sm:$0xff]
    %v215 = vld [vmem:[%s9 + $0x18] sm:$0xff]
    %v216 = vld [vmem:[%s10] sm:$0x1]
    %v218 = vperm.slane %v216, 0
    %v220 = vld [vmem:[%s11] sm:$0x1]
    %v222 = vperm.slane %v220, 0
    %v224 = vld [vmem:[%s12] sm:$0x1]
    %v226 = vperm.slane %v224, 0
    %v228 = vlaneseq
    %v229 = vand.u32 %v228, 127
    %vm230 = vcmp.lt.s32.totalorder %v229, 8
    %vm231 = vcmp.lt.s32.totalorder %v229, 16
    %vm232 = vcmp.ge.s32.totalorder %v229, 16
    %vm233 = vcmp.lt.s32.totalorder %v229, 21
    %vm234 = vmand %vm232, %vm233
    %v235 = vld [vmem:[#allocation2] sm:$0xf]
    %v236 = vld [vmem:[#allocation7] sm:$0xf]
    %238 = vrot.lane.b32.xlu0 %v236, 8
    %v239 = vpop.permute.xlu0 %238
    %vm241 = vcmask 64512
    %v242 = vsel %vm241, %v235, %v239
    %vm243 = vcmask 326656
    %v245 = vsel %vm243, %v242, 0
    %247 = vmatpush.msra.mxu0 0.0
    %248 = vmatpush.msra.mxu0 0.0
    %249 = vmatpush.msra.mxu0 0.0
    %250 = vmatpush.msra.mxu0 0.0
    %251 = vmatpush.msra.mxu0 0.0
    %252 = vmatpush.msra.mxu0 0.0
    %253 = vmatpush.msra.mxu0 0.0
    %254 = vmatpush.msra.mxu0 0.0
    %255 = vmatpush.msra.mxu0 0.0
    %256 = vmatpush.msra.mxu0 0.0
    %257 = vmatpush.msra.mxu0 0.0
    %258 = vmatpush.msra.mxu0 %v158
    %259 = vmatpush.msra.mxu0 %v157
    %260 = vmatpush.msra.mxu0 %v156
    %261 = vmatpush.msra.mxu0 %v155
    %262 = vmatpush.msra.mxu0 %v154
    %263 = vmatmul.f32.gmra.mxu0 %v245
    %v264 = vpop.f32.mrf.mxu0
    %v265 = vadd.f32 0.0, %v264
    %266 = vdwg.mxu0
    %v267 = vadd.f32 %v265, %v178
    %v268 = vxor.u32 %v267, 2147483648
    %v269 = vmul.f32 %v268, 1.442695
    %v270 = vpow.pop %v269
    %v271 = vadd.f32 %v270, 1.0
    %v272 = vrcp.pop %v271
    %v273 = vmul.f32 %v271, %v272
    %v274 = vsub.f32 1.0, %v273
    %v275 = vmul.f32 %v272, %v274
    %v276 = vadd.f32 %v272, %v275
    %vm277 = vweird.f32 %v271
    %vm278 = vweird.f32 %v272
    %vm279 = vmor %vm277, %vm278
    %v280 = vsel %vm279, %v272, %v276
    %v281 = vand.u32 2147483647, %v271
    %vm282 = vcmp.eq.f32.partialorder %v281, 8.507059e+37
    %v283 = vand.u32 %v271, 2147483648
    %v284 = vor.u32 1.1754944e-38, %v283
    %v285 = vsel %vm282, %v284, %v280
    %v286 = vmul.f32 1.0, %v285
    %287 = vrot.lane.b32.xlu0 %v192, 64
    %v288 = vpop.permute.xlu0 %287
    %v290 = vadd.f32 %v265, %v288
    %291 = vrot.lane.b32.xlu0 %v203, 96
    %v292 = vpop.permute.xlu0 %291
    %v294 = vadd.f32 %v265, %v292
    %296 = vrot.lane.b32.xlu0 %v294, 32
    %v297 = vpop.permute.xlu0 %296
    %v299 = vmul.f32 %v286, %v297
    %301 = vrot.lane.b32.xlu0 %v299, 64
    %v302 = vpop.permute.xlu0 %301
    %v304 = vadd.f32 %v290, %v302
    %v305 = vtanh.pop %v304
    %v306 = vsub.f32 1.0, %v286
    %308 = vrot.lane.b32.xlu0 %v305, 96
    %v309 = vpop.permute.xlu0 %308
    %v311 = vmul.f32 %v306, %v309
    %312 = vrot.lane.b32.xlu0 %v236, 32
    %v313 = vpop.permute.xlu0 %312
    %v315 = vmul.f32 %v286, %v313
    %v316 = vadd.f32 %v311, %v315
    %s317 = scalar_lea.vmem [#allocation7], 4
    %v318 = vld [vmem:[%s317] sm:$0xf]
    %320 = vrot.lane.b32.xlu0 %v316, 96
    %v321 = vpop.permute.xlu0 %320
    %324 = vrot.lane.b32.xlu0 %v318, 32
    %v325 = vpop.permute.xlu0 %324
    %vm327 = vcmask 261120
    %v328 = vsel %vm327, %v321, %v325
    %vm329 = vcmask 523264
    %v331 = vsel %vm329, %v328, 0
    %333 = vmatpush.msra.mxu0 0.0
    %334 = vmatpush.msra.mxu0 0.0
    %335 = vmatpush.msra.mxu0 0.0
    %336 = vmatpush.msra.mxu0 0.0
    %337 = vmatpush.msra.mxu0 0.0
    %338 = vmatpush.msra.mxu0 0.0
    %339 = vmatpush.msra.mxu0 0.0
    %340 = vmatpush.msra.mxu0 0.0
    %341 = vmatpush.msra.mxu0 %v166
    %342 = vmatpush.msra.mxu0 %v165
    %343 = vmatpush.msra.mxu0 %v164
    %344 = vmatpush.msra.mxu0 %v163
    %345 = vmatpush.msra.mxu0 %v162
    %346 = vmatpush.msra.mxu0 %v161
    %347 = vmatpush.msra.mxu0 %v160
    %348 = vmatpush.msra.mxu0 %v159
    %349 = vmatmul.f32.gmra.mxu0 %v331
    %v350 = vpop.f32.mrf.mxu0
    %v351 = vadd.f32 0.0, %v350
    %352 = vdwg.mxu0
    %v353 = vadd.f32 %v351, %v183
    %v354 = vxor.u32 %v353, 2147483648
    %v355 = vmul.f32 %v354, 1.442695
    %v356 = vpow.pop %v355
    %v357 = vadd.f32 %v356, 1.0
    %v358 = vrcp.pop %v357
    %v359 = vmul.f32 %v357, %v358
    %v360 = vsub.f32 1.0, %v359
    %v361 = vmul.f32 %v358, %v360
    %v362 = vadd.f32 %v358, %v361
    %vm363 = vweird.f32 %v357
    %vm364 = vweird.f32 %v358
    %vm365 = vmor %vm363, %vm364
    %v366 = vsel %vm365, %v358, %v362
    %v367 = vand.u32 2147483647, %v357
    %vm368 = vcmp.eq.f32.partialorder %v367, 8.507059e+37
    %v369 = vand.u32 %v357, 2147483648
    %v370 = vor.u32 1.1754944e-38, %v369
    %v371 = vsel %vm368, %v370, %v366
    %v372 = vmul.f32 1.0, %v371
    %373 = vrot.lane.b32.xlu0 %v196, 64
    %v374 = vpop.permute.xlu0 %373
    %v376 = vadd.f32 %v351, %v374
    %377 = vrot.lane.b32.xlu0 %v207, 96
    %v378 = vpop.permute.xlu0 %377
    %v380 = vadd.f32 %v351, %v378
    %382 = vrot.lane.b32.xlu0 %v380, 32
    %v383 = vpop.permute.xlu0 %382
    %v385 = vmul.f32 %v372, %v383
    %387 = vrot.lane.b32.xlu0 %v385, 64
    %v388 = vpop.permute.xlu0 %387
    %v390 = vadd.f32 %v376, %v388
    %v391 = vtanh.pop %v390
    %v392 = vsub.f32 1.0, %v372
    %394 = vrot.lane.b32.xlu0 %v391, 96
    %v395 = vpop.permute.xlu0 %394
    %v397 = vmul.f32 %v392, %v395
    %v398 = vmul.f32 %v372, %v325
    %v399 = vadd.f32 %v397, %v398
    %s400 = scalar_lea.vmem [#allocation7], 8
    %v401 = vld [vmem:[%s400] sm:$0xf]
    %403 = vrot.lane.b32.xlu0 %v399, 96
    %v404 = vpop.permute.xlu0 %403
    %407 = vrot.lane.b32.xlu0 %v401, 32
    %v408 = vpop.permute.xlu0 %407
    %v410 = vsel %vm327, %v404, %v408
    %v412 = vsel %vm329, %v410, 0
    %414 = vmatpush.msra.mxu0 0.0
    %415 = vmatpush.msra.mxu0 0.0
    %416 = vmatpush.msra.mxu0 0.0
    %417 = vmatpush.msra.mxu0 0.0
    %418 = vmatpush.msra.mxu0 0.0
    %419 = vmatpush.msra.mxu0 0.0
    %420 = vmatpush.msra.mxu0 0.0
    %421 = vmatpush.msra.mxu0 0.0
    %422 = vmatpush.msra.mxu0 %v175
    %423 = vmatpush.msra.mxu0 %v174
    %424 = vmatpush.msra.mxu0 %v173
    %425 = vmatpush.msra.mxu0 %v172
    %426 = vmatpush.msra.mxu0 %v171
    %427 = vmatpush.msra.mxu0 %v170
    %428 = vmatpush.msra.mxu0 %v169
    %429 = vmatpush.msra.mxu0 %v168
    %430 = vmatmul.f32.gmra.mxu0 %v412
    %v431 = vpop.f32.mrf.mxu0
    %v432 = vadd.f32 0.0, %v431
    %433 = vdwg.mxu0
    %v434 = vadd.f32 %v432, %v188
    %v435 = vxor.u32 %v434, 2147483648
    %v436 = vmul.f32 %v435, 1.442695
    %v437 = vpow.pop %v436
    %v438 = vadd.f32 %v437, 1.0
    %v439 = vrcp.pop %v438
    %v440 = vmul.f32 %v438, %v439
    %v441 = vsub.f32 1.0, %v440
    %v442 = vmul.f32 %v439, %v441
    %v443 = vadd.f32 %v439, %v442
    %vm444 = vweird.f32 %v438
    %vm445 = vweird.f32 %v439
    %vm446 = vmor %vm444, %vm445
    %v447 = vsel %vm446, %v439, %v443
    %v448 = vand.u32 2147483647, %v438
    %vm449 = vcmp.eq.f32.partialorder %v448, 8.507059e+37
    %v450 = vand.u32 %v438, 2147483648
    %v451 = vor.u32 1.1754944e-38, %v450
    %v452 = vsel %vm449, %v451, %v447
    %v453 = vmul.f32 1.0, %v452
    %454 = vrot.lane.b32.xlu0 %v200, 64
    %v455 = vpop.permute.xlu0 %454
    %v457 = vadd.f32 %v432, %v455
    %458 = vrot.lane.b32.xlu0 %v211, 96
    %v459 = vpop.permute.xlu0 %458
    %v461 = vadd.f32 %v432, %v459
    %463 = vrot.lane.b32.xlu0 %v461, 32
    %v464 = vpop.permute.xlu0 %463
    %v466 = vmul.f32 %v453, %v464
    %468 = vrot.lane.b32.xlu0 %v466, 64
    %v469 = vpop.permute.xlu0 %468
    %v471 = vadd.f32 %v457, %v469
    %v472 = vtanh.pop %v471
    %v473 = vsub.f32 1.0, %v453
    %475 = vrot.lane.b32.xlu0 %v472, 96
    %v476 = vpop.permute.xlu0 %475
    %v478 = vmul.f32 %v473, %v476
    %v479 = vmul.f32 %v453, %v408
    %v480 = vadd.f32 %v478, %v479
    %482 = vrot.lane.b32.xlu0 %v480, 96
    %v483 = vpop.permute.xlu0 %482
    %v484 = vsel %vm327, %v483, 0
    %486 = vmatpush.msra.mxu0 0.0
    %487 = vmatpush.msra.mxu0 0.0
    %488 = vmatpush.msra.mxu0 0.0
    %489 = vmatpush.msra.mxu0 0.0
    %490 = vmatpush.msra.mxu0 0.0
    %491 = vmatpush.msra.mxu0 0.0
    %492 = vmatpush.msra.mxu0 0.0
    %493 = vmatpush.msra.mxu0 0.0
    %494 = vmatpush.msra.mxu0 0.0
    %495 = vmatpush.msra.mxu0 0.0
    %496 = vmatpush.msra.mxu0 0.0
    %497 = vmatpush.msra.mxu0 0.0
    %498 = vmatpush.msra.mxu0 %v215
    %499 = vmatpush.msra.mxu0 %v214
    %500 = vmatpush.msra.mxu0 %v213
    %501 = vmatpush.msra.mxu0 %v212
    %502 = vmatmul.f32.gmra.mxu0 %v484
    %v503 = vpop.f32.mrf.mxu0
    %v504 = vadd.f32 %v218, %v503
    %505 = vdwg.mxu0
    %v506 = vsel %vm234, %v504, -1e+30
    %vm507 = vcmask 1043456
    %v508 = vsel %vm507, %v506, -inf
    %509 = vmax.xlane.f32.xlu0 %v508
    %v510 = vpop.xlane.xlu0 %509
    %v511 = vsub.f32 %v506, %v510
    %v512 = vmul.f32 %v511, 1.442695
    %v513 = vpow.pop %v512
    %v514 = vsel %vm507, %v513, 0.0
    %515 = vadd.xlane.f32.xlu0 %v514
    %v516 = vpop.xlane.xlu0 %515
    %v517 = vrcp.pop %v516
    %v518 = vmul.f32 %v516, %v517
    %v519 = vsub.f32 1.0, %v518
    %v520 = vmul.f32 %v517, %v519
    %v521 = vadd.f32 %v517, %v520
    %vm522 = vweird.f32 %v516
    %vm523 = vweird.f32 %v517
    %vm524 = vmor %vm522, %vm523
    %v525 = vsel %vm524, %v517, %v521
    %v526 = vand.u32 2147483647, %v516
    %vm527 = vcmp.eq.f32.partialorder %v526, 8.507059e+37
    %v528 = vand.u32 %v516, 2147483648
    %v529 = vor.u32 1.1754944e-38, %v528
    %v530 = vsel %vm527, %v529, %v525
    %v531 = vmul.f32 %v513, %v530
    %v532 = vsel %vm231, %v504, %v531
    %533 = vst [vmem:[#allocation14] sm:$0xf] %v532
    %s534 = scalar_lea.vmem %s1, 4
    %v535 = vld [vmem:[%s534] sm:$0xf]
    %537 = vset.pattern.permute.xlu0 0
    %538 = vperm.xlu0 %537, %v535
    %v539 = vpop.permute.xlu0 %538
    %v541 = vmul.f32 %v539, %v222
    %v542 = vadd.f32 %v541, %v226
    %v543 = vmax.f32 %v542, 0.0
    %v544 = vsub.f32 0.0, %v543
    %v545 = vmul.f32 %v544, 1.442695
    %v546 = vpow.pop %v545
    %548 = vrot.lane.b32.xlu0 %v546, 32
    %v549 = vpop.permute.xlu0 %548
    %v551 = vmul.f32 %v316, %v549
    %v552 = vmul.f32 %v399, %v549
    %v553 = vmul.f32 %v480, %v549
    %s554 = scalar_lea.vmem [#allocation5], 4
    %v555 = vld [vmem:[%s554] sm:$0xf]
    %v556 = vsub.f32 1.0, %v555
    %v557 = vmul.f32 %v504, %v556
    %s558 = scalar_lea.vmem [#allocation2], 4
    %v559 = vld [vmem:[%s558] sm:$0xf]
    %v560 = vmul.f32 %v555, %v559
    %v561 = vadd.f32 %v557, %v560
    %563 = vrot.lane.b32.xlu0 %v551, 104
    %v564 = vpop.permute.xlu0 %563
    %v566 = vsel %vm241, %v561, %v564
    %v568 = vsel %vm243, %v566, 0
    %570 = vmatpush.msra.mxu0 0.0
    %571 = vmatpush.msra.mxu0 0.0
    %572 = vmatpush.msra.mxu0 0.0
    %573 = vmatpush.msra.mxu0 0.0
    %574 = vmatpush.msra.mxu0 0.0
    %575 = vmatpush.msra.mxu0 0.0
    %576 = vmatpush.msra.mxu0 0.0
    %577 = vmatpush.msra.mxu0 0.0
    %578 = vmatpush.msra.mxu0 0.0
    %579 = vmatpush.msra.mxu0 0.0
    %580 = vmatpush.msra.mxu0 0.0
    %581 = vmatpush.msra.mxu0 %v158
    %582 = vmatpush.msra.mxu0 %v157
    %583 = vmatpush.msra.mxu0 %v156
    %584 = vmatpush.msra.mxu0 %v155
    %585 = vmatpush.msra.mxu0 %v154
    %586 = vmatmul.f32.gmra.mxu0 %v568
    %v587 = vpop.f32.mrf.mxu0
    %v588 = vadd.f32 0.0, %v587
    %589 = vdwg.mxu0
    %v590 = vadd.f32 %v588, %v178
    %v591 = vxor.u32 %v590, 2147483648
    %v592 = vmul.f32 %v591, 1.442695
    %v593 = vpow.pop %v592
    %v594 = vadd.f32 %v593, 1.0
    %v595 = vrcp.pop %v594
    %v596 = vmul.f32 %v594, %v595
    %v597 = vsub.f32 1.0, %v596
    %v598 = vmul.f32 %v595, %v597
    %v599 = vadd.f32 %v595, %v598
    %vm600 = vweird.f32 %v594
    %vm601 = vweird.f32 %v595
    %vm602 = vmor %vm600, %vm601
    %v603 = vsel %vm602, %v595, %v599
    %v604 = vand.u32 2147483647, %v594
    %vm605 = vcmp.eq.f32.partialorder %v604, 8.507059e+37
    %v606 = vand.u32 %v594, 2147483648
    %v607 = vor.u32 1.1754944e-38, %v606
    %v608 = vsel %vm605, %v607, %v603
    %v609 = vmul.f32 1.0, %v608
    %v610 = vadd.f32 %v588, %v288
    %v611 = vadd.f32 %v588, %v292
    %613 = vrot.lane.b32.xlu0 %v611, 32
    %v614 = vpop.permute.xlu0 %613
    %v616 = vmul.f32 %v609, %v614
    %618 = vrot.lane.b32.xlu0 %v616, 64
    %v619 = vpop.permute.xlu0 %618
    %v621 = vadd.f32 %v610, %v619
    %v622 = vtanh.pop %v621
    %v623 = vsub.f32 1.0, %v609
    %625 = vrot.lane.b32.xlu0 %v622, 96
    %v626 = vpop.permute.xlu0 %625
    %v628 = vmul.f32 %v623, %v626
    %v629 = vmul.f32 %v609, %v551
    %v630 = vadd.f32 %v628, %v629
    %632 = vrot.lane.b32.xlu0 %v630, 96
    %v633 = vpop.permute.xlu0 %632
    %v635 = vsel %vm327, %v633, %v552
    %v637 = vsel %vm329, %v635, 0
    %639 = vmatpush.msra.mxu0 0.0
    %640 = vmatpush.msra.mxu0 0.0
    %641 = vmatpush.msra.mxu0 0.0
    %642 = vmatpush.msra.mxu0 0.0
    %643 = vmatpush.msra.mxu0 0.0
    %644 = vmatpush.msra.mxu0 0.0
    %645 = vmatpush.msra.mxu0 0.0
    %646 = vmatpush.msra.mxu0 0.0
    %647 = vmatpush.msra.mxu0 %v166
    %648 = vmatpush.msra.mxu0 %v165
    %649 = vmatpush.msra.mxu0 %v164
    %650 = vmatpush.msra.mxu0 %v163
    %651 = vmatpush.msra.mxu0 %v162
    %652 = vmatpush.msra.mxu0 %v161
    %653 = vmatpush.msra.mxu0 %v160
    %654 = vmatpush.msra.mxu0 %v159
    %655 = vmatmul.f32.gmra.mxu0 %v637
    %v656 = vpop.f32.mrf.mxu0
    %v657 = vadd.f32 0.0, %v656
    %658 = vdwg.mxu0
    %v659 = vadd.f32 %v657, %v183
    %v660 = vxor.u32 %v659, 2147483648
    %v661 = vmul.f32 %v660, 1.442695
    %v662 = vpow.pop %v661
    %v663 = vadd.f32 %v662, 1.0
    %v664 = vrcp.pop %v663
    %v665 = vmul.f32 %v663, %v664
    %v666 = vsub.f32 1.0, %v665
    %v667 = vmul.f32 %v664, %v666
    %v668 = vadd.f32 %v664, %v667
    %vm669 = vweird.f32 %v663
    %vm670 = vweird.f32 %v664
    %vm671 = vmor %vm669, %vm670
    %v672 = vsel %vm671, %v664, %v668
    %v673 = vand.u32 2147483647, %v663
    %vm674 = vcmp.eq.f32.partialorder %v673, 8.507059e+37
    %v675 = vand.u32 %v663, 2147483648
    %v676 = vor.u32 1.1754944e-38, %v675
    %v677 = vsel %vm674, %v676, %v672
    %v678 = vmul.f32 1.0, %v677
    %v679 = vadd.f32 %v657, %v374
    %v680 = vadd.f32 %v657, %v378
    %682 = vrot.lane.b32.xlu0 %v680, 32
    %v683 = vpop.permute.xlu0 %682
    %v685 = vmul.f32 %v678, %v683
    %687 = vrot.lane.b32.xlu0 %v685, 64
    %v688 = vpop.permute.xlu0 %687
    %v690 = vadd.f32 %v679, %v688
    %v691 = vtanh.pop %v690
    %v692 = vsub.f32 1.0, %v678
    %694 = vrot.lane.b32.xlu0 %v691, 96
    %v695 = vpop.permute.xlu0 %694
    %v697 = vmul.f32 %v692, %v695
    %v698 = vmul.f32 %v678, %v552
    %v699 = vadd.f32 %v697, %v698
    %701 = vrot.lane.b32.xlu0 %v699, 96
    %v702 = vpop.permute.xlu0 %701
    %v704 = vsel %vm327, %v702, %v553
    %v706 = vsel %vm329, %v704, 0
    %708 = vmatpush.msra.mxu0 0.0
    %709 = vmatpush.msra.mxu0 0.0
    %710 = vmatpush.msra.mxu0 0.0
    %711 = vmatpush.msra.mxu0 0.0
    %712 = vmatpush.msra.mxu0 0.0
    %713 = vmatpush.msra.mxu0 0.0
    %714 = vmatpush.msra.mxu0 0.0
    %715 = vmatpush.msra.mxu0 0.0
    %716 = vmatpush.msra.mxu0 %v175
    %717 = vmatpush.msra.mxu0 %v174
    %718 = vmatpush.msra.mxu0 %v173
    %719 = vmatpush.msra.mxu0 %v172
    %720 = vmatpush.msra.mxu0 %v171
    %721 = vmatpush.msra.mxu0 %v170
    %722 = vmatpush.msra.mxu0 %v169
    %723 = vmatpush.msra.mxu0 %v168
    %724 = vmatmul.f32.gmra.mxu0 %v706
    %v725 = vpop.f32.mrf.mxu0
    %v726 = vadd.f32 0.0, %v725
    %727 = vdwg.mxu0
    %v728 = vadd.f32 %v726, %v188
    %v729 = vxor.u32 %v728, 2147483648
    %v730 = vmul.f32 %v729, 1.442695
    %v731 = vpow.pop %v730
    %v732 = vadd.f32 %v731, 1.0
    %v733 = vrcp.pop %v732
    %v734 = vmul.f32 %v732, %v733
    %v735 = vsub.f32 1.0, %v734
    %v736 = vmul.f32 %v733, %v735
    %v737 = vadd.f32 %v733, %v736
    %vm738 = vweird.f32 %v732
    %vm739 = vweird.f32 %v733
    %vm740 = vmor %vm738, %vm739
    %v741 = vsel %vm740, %v733, %v737
    %v742 = vand.u32 2147483647, %v732
    %vm743 = vcmp.eq.f32.partialorder %v742, 8.507059e+37
    %v744 = vand.u32 %v732, 2147483648
    %v745 = vor.u32 1.1754944e-38, %v744
    %v746 = vsel %vm743, %v745, %v741
    %v747 = vmul.f32 1.0, %v746
    %v748 = vadd.f32 %v726, %v455
    %v749 = vadd.f32 %v726, %v459
    %751 = vrot.lane.b32.xlu0 %v749, 32
    %v752 = vpop.permute.xlu0 %751
    %v754 = vmul.f32 %v747, %v752
    %756 = vrot.lane.b32.xlu0 %v754, 64
    %v757 = vpop.permute.xlu0 %756
    %v759 = vadd.f32 %v748, %v757
    %v760 = vtanh.pop %v759
    %v761 = vsub.f32 1.0, %v747
    %763 = vrot.lane.b32.xlu0 %v760, 96
    %v764 = vpop.permute.xlu0 %763
    %v766 = vmul.f32 %v761, %v764
    %v767 = vmul.f32 %v747, %v553
    %v768 = vadd.f32 %v766, %v767
    %770 = vrot.lane.b32.xlu0 %v768, 96
    %v771 = vpop.permute.xlu0 %770
    %v772 = vsel %vm327, %v771, 0
    %774 = vmatpush.msra.mxu0 0.0
    %775 = vmatpush.msra.mxu0 0.0
    %776 = vmatpush.msra.mxu0 0.0
    %777 = vmatpush.msra.mxu0 0.0
    %778 = vmatpush.msra.mxu0 0.0
    %779 = vmatpush.msra.mxu0 0.0
    %780 = vmatpush.msra.mxu0 0.0
    %781 = vmatpush.msra.mxu0 0.0
    %782 = vmatpush.msra.mxu0 0.0
    %783 = vmatpush.msra.mxu0 0.0
    %784 = vmatpush.msra.mxu0 0.0
    %785 = vmatpush.msra.mxu0 0.0
    %786 = vmatpush.msra.mxu0 %v215
    %787 = vmatpush.msra.mxu0 %v214
    %788 = vmatpush.msra.mxu0 %v213
    %789 = vmatpush.msra.mxu0 %v212
    %790 = vmatmul.f32.gmra.mxu0 %v772
    %v791 = vpop.f32.mrf.mxu0
    %v792 = vadd.f32 %v218, %v791
    %793 = vdwg.mxu0
    %v794 = vsel %vm234, %v792, -1e+30
    %v795 = vsel %vm507, %v794, -inf
    %796 = vmax.xlane.f32.xlu0 %v795
    %v797 = vpop.xlane.xlu0 %796
    %v798 = vsub.f32 %v794, %v797
    %v799 = vmul.f32 %v798, 1.442695
    %v800 = vpow.pop %v799
    %v801 = vsel %vm507, %v800, 0.0
    %802 = vadd.xlane.f32.xlu0 %v801
    %v803 = vpop.xlane.xlu0 %802
    %v804 = vrcp.pop %v803
    %v805 = vmul.f32 %v803, %v804
    %v806 = vsub.f32 1.0, %v805
    %v807 = vmul.f32 %v804, %v806
    %v808 = vadd.f32 %v804, %v807
    %vm809 = vweird.f32 %v803
    %vm810 = vweird.f32 %v804
    %vm811 = vmor %vm809, %vm810
    %v812 = vsel %vm811, %v804, %v808
    %v813 = vand.u32 2147483647, %v803
    %vm814 = vcmp.eq.f32.partialorder %v813, 8.507059e+37
    %v815 = vand.u32 %v803, 2147483648
    %v816 = vor.u32 1.1754944e-38, %v815
    %v817 = vsel %vm814, %v816, %v812
    %v818 = vmul.f32 %v800, %v817
    %v819 = vxor.u32 %v792, 2147483648
    %v820 = vmul.f32 %v819, 1.442695
    %v821 = vpow.pop %v820
    %v822 = vadd.f32 %v821, 1.0
    %v823 = vrcp.pop %v822
    %v824 = vmul.f32 %v822, %v823
    %v825 = vsub.f32 1.0, %v824
    %v826 = vmul.f32 %v823, %v825
    %v827 = vadd.f32 %v823, %v826
    %vm828 = vweird.f32 %v822
    %vm829 = vweird.f32 %v823
    %vm830 = vmor %vm828, %vm829
    %v831 = vsel %vm830, %v823, %v827
    %v832 = vand.u32 2147483647, %v822
    %vm833 = vcmp.eq.f32.partialorder %v832, 8.507059e+37
    %v834 = vand.u32 %v822, 2147483648
    %v835 = vor.u32 1.1754944e-38, %v834
    %v836 = vsel %vm833, %v835, %v831
    %v837 = vmul.f32 1.0, %v836
    %v838 = vsel %vm231, %v837, %v818
    %v839 = vsel %vm230, %v792, %v838
    %s840 = scalar_lea.vmem [#allocation14], 4
    %841 = vst [vmem:[%s840] sm:$0xf] %v839
    %s842 = scalar_lea.vmem %s1, 8
    %v843 = vld [vmem:[%s842] sm:$0xf]
    %845 = vset.pattern.permute.xlu0 0
    %846 = vperm.xlu0 %845, %v843
    %v847 = vpop.permute.xlu0 %846
    %v849 = vmul.f32 %v847, %v222
    %v850 = vadd.f32 %v849, %v226
    %v851 = vmax.f32 %v850, 0.0
    %v852 = vsub.f32 0.0, %v851
    %v853 = vmul.f32 %v852, 1.442695
    %v854 = vpow.pop %v853
    %856 = vrot.lane.b32.xlu0 %v854, 32
    %v857 = vpop.permute.xlu0 %856
    %v859 = vmul.f32 %v630, %v857
    %v860 = vmul.f32 %v699, %v857
    %v861 = vmul.f32 %v768, %v857
    %s862 = scalar_lea.vmem [#allocation5], 8
    %v863 = vld [vmem:[%s862] sm:$0xf]
    %v864 = vsub.f32 1.0, %v863
    %v865 = vmul.f32 %v792, %v864
    %s866 = scalar_lea.vmem [#allocation2], 8
    %v867 = vld [vmem:[%s866] sm:$0xf]
    %v868 = vmul.f32 %v863, %v867
    %v869 = vadd.f32 %v865, %v868
    %871 = vrot.lane.b32.xlu0 %v859, 104
    %v872 = vpop.permute.xlu0 %871
    %v874 = vsel %vm241, %v869, %v872
    %v876 = vsel %vm243, %v874, 0
    %878 = vmatpush.msra.mxu0 0.0
    %879 = vmatpush.msra.mxu0 0.0
    %880 = vmatpush.msra.mxu0 0.0
    %881 = vmatpush.msra.mxu0 0.0
    %882 = vmatpush.msra.mxu0 0.0
    %883 = vmatpush.msra.mxu0 0.0
    %884 = vmatpush.msra.mxu0 0.0
    %885 = vmatpush.msra.mxu0 0.0
    %886 = vmatpush.msra.mxu0 0.0
    %887 = vmatpush.msra.mxu0 0.0
    %888 = vmatpush.msra.mxu0 0.0
    %889 = vmatpush.msra.mxu0 %v158
    %890 = vmatpush.msra.mxu0 %v157
    %891 = vmatpush.msra.mxu0 %v156
    %892 = vmatpush.msra.mxu0 %v155
    %893 = vmatpush.msra.mxu0 %v154
    %894 = vmatmul.f32.gmra.mxu0 %v876
    %v895 = vpop.f32.mrf.mxu0
    %v896 = vadd.f32 0.0, %v895
    %897 = vdwg.mxu0
    %v898 = vadd.f32 %v896, %v178
    %v899 = vxor.u32 %v898, 2147483648
    %v900 = vmul.f32 %v899, 1.442695
    %v901 = vpow.pop %v900
    %v902 = vadd.f32 %v901, 1.0
    %v903 = vrcp.pop %v902
    %v904 = vmul.f32 %v902, %v903
    %v905 = vsub.f32 1.0, %v904
    %v906 = vmul.f32 %v903, %v905
    %v907 = vadd.f32 %v903, %v906
    %vm908 = vweird.f32 %v902
    %vm909 = vweird.f32 %v903
    %vm910 = vmor %vm908, %vm909
    %v911 = vsel %vm910, %v903, %v907
    %v912 = vand.u32 2147483647, %v902
    %vm913 = vcmp.eq.f32.partialorder %v912, 8.507059e+37
    %v914 = vand.u32 %v902, 2147483648
    %v915 = vor.u32 1.1754944e-38, %v914
    %v916 = vsel %vm913, %v915, %v911
    %v917 = vmul.f32 1.0, %v916
    %v918 = vadd.f32 %v896, %v288
    %v919 = vadd.f32 %v896, %v292
    %921 = vrot.lane.b32.xlu0 %v919, 32
    %v922 = vpop.permute.xlu0 %921
    %v924 = vmul.f32 %v917, %v922
    %926 = vrot.lane.b32.xlu0 %v924, 64
    %v927 = vpop.permute.xlu0 %926
    %v929 = vadd.f32 %v918, %v927
    %v930 = vtanh.pop %v929
    %v931 = vsub.f32 1.0, %v917
    %933 = vrot.lane.b32.xlu0 %v930, 96
    %v934 = vpop.permute.xlu0 %933
    %v936 = vmul.f32 %v931, %v934
    %v937 = vmul.f32 %v917, %v859
    %v938 = vadd.f32 %v936, %v937
    %940 = vrot.lane.b32.xlu0 %v938, 96
    %v941 = vpop.permute.xlu0 %940
    %v943 = vsel %vm327, %v941, %v860
    %v945 = vsel %vm329, %v943, 0
    %947 = vmatpush.msra.mxu0 0.0
    %948 = vmatpush.msra.mxu0 0.0
    %949 = vmatpush.msra.mxu0 0.0
    %950 = vmatpush.msra.mxu0 0.0
    %951 = vmatpush.msra.mxu0 0.0
    %952 = vmatpush.msra.mxu0 0.0
    %953 = vmatpush.msra.mxu0 0.0
    %954 = vmatpush.msra.mxu0 0.0
    %955 = vmatpush.msra.mxu0 %v166
    %956 = vmatpush.msra.mxu0 %v165
    %957 = vmatpush.msra.mxu0 %v164
    %958 = vmatpush.msra.mxu0 %v163
    %959 = vmatpush.msra.mxu0 %v162
    %960 = vmatpush.msra.mxu0 %v161
    %961 = vmatpush.msra.mxu0 %v160
    %962 = vmatpush.msra.mxu0 %v159
    %963 = vmatmul.f32.gmra.mxu0 %v945
    %v964 = vpop.f32.mrf.mxu0
    %v965 = vadd.f32 0.0, %v964
    %966 = vdwg.mxu0
    %v967 = vadd.f32 %v965, %v183
    %v968 = vxor.u32 %v967, 2147483648
    %v969 = vmul.f32 %v968, 1.442695
    %v970 = vpow.pop %v969
    %v971 = vadd.f32 %v970, 1.0
    %v972 = vrcp.pop %v971
    %v973 = vmul.f32 %v971, %v972
    %v974 = vsub.f32 1.0, %v973
    %v975 = vmul.f32 %v972, %v974
    %v976 = vadd.f32 %v972, %v975
    %vm977 = vweird.f32 %v971
    %vm978 = vweird.f32 %v972
    %vm979 = vmor %vm977, %vm978
    %v980 = vsel %vm979, %v972, %v976
    %v981 = vand.u32 2147483647, %v971
    %vm982 = vcmp.eq.f32.partialorder %v981, 8.507059e+37
    %v983 = vand.u32 %v971, 2147483648
    %v984 = vor.u32 1.1754944e-38, %v983
    %v985 = vsel %vm982, %v984, %v980
    %v986 = vmul.f32 1.0, %v985
    %v987 = vadd.f32 %v965, %v374
    %v988 = vadd.f32 %v965, %v378
    %990 = vrot.lane.b32.xlu0 %v988, 32
    %v991 = vpop.permute.xlu0 %990
    %v993 = vmul.f32 %v986, %v991
    %995 = vrot.lane.b32.xlu0 %v993, 64
    %v996 = vpop.permute.xlu0 %995
    %v998 = vadd.f32 %v987, %v996
    %v999 = vtanh.pop %v998
    %v1000 = vsub.f32 1.0, %v986
    %1002 = vrot.lane.b32.xlu0 %v999, 96
    %v1003 = vpop.permute.xlu0 %1002
    %v1005 = vmul.f32 %v1000, %v1003
    %v1006 = vmul.f32 %v986, %v860
    %v1007 = vadd.f32 %v1005, %v1006
    %1009 = vrot.lane.b32.xlu0 %v1007, 96
    %v1010 = vpop.permute.xlu0 %1009
    %v1012 = vsel %vm327, %v1010, %v861
    %v1014 = vsel %vm329, %v1012, 0
    %1016 = vmatpush.msra.mxu0 0.0
    %1017 = vmatpush.msra.mxu0 0.0
    %1018 = vmatpush.msra.mxu0 0.0
    %1019 = vmatpush.msra.mxu0 0.0
    %1020 = vmatpush.msra.mxu0 0.0
    %1021 = vmatpush.msra.mxu0 0.0
    %1022 = vmatpush.msra.mxu0 0.0
    %1023 = vmatpush.msra.mxu0 0.0
    %1024 = vmatpush.msra.mxu0 %v175
    %1025 = vmatpush.msra.mxu0 %v174
    %1026 = vmatpush.msra.mxu0 %v173
    %1027 = vmatpush.msra.mxu0 %v172
    %1028 = vmatpush.msra.mxu0 %v171
    %1029 = vmatpush.msra.mxu0 %v170
    %1030 = vmatpush.msra.mxu0 %v169
    %1031 = vmatpush.msra.mxu0 %v168
    %1032 = vmatmul.f32.gmra.mxu0 %v1014
    %v1033 = vpop.f32.mrf.mxu0
    %v1034 = vadd.f32 0.0, %v1033
    %1035 = vdwg.mxu0
    %v1036 = vadd.f32 %v1034, %v188
    %v1037 = vxor.u32 %v1036, 2147483648
    %v1038 = vmul.f32 %v1037, 1.442695
    %v1039 = vpow.pop %v1038
    %v1040 = vadd.f32 %v1039, 1.0
    %v1041 = vrcp.pop %v1040
    %v1042 = vmul.f32 %v1040, %v1041
    %v1043 = vsub.f32 1.0, %v1042
    %v1044 = vmul.f32 %v1041, %v1043
    %v1045 = vadd.f32 %v1041, %v1044
    %vm1046 = vweird.f32 %v1040
    %vm1047 = vweird.f32 %v1041
    %vm1048 = vmor %vm1046, %vm1047
    %v1049 = vsel %vm1048, %v1041, %v1045
    %v1050 = vand.u32 2147483647, %v1040
    %vm1051 = vcmp.eq.f32.partialorder %v1050, 8.507059e+37
    %v1052 = vand.u32 %v1040, 2147483648
    %v1053 = vor.u32 1.1754944e-38, %v1052
    %v1054 = vsel %vm1051, %v1053, %v1049
    %v1055 = vmul.f32 1.0, %v1054
    %v1056 = vadd.f32 %v1034, %v455
    %v1057 = vadd.f32 %v1034, %v459
    %1059 = vrot.lane.b32.xlu0 %v1057, 32
    %v1060 = vpop.permute.xlu0 %1059
    %v1062 = vmul.f32 %v1055, %v1060
    %1064 = vrot.lane.b32.xlu0 %v1062, 64
    %v1065 = vpop.permute.xlu0 %1064
    %v1067 = vadd.f32 %v1056, %v1065
    %v1068 = vtanh.pop %v1067
    %v1069 = vsub.f32 1.0, %v1055
    %1071 = vrot.lane.b32.xlu0 %v1068, 96
    %v1072 = vpop.permute.xlu0 %1071
    %v1074 = vmul.f32 %v1069, %v1072
    %v1075 = vmul.f32 %v1055, %v861
    %v1076 = vadd.f32 %v1074, %v1075
    %1078 = vrot.lane.b32.xlu0 %v1076, 96
    %v1079 = vpop.permute.xlu0 %1078
    %v1080 = vsel %vm327, %v1079, 0
    %1082 = vmatpush.msra.mxu0 0.0
    %1083 = vmatpush.msra.mxu0 0.0
    %1084 = vmatpush.msra.mxu0 0.0
    %1085 = vmatpush.msra.mxu0 0.0
    %1086 = vmatpush.msra.mxu0 0.0
    %1087 = vmatpush.msra.mxu0 0.0
    %1088 = vmatpush.msra.mxu0 0.0
    %1089 = vmatpush.msra.mxu0 0.0
    %1090 = vmatpush.msra.mxu0 0.0
    %1091 = vmatpush.msra.mxu0 0.0
    %1092 = vmatpush.msra.mxu0 0.0
    %1093 = vmatpush.msra.mxu0 0.0
    %1094 = vmatpush.msra.mxu0 %v215
    %1095 = vmatpush.msra.mxu0 %v214
    %1096 = vmatpush.msra.mxu0 %v213
    %1097 = vmatpush.msra.mxu0 %v212
    %1098 = vmatmul.f32.gmra.mxu0 %v1080
    %v1099 = vpop.f32.mrf.mxu0
    %v1100 = vadd.f32 %v218, %v1099
    %1101 = vdwg.mxu0
    %v1102 = vsel %vm234, %v1100, -1e+30
    %v1103 = vsel %vm507, %v1102, -inf
    %1104 = vmax.xlane.f32.xlu0 %v1103
    %v1105 = vpop.xlane.xlu0 %1104
    %v1106 = vsub.f32 %v1102, %v1105
    %v1107 = vmul.f32 %v1106, 1.442695
    %v1108 = vpow.pop %v1107
    %v1109 = vsel %vm507, %v1108, 0.0
    %1110 = vadd.xlane.f32.xlu0 %v1109
    %v1111 = vpop.xlane.xlu0 %1110
    %v1112 = vrcp.pop %v1111
    %v1113 = vmul.f32 %v1111, %v1112
    %v1114 = vsub.f32 1.0, %v1113
    %v1115 = vmul.f32 %v1112, %v1114
    %v1116 = vadd.f32 %v1112, %v1115
    %vm1117 = vweird.f32 %v1111
    %vm1118 = vweird.f32 %v1112
    %vm1119 = vmor %vm1117, %vm1118
    %v1120 = vsel %vm1119, %v1112, %v1116
    %v1121 = vand.u32 2147483647, %v1111
    %vm1122 = vcmp.eq.f32.partialorder %v1121, 8.507059e+37
    %v1123 = vand.u32 %v1111, 2147483648
    %v1124 = vor.u32 1.1754944e-38, %v1123
    %v1125 = vsel %vm1122, %v1124, %v1120
    %v1126 = vmul.f32 %v1108, %v1125
    %v1127 = vxor.u32 %v1100, 2147483648
    %v1128 = vmul.f32 %v1127, 1.442695
    %v1129 = vpow.pop %v1128
    %v1130 = vadd.f32 %v1129, 1.0
    %v1131 = vrcp.pop %v1130
    %v1132 = vmul.f32 %v1130, %v1131
    %v1133 = vsub.f32 1.0, %v1132
    %v1134 = vmul.f32 %v1131, %v1133
    %v1135 = vadd.f32 %v1131, %v1134
    %vm1136 = vweird.f32 %v1130
    %vm1137 = vweird.f32 %v1131
    %vm1138 = vmor %vm1136, %vm1137
    %v1139 = vsel %vm1138, %v1131, %v1135
    %v1140 = vand.u32 2147483647, %v1130
    %vm1141 = vcmp.eq.f32.partialorder %v1140, 8.507059e+37
    %v1142 = vand.u32 %v1130, 2147483648
    %v1143 = vor.u32 1.1754944e-38, %v1142
    %v1144 = vsel %vm1141, %v1143, %v1139
    %v1145 = vmul.f32 1.0, %v1144
    %v1146 = vsel %vm231, %v1145, %v1126
    %v1147 = vsel %vm230, %v1100, %v1146
    %s1148 = scalar_lea.vmem [#allocation14], 8
    %1149 = vst [vmem:[%s1148] sm:$0xf] %v1147
    %s1150 = scalar_lea.vmem %s1, 12
    %v1151 = vld [vmem:[%s1150] sm:$0xf]
    %1153 = vset.pattern.permute.xlu0 0
    %1154 = vperm.xlu0 %1153, %v1151
    %v1155 = vpop.permute.xlu0 %1154
    %v1157 = vmul.f32 %v1155, %v222
    %v1158 = vadd.f32 %v1157, %v226
    %v1159 = vmax.f32 %v1158, 0.0
    %v1160 = vsub.f32 0.0, %v1159
    %v1161 = vmul.f32 %v1160, 1.442695
    %v1162 = vpow.pop %v1161
    %1164 = vrot.lane.b32.xlu0 %v1162, 32
    %v1165 = vpop.permute.xlu0 %1164
    %v1167 = vmul.f32 %v938, %v1165
    %v1168 = vmul.f32 %v1007, %v1165
    %v1169 = vmul.f32 %v1076, %v1165
    %s1170 = scalar_lea.vmem [#allocation5], 12
    %v1171 = vld [vmem:[%s1170] sm:$0xf]
    %v1172 = vsub.f32 1.0, %v1171
    %v1173 = vmul.f32 %v1100, %v1172
    %s1174 = scalar_lea.vmem [#allocation2], 12
    %v1175 = vld [vmem:[%s1174] sm:$0xf]
    %v1176 = vmul.f32 %v1171, %v1175
    %v1177 = vadd.f32 %v1173, %v1176
    %1179 = vrot.lane.b32.xlu0 %v1167, 104
    %v1180 = vpop.permute.xlu0 %1179
    %v1182 = vsel %vm241, %v1177, %v1180
    %v1184 = vsel %vm243, %v1182, 0
    %1186 = vmatpush.msra.mxu0 0.0
    %1187 = vmatpush.msra.mxu0 0.0
    %1188 = vmatpush.msra.mxu0 0.0
    %1189 = vmatpush.msra.mxu0 0.0
    %1190 = vmatpush.msra.mxu0 0.0
    %1191 = vmatpush.msra.mxu0 0.0
    %1192 = vmatpush.msra.mxu0 0.0
    %1193 = vmatpush.msra.mxu0 0.0
    %1194 = vmatpush.msra.mxu0 0.0
    %1195 = vmatpush.msra.mxu0 0.0
    %1196 = vmatpush.msra.mxu0 0.0
    %1197 = vmatpush.msra.mxu0 %v158
    %1198 = vmatpush.msra.mxu0 %v157
    %1199 = vmatpush.msra.mxu0 %v156
    %1200 = vmatpush.msra.mxu0 %v155
    %1201 = vmatpush.msra.mxu0 %v154
    %1202 = vmatmul.f32.gmra.mxu0 %v1184
    %v1203 = vpop.f32.mrf.mxu0
    %v1204 = vadd.f32 0.0, %v1203
    %1205 = vdwg.mxu0
    %v1206 = vadd.f32 %v1204, %v178
    %v1207 = vxor.u32 %v1206, 2147483648
    %v1208 = vmul.f32 %v1207, 1.442695
    %v1209 = vpow.pop %v1208
    %v1210 = vadd.f32 %v1209, 1.0
    %v1211 = vrcp.pop %v1210
    %v1212 = vmul.f32 %v1210, %v1211
    %v1213 = vsub.f32 1.0, %v1212
    %v1214 = vmul.f32 %v1211, %v1213
    %v1215 = vadd.f32 %v1211, %v1214
    %vm1216 = vweird.f32 %v1210
    %vm1217 = vweird.f32 %v1211
    %vm1218 = vmor %vm1216, %vm1217
    %v1219 = vsel %vm1218, %v1211, %v1215
    %v1220 = vand.u32 2147483647, %v1210
    %vm1221 = vcmp.eq.f32.partialorder %v1220, 8.507059e+37
    %v1222 = vand.u32 %v1210, 2147483648
    %v1223 = vor.u32 1.1754944e-38, %v1222
    %v1224 = vsel %vm1221, %v1223, %v1219
    %v1225 = vmul.f32 1.0, %v1224
    %v1226 = vadd.f32 %v1204, %v288
    %v1227 = vadd.f32 %v1204, %v292
    %1229 = vrot.lane.b32.xlu0 %v1227, 32
    %v1230 = vpop.permute.xlu0 %1229
    %v1232 = vmul.f32 %v1225, %v1230
    %1234 = vrot.lane.b32.xlu0 %v1232, 64
    %v1235 = vpop.permute.xlu0 %1234
    %v1237 = vadd.f32 %v1226, %v1235
    %v1238 = vtanh.pop %v1237
    %v1239 = vsub.f32 1.0, %v1225
    %1241 = vrot.lane.b32.xlu0 %v1238, 96
    %v1242 = vpop.permute.xlu0 %1241
    %v1244 = vmul.f32 %v1239, %v1242
    %v1245 = vmul.f32 %v1225, %v1167
    %v1246 = vadd.f32 %v1244, %v1245
    %1248 = vrot.lane.b32.xlu0 %v1246, 96
    %v1249 = vpop.permute.xlu0 %1248
    %v1251 = vsel %vm327, %v1249, %v1168
    %v1253 = vsel %vm329, %v1251, 0
    %1255 = vmatpush.msra.mxu0 0.0
    %1256 = vmatpush.msra.mxu0 0.0
    %1257 = vmatpush.msra.mxu0 0.0
    %1258 = vmatpush.msra.mxu0 0.0
    %1259 = vmatpush.msra.mxu0 0.0
    %1260 = vmatpush.msra.mxu0 0.0
    %1261 = vmatpush.msra.mxu0 0.0
    %1262 = vmatpush.msra.mxu0 0.0
    %1263 = vmatpush.msra.mxu0 %v166
    %1264 = vmatpush.msra.mxu0 %v165
    %1265 = vmatpush.msra.mxu0 %v164
    %1266 = vmatpush.msra.mxu0 %v163
    %1267 = vmatpush.msra.mxu0 %v162
    %1268 = vmatpush.msra.mxu0 %v161
    %1269 = vmatpush.msra.mxu0 %v160
    %1270 = vmatpush.msra.mxu0 %v159
    %1271 = vmatmul.f32.gmra.mxu0 %v1253
    %v1272 = vpop.f32.mrf.mxu0
    %v1273 = vadd.f32 0.0, %v1272
    %1274 = vdwg.mxu0
    %v1275 = vadd.f32 %v1273, %v183
    %v1276 = vxor.u32 %v1275, 2147483648
    %v1277 = vmul.f32 %v1276, 1.442695
    %v1278 = vpow.pop %v1277
    %v1279 = vadd.f32 %v1278, 1.0
    %v1280 = vrcp.pop %v1279
    %v1281 = vmul.f32 %v1279, %v1280
    %v1282 = vsub.f32 1.0, %v1281
    %v1283 = vmul.f32 %v1280, %v1282
    %v1284 = vadd.f32 %v1280, %v1283
    %vm1285 = vweird.f32 %v1279
    %vm1286 = vweird.f32 %v1280
    %vm1287 = vmor %vm1285, %vm1286
    %v1288 = vsel %vm1287, %v1280, %v1284
    %v1289 = vand.u32 2147483647, %v1279
    %vm1290 = vcmp.eq.f32.partialorder %v1289, 8.507059e+37
    %v1291 = vand.u32 %v1279, 2147483648
    %v1292 = vor.u32 1.1754944e-38, %v1291
    %v1293 = vsel %vm1290, %v1292, %v1288
    %v1294 = vmul.f32 1.0, %v1293
    %v1295 = vadd.f32 %v1273, %v374
    %v1296 = vadd.f32 %v1273, %v378
    %1298 = vrot.lane.b32.xlu0 %v1296, 32
    %v1299 = vpop.permute.xlu0 %1298
    %v1301 = vmul.f32 %v1294, %v1299
    %1303 = vrot.lane.b32.xlu0 %v1301, 64
    %v1304 = vpop.permute.xlu0 %1303
    %v1306 = vadd.f32 %v1295, %v1304
    %v1307 = vtanh.pop %v1306
    %v1308 = vsub.f32 1.0, %v1294
    %1310 = vrot.lane.b32.xlu0 %v1307, 96
    %v1311 = vpop.permute.xlu0 %1310
    %v1313 = vmul.f32 %v1308, %v1311
    %v1314 = vmul.f32 %v1294, %v1168
    %v1315 = vadd.f32 %v1313, %v1314
    %1317 = vrot.lane.b32.xlu0 %v1315, 96
    %v1318 = vpop.permute.xlu0 %1317
    %v1320 = vsel %vm327, %v1318, %v1169
    %v1322 = vsel %vm329, %v1320, 0
    %1324 = vmatpush.msra.mxu0 0.0
    %1325 = vmatpush.msra.mxu0 0.0
    %1326 = vmatpush.msra.mxu0 0.0
    %1327 = vmatpush.msra.mxu0 0.0
    %1328 = vmatpush.msra.mxu0 0.0
    %1329 = vmatpush.msra.mxu0 0.0
    %1330 = vmatpush.msra.mxu0 0.0
    %1331 = vmatpush.msra.mxu0 0.0
    %1332 = vmatpush.msra.mxu0 %v175
    %1333 = vmatpush.msra.mxu0 %v174
    %1334 = vmatpush.msra.mxu0 %v173
    %1335 = vmatpush.msra.mxu0 %v172
    %1336 = vmatpush.msra.mxu0 %v171
    %1337 = vmatpush.msra.mxu0 %v170
    %1338 = vmatpush.msra.mxu0 %v169
    %1339 = vmatpush.msra.mxu0 %v168
    %1340 = vmatmul.f32.gmra.mxu0 %v1322
    %v1341 = vpop.f32.mrf.mxu0
    %v1342 = vadd.f32 0.0, %v1341
    %1343 = vdwg.mxu0
    %v1344 = vadd.f32 %v1342, %v188
    %v1345 = vxor.u32 %v1344, 2147483648
    %v1346 = vmul.f32 %v1345, 1.442695
    %v1347 = vpow.pop %v1346
    %v1348 = vadd.f32 %v1347, 1.0
    %v1349 = vrcp.pop %v1348
    %v1350 = vmul.f32 %v1348, %v1349
    %v1351 = vsub.f32 1.0, %v1350
    %v1352 = vmul.f32 %v1349, %v1351
    %v1353 = vadd.f32 %v1349, %v1352
    %vm1354 = vweird.f32 %v1348
    %vm1355 = vweird.f32 %v1349
    %vm1356 = vmor %vm1354, %vm1355
    %v1357 = vsel %vm1356, %v1349, %v1353
    %v1358 = vand.u32 2147483647, %v1348
    %vm1359 = vcmp.eq.f32.partialorder %v1358, 8.507059e+37
    %v1360 = vand.u32 %v1348, 2147483648
    %v1361 = vor.u32 1.1754944e-38, %v1360
    %v1362 = vsel %vm1359, %v1361, %v1357
    %v1363 = vmul.f32 1.0, %v1362
    %v1364 = vadd.f32 %v1342, %v455
    %v1365 = vadd.f32 %v1342, %v459
    %1367 = vrot.lane.b32.xlu0 %v1365, 32
    %v1368 = vpop.permute.xlu0 %1367
    %v1370 = vmul.f32 %v1363, %v1368
    %1372 = vrot.lane.b32.xlu0 %v1370, 64
    %v1373 = vpop.permute.xlu0 %1372
    %v1375 = vadd.f32 %v1364, %v1373
    %v1376 = vtanh.pop %v1375
    %v1377 = vsub.f32 1.0, %v1363
    %1379 = vrot.lane.b32.xlu0 %v1376, 96
    %v1380 = vpop.permute.xlu0 %1379
    %v1382 = vmul.f32 %v1377, %v1380
    %v1383 = vmul.f32 %v1363, %v1169
    %v1384 = vadd.f32 %v1382, %v1383
    %1386 = vrot.lane.b32.xlu0 %v1384, 96
    %v1387 = vpop.permute.xlu0 %1386
    %v1388 = vsel %vm327, %v1387, 0
    %1390 = vmatpush.msra.mxu0 0.0
    %1391 = vmatpush.msra.mxu0 0.0
    %1392 = vmatpush.msra.mxu0 0.0
    %1393 = vmatpush.msra.mxu0 0.0
    %1394 = vmatpush.msra.mxu0 0.0
    %1395 = vmatpush.msra.mxu0 0.0
    %1396 = vmatpush.msra.mxu0 0.0
    %1397 = vmatpush.msra.mxu0 0.0
    %1398 = vmatpush.msra.mxu0 0.0
    %1399 = vmatpush.msra.mxu0 0.0
    %1400 = vmatpush.msra.mxu0 0.0
    %1401 = vmatpush.msra.mxu0 0.0
    %1402 = vmatpush.msra.mxu0 %v215
    %1403 = vmatpush.msra.mxu0 %v214
    %1404 = vmatpush.msra.mxu0 %v213
    %1405 = vmatpush.msra.mxu0 %v212
    %1406 = vmatmul.f32.gmra.mxu0 %v1388
    %v1407 = vpop.f32.mrf.mxu0
    %v1408 = vadd.f32 %v218, %v1407
    %1409 = vdwg.mxu0
    %v1410 = vsel %vm234, %v1408, -1e+30
    %v1411 = vsel %vm507, %v1410, -inf
    %1412 = vmax.xlane.f32.xlu0 %v1411
    %v1413 = vpop.xlane.xlu0 %1412
    %v1414 = vsub.f32 %v1410, %v1413
    %v1415 = vmul.f32 %v1414, 1.442695
    %v1416 = vpow.pop %v1415
    %v1417 = vsel %vm507, %v1416, 0.0
    %1418 = vadd.xlane.f32.xlu0 %v1417
    %v1419 = vpop.xlane.xlu0 %1418
    %v1420 = vrcp.pop %v1419
    %v1421 = vmul.f32 %v1419, %v1420
    %v1422 = vsub.f32 1.0, %v1421
    %v1423 = vmul.f32 %v1420, %v1422
    %v1424 = vadd.f32 %v1420, %v1423
    %vm1425 = vweird.f32 %v1419
    %vm1426 = vweird.f32 %v1420
    %vm1427 = vmor %vm1425, %vm1426
    %v1428 = vsel %vm1427, %v1420, %v1424
    %v1429 = vand.u32 2147483647, %v1419
    %vm1430 = vcmp.eq.f32.partialorder %v1429, 8.507059e+37
    %v1431 = vand.u32 %v1419, 2147483648
    %v1432 = vor.u32 1.1754944e-38, %v1431
    %v1433 = vsel %vm1430, %v1432, %v1428
    %v1434 = vmul.f32 %v1416, %v1433
    %v1435 = vxor.u32 %v1408, 2147483648
    %v1436 = vmul.f32 %v1435, 1.442695
    %v1437 = vpow.pop %v1436
    %v1438 = vadd.f32 %v1437, 1.0
    %v1439 = vrcp.pop %v1438
    %v1440 = vmul.f32 %v1438, %v1439
    %v1441 = vsub.f32 1.0, %v1440
    %v1442 = vmul.f32 %v1439, %v1441
    %v1443 = vadd.f32 %v1439, %v1442
    %vm1444 = vweird.f32 %v1438
    %vm1445 = vweird.f32 %v1439
    %vm1446 = vmor %vm1444, %vm1445
    %v1447 = vsel %vm1446, %v1439, %v1443
    %v1448 = vand.u32 2147483647, %v1438
    %vm1449 = vcmp.eq.f32.partialorder %v1448, 8.507059e+37
    %v1450 = vand.u32 %v1438, 2147483648
    %v1451 = vor.u32 1.1754944e-38, %v1450
    %v1452 = vsel %vm1449, %v1451, %v1447
    %v1453 = vmul.f32 1.0, %v1452
    %v1454 = vsel %vm231, %v1453, %v1434
    %v1455 = vsel %vm230, %v1408, %v1454
    %s1456 = scalar_lea.vmem [#allocation14], 12
    %1457 = vst [vmem:[%s1456] sm:$0xf] %v1455
    %s1458 = scalar_lea.vmem %s1, 16
    %v1459 = vld [vmem:[%s1458] sm:$0xf]
    %1461 = vset.pattern.permute.xlu0 0
    %1462 = vperm.xlu0 %1461, %v1459
    %v1463 = vpop.permute.xlu0 %1462
    %v1465 = vmul.f32 %v1463, %v222
    %v1466 = vadd.f32 %v1465, %v226
    %v1467 = vmax.f32 %v1466, 0.0
    %v1468 = vsub.f32 0.0, %v1467
    %v1469 = vmul.f32 %v1468, 1.442695
    %v1470 = vpow.pop %v1469
    %1472 = vrot.lane.b32.xlu0 %v1470, 32
    %v1473 = vpop.permute.xlu0 %1472
    %v1475 = vmul.f32 %v1246, %v1473
    %v1476 = vmul.f32 %v1315, %v1473
    %v1477 = vmul.f32 %v1384, %v1473
    %s1478 = scalar_lea.vmem [#allocation5], 16
    %v1479 = vld [vmem:[%s1478] sm:$0xf]
    %v1480 = vsub.f32 1.0, %v1479
    %v1481 = vmul.f32 %v1408, %v1480
    %s1482 = scalar_lea.vmem [#allocation2], 16
    %v1483 = vld [vmem:[%s1482] sm:$0xf]
    %v1484 = vmul.f32 %v1479, %v1483
    %v1485 = vadd.f32 %v1481, %v1484
    %1487 = vrot.lane.b32.xlu0 %v1475, 104
    %v1488 = vpop.permute.xlu0 %1487
    %v1490 = vsel %vm241, %v1485, %v1488
    %v1492 = vsel %vm243, %v1490, 0
    %1494 = vmatpush.msra.mxu0 0.0
    %1495 = vmatpush.msra.mxu0 0.0
    %1496 = vmatpush.msra.mxu0 0.0
    %1497 = vmatpush.msra.mxu0 0.0
    %1498 = vmatpush.msra.mxu0 0.0
    %1499 = vmatpush.msra.mxu0 0.0
    %1500 = vmatpush.msra.mxu0 0.0
    %1501 = vmatpush.msra.mxu0 0.0
    %1502 = vmatpush.msra.mxu0 0.0
    %1503 = vmatpush.msra.mxu0 0.0
    %1504 = vmatpush.msra.mxu0 0.0
    %1505 = vmatpush.msra.mxu0 %v158
    %1506 = vmatpush.msra.mxu0 %v157
    %1507 = vmatpush.msra.mxu0 %v156
    %1508 = vmatpush.msra.mxu0 %v155
    %1509 = vmatpush.msra.mxu0 %v154
    %1510 = vmatmul.f32.gmra.mxu0 %v1492
    %v1511 = vpop.f32.mrf.mxu0
    %v1512 = vadd.f32 0.0, %v1511
    %1513 = vdwg.mxu0
    %v1514 = vadd.f32 %v1512, %v178
    %v1515 = vxor.u32 %v1514, 2147483648
    %v1516 = vmul.f32 %v1515, 1.442695
    %v1517 = vpow.pop %v1516
    %v1518 = vadd.f32 %v1517, 1.0
    %v1519 = vrcp.pop %v1518
    %v1520 = vmul.f32 %v1518, %v1519
    %v1521 = vsub.f32 1.0, %v1520
    %v1522 = vmul.f32 %v1519, %v1521
    %v1523 = vadd.f32 %v1519, %v1522
    %vm1524 = vweird.f32 %v1518
    %vm1525 = vweird.f32 %v1519
    %vm1526 = vmor %vm1524, %vm1525
    %v1527 = vsel %vm1526, %v1519, %v1523
    %v1528 = vand.u32 2147483647, %v1518
    %vm1529 = vcmp.eq.f32.partialorder %v1528, 8.507059e+37
    %v1530 = vand.u32 %v1518, 2147483648
    %v1531 = vor.u32 1.1754944e-38, %v1530
    %v1532 = vsel %vm1529, %v1531, %v1527
    %v1533 = vmul.f32 1.0, %v1532
    %v1534 = vadd.f32 %v1512, %v288
    %v1535 = vadd.f32 %v1512, %v292
    %1537 = vrot.lane.b32.xlu0 %v1535, 32
    %v1538 = vpop.permute.xlu0 %1537
    %v1540 = vmul.f32 %v1533, %v1538
    %1542 = vrot.lane.b32.xlu0 %v1540, 64
    %v1543 = vpop.permute.xlu0 %1542
    %v1545 = vadd.f32 %v1534, %v1543
    %v1546 = vtanh.pop %v1545
    %v1547 = vsub.f32 1.0, %v1533
    %1549 = vrot.lane.b32.xlu0 %v1546, 96
    %v1550 = vpop.permute.xlu0 %1549
    %v1552 = vmul.f32 %v1547, %v1550
    %v1553 = vmul.f32 %v1533, %v1475
    %v1554 = vadd.f32 %v1552, %v1553
    %1556 = vrot.lane.b32.xlu0 %v1554, 96
    %v1557 = vpop.permute.xlu0 %1556
    %v1559 = vsel %vm327, %v1557, %v1476
    %v1561 = vsel %vm329, %v1559, 0
    %1563 = vmatpush.msra.mxu0 0.0
    %1564 = vmatpush.msra.mxu0 0.0
    %1565 = vmatpush.msra.mxu0 0.0
    %1566 = vmatpush.msra.mxu0 0.0
    %1567 = vmatpush.msra.mxu0 0.0
    %1568 = vmatpush.msra.mxu0 0.0
    %1569 = vmatpush.msra.mxu0 0.0
    %1570 = vmatpush.msra.mxu0 0.0
    %1571 = vmatpush.msra.mxu0 %v166
    %1572 = vmatpush.msra.mxu0 %v165
    %1573 = vmatpush.msra.mxu0 %v164
    %1574 = vmatpush.msra.mxu0 %v163
    %1575 = vmatpush.msra.mxu0 %v162
    %1576 = vmatpush.msra.mxu0 %v161
    %1577 = vmatpush.msra.mxu0 %v160
    %1578 = vmatpush.msra.mxu0 %v159
    %1579 = vmatmul.f32.gmra.mxu0 %v1561
    %v1580 = vpop.f32.mrf.mxu0
    %v1581 = vadd.f32 0.0, %v1580
    %1582 = vdwg.mxu0
    %v1583 = vadd.f32 %v1581, %v183
    %v1584 = vxor.u32 %v1583, 2147483648
    %v1585 = vmul.f32 %v1584, 1.442695
    %v1586 = vpow.pop %v1585
    %v1587 = vadd.f32 %v1586, 1.0
    %v1588 = vrcp.pop %v1587
    %v1589 = vmul.f32 %v1587, %v1588
    %v1590 = vsub.f32 1.0, %v1589
    %v1591 = vmul.f32 %v1588, %v1590
    %v1592 = vadd.f32 %v1588, %v1591
    %vm1593 = vweird.f32 %v1587
    %vm1594 = vweird.f32 %v1588
    %vm1595 = vmor %vm1593, %vm1594
    %v1596 = vsel %vm1595, %v1588, %v1592
    %v1597 = vand.u32 2147483647, %v1587
    %vm1598 = vcmp.eq.f32.partialorder %v1597, 8.507059e+37
    %v1599 = vand.u32 %v1587, 2147483648
    %v1600 = vor.u32 1.1754944e-38, %v1599
    %v1601 = vsel %vm1598, %v1600, %v1596
    %v1602 = vmul.f32 1.0, %v1601
    %v1603 = vadd.f32 %v1581, %v374
    %v1604 = vadd.f32 %v1581, %v378
    %1606 = vrot.lane.b32.xlu0 %v1604, 32
    %v1607 = vpop.permute.xlu0 %1606
    %v1609 = vmul.f32 %v1602, %v1607
    %1611 = vrot.lane.b32.xlu0 %v1609, 64
    %v1612 = vpop.permute.xlu0 %1611
    %v1614 = vadd.f32 %v1603, %v1612
    %v1615 = vtanh.pop %v1614
    %v1616 = vsub.f32 1.0, %v1602
    %1618 = vrot.lane.b32.xlu0 %v1615, 96
    %v1619 = vpop.permute.xlu0 %1618
    %v1621 = vmul.f32 %v1616, %v1619
    %v1622 = vmul.f32 %v1602, %v1476
    %v1623 = vadd.f32 %v1621, %v1622
    %1625 = vrot.lane.b32.xlu0 %v1623, 96
    %v1626 = vpop.permute.xlu0 %1625
    %v1628 = vsel %vm327, %v1626, %v1477
    %v1630 = vsel %vm329, %v1628, 0
    %1632 = vmatpush.msra.mxu0 0.0
    %1633 = vmatpush.msra.mxu0 0.0
    %1634 = vmatpush.msra.mxu0 0.0
    %1635 = vmatpush.msra.mxu0 0.0
    %1636 = vmatpush.msra.mxu0 0.0
    %1637 = vmatpush.msra.mxu0 0.0
    %1638 = vmatpush.msra.mxu0 0.0
    %1639 = vmatpush.msra.mxu0 0.0
    %1640 = vmatpush.msra.mxu0 %v175
    %1641 = vmatpush.msra.mxu0 %v174
    %1642 = vmatpush.msra.mxu0 %v173
    %1643 = vmatpush.msra.mxu0 %v172
    %1644 = vmatpush.msra.mxu0 %v171
    %1645 = vmatpush.msra.mxu0 %v170
    %1646 = vmatpush.msra.mxu0 %v169
    %1647 = vmatpush.msra.mxu0 %v168
    %1648 = vmatmul.f32.gmra.mxu0 %v1630
    %v1649 = vpop.f32.mrf.mxu0
    %v1650 = vadd.f32 0.0, %v1649
    %1651 = vdwg.mxu0
    %v1652 = vadd.f32 %v1650, %v188
    %v1653 = vxor.u32 %v1652, 2147483648
    %v1654 = vmul.f32 %v1653, 1.442695
    %v1655 = vpow.pop %v1654
    %v1656 = vadd.f32 %v1655, 1.0
    %v1657 = vrcp.pop %v1656
    %v1658 = vmul.f32 %v1656, %v1657
    %v1659 = vsub.f32 1.0, %v1658
    %v1660 = vmul.f32 %v1657, %v1659
    %v1661 = vadd.f32 %v1657, %v1660
    %vm1662 = vweird.f32 %v1656
    %vm1663 = vweird.f32 %v1657
    %vm1664 = vmor %vm1662, %vm1663
    %v1665 = vsel %vm1664, %v1657, %v1661
    %v1666 = vand.u32 2147483647, %v1656
    %vm1667 = vcmp.eq.f32.partialorder %v1666, 8.507059e+37
    %v1668 = vand.u32 %v1656, 2147483648
    %v1669 = vor.u32 1.1754944e-38, %v1668
    %v1670 = vsel %vm1667, %v1669, %v1665
    %v1671 = vmul.f32 1.0, %v1670
    %v1672 = vadd.f32 %v1650, %v455
    %v1673 = vadd.f32 %v1650, %v459
    %1675 = vrot.lane.b32.xlu0 %v1673, 32
    %v1676 = vpop.permute.xlu0 %1675
    %v1678 = vmul.f32 %v1671, %v1676
    %1680 = vrot.lane.b32.xlu0 %v1678, 64
    %v1681 = vpop.permute.xlu0 %1680
    %v1683 = vadd.f32 %v1672, %v1681
    %v1684 = vtanh.pop %v1683
    %v1685 = vsub.f32 1.0, %v1671
    %1687 = vrot.lane.b32.xlu0 %v1684, 96
    %v1688 = vpop.permute.xlu0 %1687
    %v1690 = vmul.f32 %v1685, %v1688
    %v1691 = vmul.f32 %v1671, %v1477
    %v1692 = vadd.f32 %v1690, %v1691
    %1694 = vrot.lane.b32.xlu0 %v1692, 96
    %v1695 = vpop.permute.xlu0 %1694
    %v1696 = vsel %vm327, %v1695, 0
    %1698 = vmatpush.msra.mxu0 0.0
    %1699 = vmatpush.msra.mxu0 0.0
    %1700 = vmatpush.msra.mxu0 0.0
    %1701 = vmatpush.msra.mxu0 0.0
    %1702 = vmatpush.msra.mxu0 0.0
    %1703 = vmatpush.msra.mxu0 0.0
    %1704 = vmatpush.msra.mxu0 0.0
    %1705 = vmatpush.msra.mxu0 0.0
    %1706 = vmatpush.msra.mxu0 0.0
    %1707 = vmatpush.msra.mxu0 0.0
    %1708 = vmatpush.msra.mxu0 0.0
    %1709 = vmatpush.msra.mxu0 0.0
    %1710 = vmatpush.msra.mxu0 %v215
    %1711 = vmatpush.msra.mxu0 %v214
    %1712 = vmatpush.msra.mxu0 %v213
    %1713 = vmatpush.msra.mxu0 %v212
    %1714 = vmatmul.f32.gmra.mxu0 %v1696
    %v1715 = vpop.f32.mrf.mxu0
    %v1716 = vadd.f32 %v218, %v1715
    %1717 = vdwg.mxu0
    %v1718 = vsel %vm234, %v1716, -1e+30
    %v1719 = vsel %vm507, %v1718, -inf
    %1720 = vmax.xlane.f32.xlu0 %v1719
    %v1721 = vpop.xlane.xlu0 %1720
    %v1722 = vsub.f32 %v1718, %v1721
    %v1723 = vmul.f32 %v1722, 1.442695
    %v1724 = vpow.pop %v1723
    %v1725 = vsel %vm507, %v1724, 0.0
    %1726 = vadd.xlane.f32.xlu0 %v1725
    %v1727 = vpop.xlane.xlu0 %1726
    %v1728 = vrcp.pop %v1727
    %v1729 = vmul.f32 %v1727, %v1728
    %v1730 = vsub.f32 1.0, %v1729
    %v1731 = vmul.f32 %v1728, %v1730
    %v1732 = vadd.f32 %v1728, %v1731
    %vm1733 = vweird.f32 %v1727
    %vm1734 = vweird.f32 %v1728
    %vm1735 = vmor %vm1733, %vm1734
    %v1736 = vsel %vm1735, %v1728, %v1732
    %v1737 = vand.u32 2147483647, %v1727
    %vm1738 = vcmp.eq.f32.partialorder %v1737, 8.507059e+37
    %v1739 = vand.u32 %v1727, 2147483648
    %v1740 = vor.u32 1.1754944e-38, %v1739
    %v1741 = vsel %vm1738, %v1740, %v1736
    %v1742 = vmul.f32 %v1724, %v1741
    %v1743 = vxor.u32 %v1716, 2147483648
    %v1744 = vmul.f32 %v1743, 1.442695
    %v1745 = vpow.pop %v1744
    %v1746 = vadd.f32 %v1745, 1.0
    %v1747 = vrcp.pop %v1746
    %v1748 = vmul.f32 %v1746, %v1747
    %v1749 = vsub.f32 1.0, %v1748
    %v1750 = vmul.f32 %v1747, %v1749
    %v1751 = vadd.f32 %v1747, %v1750
    %vm1752 = vweird.f32 %v1746
    %vm1753 = vweird.f32 %v1747
    %vm1754 = vmor %vm1752, %vm1753
    %v1755 = vsel %vm1754, %v1747, %v1751
    %v1756 = vand.u32 2147483647, %v1746
    %vm1757 = vcmp.eq.f32.partialorder %v1756, 8.507059e+37
    %v1758 = vand.u32 %v1746, 2147483648
    %v1759 = vor.u32 1.1754944e-38, %v1758
    %v1760 = vsel %vm1757, %v1759, %v1755
    %v1761 = vmul.f32 1.0, %v1760
    %v1762 = vsel %vm231, %v1761, %v1742
    %v1763 = vsel %vm230, %v1716, %v1762
    %s1764 = scalar_lea.vmem [#allocation14], 16
    %1765 = vst [vmem:[%s1764] sm:$0xf] %v1763
    %s1766 = scalar_lea.vmem %s1, 20
    %v1767 = vld [vmem:[%s1766] sm:$0xf]
    %1769 = vset.pattern.permute.xlu0 0
    %1770 = vperm.xlu0 %1769, %v1767
    %v1771 = vpop.permute.xlu0 %1770
    %v1773 = vmul.f32 %v1771, %v222
    %v1774 = vadd.f32 %v1773, %v226
    %v1775 = vmax.f32 %v1774, 0.0
    %v1776 = vsub.f32 0.0, %v1775
    %v1777 = vmul.f32 %v1776, 1.442695
    %v1778 = vpow.pop %v1777
    %1780 = vrot.lane.b32.xlu0 %v1778, 32
    %v1781 = vpop.permute.xlu0 %1780
    %v1783 = vmul.f32 %v1554, %v1781
    %v1784 = vmul.f32 %v1623, %v1781
    %v1785 = vmul.f32 %v1692, %v1781
    %s1786 = scalar_lea.vmem [#allocation5], 20
    %v1787 = vld [vmem:[%s1786] sm:$0xf]
    %v1788 = vsub.f32 1.0, %v1787
    %v1789 = vmul.f32 %v1716, %v1788
    %s1790 = scalar_lea.vmem [#allocation2], 20
    %v1791 = vld [vmem:[%s1790] sm:$0xf]
    %v1792 = vmul.f32 %v1787, %v1791
    %v1793 = vadd.f32 %v1789, %v1792
    %1795 = vrot.lane.b32.xlu0 %v1783, 104
    %v1796 = vpop.permute.xlu0 %1795
    %v1798 = vsel %vm241, %v1793, %v1796
    %v1800 = vsel %vm243, %v1798, 0
    %1802 = vmatpush.msra.mxu0 0.0
    %1803 = vmatpush.msra.mxu0 0.0
    %1804 = vmatpush.msra.mxu0 0.0
    %1805 = vmatpush.msra.mxu0 0.0
    %1806 = vmatpush.msra.mxu0 0.0
    %1807 = vmatpush.msra.mxu0 0.0
    %1808 = vmatpush.msra.mxu0 0.0
    %1809 = vmatpush.msra.mxu0 0.0
    %1810 = vmatpush.msra.mxu0 0.0
    %1811 = vmatpush.msra.mxu0 0.0
    %1812 = vmatpush.msra.mxu0 0.0
    %1813 = vmatpush.msra.mxu0 %v158
    %1814 = vmatpush.msra.mxu0 %v157
    %1815 = vmatpush.msra.mxu0 %v156
    %1816 = vmatpush.msra.mxu0 %v155
    %1817 = vmatpush.msra.mxu0 %v154
    %1818 = vmatmul.f32.gmra.mxu0 %v1800
    %v1819 = vpop.f32.mrf.mxu0
    %v1820 = vadd.f32 0.0, %v1819
    %1821 = vdwg.mxu0
    %v1822 = vadd.f32 %v1820, %v178
    %v1823 = vxor.u32 %v1822, 2147483648
    %v1824 = vmul.f32 %v1823, 1.442695
    %v1825 = vpow.pop %v1824
    %v1826 = vadd.f32 %v1825, 1.0
    %v1827 = vrcp.pop %v1826
    %v1828 = vmul.f32 %v1826, %v1827
    %v1829 = vsub.f32 1.0, %v1828
    %v1830 = vmul.f32 %v1827, %v1829
    %v1831 = vadd.f32 %v1827, %v1830
    %vm1832 = vweird.f32 %v1826
    %vm1833 = vweird.f32 %v1827
    %vm1834 = vmor %vm1832, %vm1833
    %v1835 = vsel %vm1834, %v1827, %v1831
    %v1836 = vand.u32 2147483647, %v1826
    %vm1837 = vcmp.eq.f32.partialorder %v1836, 8.507059e+37
    %v1838 = vand.u32 %v1826, 2147483648
    %v1839 = vor.u32 1.1754944e-38, %v1838
    %v1840 = vsel %vm1837, %v1839, %v1835
    %v1841 = vmul.f32 1.0, %v1840
    %v1842 = vadd.f32 %v1820, %v288
    %v1843 = vadd.f32 %v1820, %v292
    %1845 = vrot.lane.b32.xlu0 %v1843, 32
    %v1846 = vpop.permute.xlu0 %1845
    %v1848 = vmul.f32 %v1841, %v1846
    %1850 = vrot.lane.b32.xlu0 %v1848, 64
    %v1851 = vpop.permute.xlu0 %1850
    %v1853 = vadd.f32 %v1842, %v1851
    %v1854 = vtanh.pop %v1853
    %v1855 = vsub.f32 1.0, %v1841
    %1857 = vrot.lane.b32.xlu0 %v1854, 96
    %v1858 = vpop.permute.xlu0 %1857
    %v1860 = vmul.f32 %v1855, %v1858
    %v1861 = vmul.f32 %v1841, %v1783
    %v1862 = vadd.f32 %v1860, %v1861
    %1864 = vrot.lane.b32.xlu0 %v1862, 96
    %v1865 = vpop.permute.xlu0 %1864
    %v1867 = vsel %vm327, %v1865, %v1784
    %v1869 = vsel %vm329, %v1867, 0
    %1871 = vmatpush.msra.mxu0 0.0
    %1872 = vmatpush.msra.mxu0 0.0
    %1873 = vmatpush.msra.mxu0 0.0
    %1874 = vmatpush.msra.mxu0 0.0
    %1875 = vmatpush.msra.mxu0 0.0
    %1876 = vmatpush.msra.mxu0 0.0
    %1877 = vmatpush.msra.mxu0 0.0
    %1878 = vmatpush.msra.mxu0 0.0
    %1879 = vmatpush.msra.mxu0 %v166
    %1880 = vmatpush.msra.mxu0 %v165
    %1881 = vmatpush.msra.mxu0 %v164
    %1882 = vmatpush.msra.mxu0 %v163
    %1883 = vmatpush.msra.mxu0 %v162
    %1884 = vmatpush.msra.mxu0 %v161
    %1885 = vmatpush.msra.mxu0 %v160
    %1886 = vmatpush.msra.mxu0 %v159
    %1887 = vmatmul.f32.gmra.mxu0 %v1869
    %v1888 = vpop.f32.mrf.mxu0
    %v1889 = vadd.f32 0.0, %v1888
    %1890 = vdwg.mxu0
    %v1891 = vadd.f32 %v1889, %v183
    %v1892 = vxor.u32 %v1891, 2147483648
    %v1893 = vmul.f32 %v1892, 1.442695
    %v1894 = vpow.pop %v1893
    %v1895 = vadd.f32 %v1894, 1.0
    %v1896 = vrcp.pop %v1895
    %v1897 = vmul.f32 %v1895, %v1896
    %v1898 = vsub.f32 1.0, %v1897
    %v1899 = vmul.f32 %v1896, %v1898
    %v1900 = vadd.f32 %v1896, %v1899
    %vm1901 = vweird.f32 %v1895
    %vm1902 = vweird.f32 %v1896
    %vm1903 = vmor %vm1901, %vm1902
    %v1904 = vsel %vm1903, %v1896, %v1900
    %v1905 = vand.u32 2147483647, %v1895
    %vm1906 = vcmp.eq.f32.partialorder %v1905, 8.507059e+37
    %v1907 = vand.u32 %v1895, 2147483648
    %v1908 = vor.u32 1.1754944e-38, %v1907
    %v1909 = vsel %vm1906, %v1908, %v1904
    %v1910 = vmul.f32 1.0, %v1909
    %v1911 = vadd.f32 %v1889, %v374
    %v1912 = vadd.f32 %v1889, %v378
    %1914 = vrot.lane.b32.xlu0 %v1912, 32
    %v1915 = vpop.permute.xlu0 %1914
    %v1917 = vmul.f32 %v1910, %v1915
    %1919 = vrot.lane.b32.xlu0 %v1917, 64
    %v1920 = vpop.permute.xlu0 %1919
    %v1922 = vadd.f32 %v1911, %v1920
    %v1923 = vtanh.pop %v1922
    %v1924 = vsub.f32 1.0, %v1910
    %1926 = vrot.lane.b32.xlu0 %v1923, 96
    %v1927 = vpop.permute.xlu0 %1926
    %v1929 = vmul.f32 %v1924, %v1927
    %v1930 = vmul.f32 %v1910, %v1784
    %v1931 = vadd.f32 %v1929, %v1930
    %1933 = vrot.lane.b32.xlu0 %v1931, 96
    %v1934 = vpop.permute.xlu0 %1933
    %v1936 = vsel %vm327, %v1934, %v1785
    %v1938 = vsel %vm329, %v1936, 0
    %1940 = vmatpush.msra.mxu0 0.0
    %1941 = vmatpush.msra.mxu0 0.0
    %1942 = vmatpush.msra.mxu0 0.0
    %1943 = vmatpush.msra.mxu0 0.0
    %1944 = vmatpush.msra.mxu0 0.0
    %1945 = vmatpush.msra.mxu0 0.0
    %1946 = vmatpush.msra.mxu0 0.0
    %1947 = vmatpush.msra.mxu0 0.0
    %1948 = vmatpush.msra.mxu0 %v175
    %1949 = vmatpush.msra.mxu0 %v174
    %1950 = vmatpush.msra.mxu0 %v173
    %1951 = vmatpush.msra.mxu0 %v172
    %1952 = vmatpush.msra.mxu0 %v171
    %1953 = vmatpush.msra.mxu0 %v170
    %1954 = vmatpush.msra.mxu0 %v169
    %1955 = vmatpush.msra.mxu0 %v168
    %1956 = vmatmul.f32.gmra.mxu0 %v1938
    %v1957 = vpop.f32.mrf.mxu0
    %v1958 = vadd.f32 0.0, %v1957
    %1959 = vdwg.mxu0
    %v1960 = vadd.f32 %v1958, %v188
    %v1961 = vxor.u32 %v1960, 2147483648
    %v1962 = vmul.f32 %v1961, 1.442695
    %v1963 = vpow.pop %v1962
    %v1964 = vadd.f32 %v1963, 1.0
    %v1965 = vrcp.pop %v1964
    %v1966 = vmul.f32 %v1964, %v1965
    %v1967 = vsub.f32 1.0, %v1966
    %v1968 = vmul.f32 %v1965, %v1967
    %v1969 = vadd.f32 %v1965, %v1968
    %vm1970 = vweird.f32 %v1964
    %vm1971 = vweird.f32 %v1965
    %vm1972 = vmor %vm1970, %vm1971
    %v1973 = vsel %vm1972, %v1965, %v1969
    %v1974 = vand.u32 2147483647, %v1964
    %vm1975 = vcmp.eq.f32.partialorder %v1974, 8.507059e+37
    %v1976 = vand.u32 %v1964, 2147483648
    %v1977 = vor.u32 1.1754944e-38, %v1976
    %v1978 = vsel %vm1975, %v1977, %v1973
    %v1979 = vmul.f32 1.0, %v1978
    %v1980 = vadd.f32 %v1958, %v455
    %v1981 = vadd.f32 %v1958, %v459
    %1983 = vrot.lane.b32.xlu0 %v1981, 32
    %v1984 = vpop.permute.xlu0 %1983
    %v1986 = vmul.f32 %v1979, %v1984
    %1988 = vrot.lane.b32.xlu0 %v1986, 64
    %v1989 = vpop.permute.xlu0 %1988
    %v1991 = vadd.f32 %v1980, %v1989
    %v1992 = vtanh.pop %v1991
    %v1993 = vsub.f32 1.0, %v1979
    %1995 = vrot.lane.b32.xlu0 %v1992, 96
    %v1996 = vpop.permute.xlu0 %1995
    %v1998 = vmul.f32 %v1993, %v1996
    %v1999 = vmul.f32 %v1979, %v1785
    %v2000 = vadd.f32 %v1998, %v1999
    %2002 = vrot.lane.b32.xlu0 %v2000, 96
    %v2003 = vpop.permute.xlu0 %2002
    %v2004 = vsel %vm327, %v2003, 0
    %2006 = vmatpush.msra.mxu0 0.0
    %2007 = vmatpush.msra.mxu0 0.0
    %2008 = vmatpush.msra.mxu0 0.0
    %2009 = vmatpush.msra.mxu0 0.0
    %2010 = vmatpush.msra.mxu0 0.0
    %2011 = vmatpush.msra.mxu0 0.0
    %2012 = vmatpush.msra.mxu0 0.0
    %2013 = vmatpush.msra.mxu0 0.0
    %2014 = vmatpush.msra.mxu0 0.0
    %2015 = vmatpush.msra.mxu0 0.0
    %2016 = vmatpush.msra.mxu0 0.0
    %2017 = vmatpush.msra.mxu0 0.0
    %2018 = vmatpush.msra.mxu0 %v215
    %2019 = vmatpush.msra.mxu0 %v214
    %2020 = vmatpush.msra.mxu0 %v213
    %2021 = vmatpush.msra.mxu0 %v212
    %2022 = vmatmul.f32.gmra.mxu0 %v2004
    %v2023 = vpop.f32.mrf.mxu0
    %v2024 = vadd.f32 %v218, %v2023
    %2025 = vdwg.mxu0
    %v2026 = vsel %vm234, %v2024, -1e+30
    %v2027 = vsel %vm507, %v2026, -inf
    %2028 = vmax.xlane.f32.xlu0 %v2027
    %v2029 = vpop.xlane.xlu0 %2028
    %v2030 = vsub.f32 %v2026, %v2029
    %v2031 = vmul.f32 %v2030, 1.442695
    %v2032 = vpow.pop %v2031
    %v2033 = vsel %vm507, %v2032, 0.0
    %2034 = vadd.xlane.f32.xlu0 %v2033
    %v2035 = vpop.xlane.xlu0 %2034
    %v2036 = vrcp.pop %v2035
    %v2037 = vmul.f32 %v2035, %v2036
    %v2038 = vsub.f32 1.0, %v2037
    %v2039 = vmul.f32 %v2036, %v2038
    %v2040 = vadd.f32 %v2036, %v2039
    %vm2041 = vweird.f32 %v2035
    %vm2042 = vweird.f32 %v2036
    %vm2043 = vmor %vm2041, %vm2042
    %v2044 = vsel %vm2043, %v2036, %v2040
    %v2045 = vand.u32 2147483647, %v2035
    %vm2046 = vcmp.eq.f32.partialorder %v2045, 8.507059e+37
    %v2047 = vand.u32 %v2035, 2147483648
    %v2048 = vor.u32 1.1754944e-38, %v2047
    %v2049 = vsel %vm2046, %v2048, %v2044
    %v2050 = vmul.f32 %v2032, %v2049
    %v2051 = vxor.u32 %v2024, 2147483648
    %v2052 = vmul.f32 %v2051, 1.442695
    %v2053 = vpow.pop %v2052
    %v2054 = vadd.f32 %v2053, 1.0
    %v2055 = vrcp.pop %v2054
    %v2056 = vmul.f32 %v2054, %v2055
    %v2057 = vsub.f32 1.0, %v2056
    %v2058 = vmul.f32 %v2055, %v2057
    %v2059 = vadd.f32 %v2055, %v2058
    %vm2060 = vweird.f32 %v2054
    %vm2061 = vweird.f32 %v2055
    %vm2062 = vmor %vm2060, %vm2061
    %v2063 = vsel %vm2062, %v2055, %v2059
    %v2064 = vand.u32 2147483647, %v2054
    %vm2065 = vcmp.eq.f32.partialorder %v2064, 8.507059e+37
    %v2066 = vand.u32 %v2054, 2147483648
    %v2067 = vor.u32 1.1754944e-38, %v2066
    %v2068 = vsel %vm2065, %v2067, %v2063
    %v2069 = vmul.f32 1.0, %v2068
    %v2070 = vsel %vm231, %v2069, %v2050
    %v2071 = vsel %vm230, %v2024, %v2070
    %s2072 = scalar_lea.vmem [#allocation14], 20
    %2073 = vst [vmem:[%s2072] sm:$0xf] %v2071
    // Predicated region
    $region82: #{tpu_custom_call.1} parent=1 // pred_check
      _
    $region83: #{tpu_custom_call.1} parent=1 // pred_check_branch
      %2075 = sbr.rel (0) target = $region85
    $region84: #{tpu_custom_call.1} parent=1 // pred_region
      %2077 = vsyncadd [#allocation4], 0
      %s2078 = sshll.u32 [#allocation14], 4
      %s2079 = int_to_ptr.vmem [resolvable:$true] %s2078
      %s2080 = sshll.u32 %s13, 4
      %s2081 = int_to_ptr.hbm [resolvable:$true] %s2080
      %2086 = dma.vmem_to_hbm [thread:$0]  %s2079, 384, %s2081, [#allocation4], 64, 64, 4
    $region85: #{tpu_custom_call.1} parent=1 // pred_fallthru
      _
    // Predicated region
    $region86: #{tpu_custom_call.1} parent=1 // pred_check
      _
    $region87: #{tpu_custom_call.1} parent=1 // pred_check_branch
      %2088 = sbr.rel (0) target = $region89
    $region88: #{tpu_custom_call.1} parent=1 // pred_region
      %2090 = dma.done [#allocation4], 384
    $region89: #{tpu_custom_call.1} parent=1 // pred_fallthru
      _
    %2091 = vsyncpa [#allocation3], 1
    %2092 = vsyncpa [#allocation6], 1
    %2093 = vsyncpa [#allocation9], 1
    %2094 = vsyncpa [#allocation12], 1
    %2095 = vsyncpa [#allocation4], 1

</llo_original>
